<compile_context>
chip_gen: v6e
topology: v6e:2x2x1
jax: 0.10.0
libtpu: 0.0.40
codegen_flags: <defaults>
</compile_context>

<pallas_src>
import functools

import jax
import jax.numpy as jnp
import numpy as np
from jax.experimental import pallas as pl
from jax.experimental.pallas import tpu as pltpu


# ----------------------------------------------------------------------------
# Fused Pallas kernel: all layers + both directions + linear head.
# ----------------------------------------------------------------------------
def _lstm_reg_fused_kernel(*refs, num_layers, hidden_dim, seq_len, batch):
    H, S, B = hidden_dim, seq_len, batch
    H2 = 2 * H                       # width of [h_f | h_b]
    G = 8 * H                        # gates for both dirs, interleaved by gate
    n_in = 1 + 3 * num_layers + 2

    x_ref = refs[0]
    layer_refs = [refs[1 + 3 * l: 1 + 3 * (l + 1)] for l in range(num_layers)]
    w_reg_ref = refs[n_in - 2]
    b_reg_ref = refs[n_in - 1]
    out_ref = refs[n_in]
    gx_sc = refs[n_in + 1]           # (S, B, 8H): merged input projection

    # Loop-invariant lane masks (hoisted; JAX does not CSE broadcasts).
    col_g = jax.lax.broadcasted_iota(jnp.int32, (B, G), 1)
    fwd_cols_g = (col_g % H2) < H    # fwd sub-half of every 2H gate chunk
    col_2h = jax.lax.broadcasted_iota(jnp.int32, (B, H2), 1)
    fwd_cols_2h = col_2h < H         # fwd half of [h_f | h_b]

    layer_in = x_ref[...]            # (S*B, D_in)
    for layer in range(num_layers):
        w_x_ref, b_x_ref, w_hh_ref = layer_refs[layer]

        # Hoisted input projection (+ pre-summed bias) for ALL timesteps and
        # BOTH directions in one MXU matmul; stage per-timestep (tile-aligned
        # reads inside the recurrence).
        proj = (jnp.dot(layer_in, w_x_ref[...],
                        preferred_element_type=jnp.float32) + b_x_ref[...])
        for t in range(S):
            gx_sc[t] = proj[t * B:(t + 1) * B, :]

        w_hh = w_hh_ref[...]         # (2H, 8H) column-permuted block-diagonal

        h_cat = jnp.zeros((B, H2), jnp.float32)   # [h_f | h_b]
        c_cat = jnp.zeros((B, H2), jnp.float32)   # [c_f | c_b]
        hs = []

        # Fully unrolled time loop: fwd consumes time t, bwd consumes S-1-t.
        for t in range(S):
            tb = S - 1 - t
            # Merge fwd gates from step t with bwd gates from step tb (gate
            # columns are interleaved by direction, so this is one VPU select).
            gates = jnp.where(fwd_cols_g, gx_sc[t], gx_sc[tb])
            if t > 0:
                # Single recurrent matmul for both directions.
                gates = gates + jnp.dot(h_cat, w_hh,
                                        preferred_element_type=jnp.float32)
            # PyTorch gate ordering i, f, g, o; each chunk is [fwd H | bwd H].
            i_g = jax.nn.sigmoid(gates[:, 0 * H2:1 * H2])
            f_g = jax.nn.sigmoid(gates[:, 1 * H2:2 * H2])
            g_g = jnp.tanh(gates[:, 2 * H2:3 * H2])
            o_g = jax.nn.sigmoid(gates[:, 3 * H2:4 * H2])
            c_cat = f_g * c_cat + i_g * g_g
            h_cat = o_g * jnp.tanh(c_cat)
            hs.append(h_cat)

        # Layer output at time tau is [h_f(tau) | h_b(tau)]:
        #   h_f(tau) = hs[tau][:, :H],  h_b(tau) = hs[S-1-tau][:, H:].
        rows = [jnp.where(fwd_cols_2h, hs[t], hs[S - 1 - t]) for t in range(S)]
        layer_in = jnp.concatenate(rows, axis=0)   # (S*B, 2H)

    # Fused hidden2reg epilogue (dropout p=0 is identity). Output is padded to
    # 128 lanes for lane-dense stores; sliced to reg_dim outside the kernel.
    out_ref[...] = (jnp.dot(layer_in, w_reg_ref[...],
                            preferred_element_type=jnp.float32)
                    + b_reg_ref[...])


# ----------------------------------------------------------------------------
# One-time parameter packing (outside the jitted forward).
# ----------------------------------------------------------------------------
def _interleave_gates(wf, wb, H):
    """[i f g o] per dir -> [i_f i_b | f_f f_b | g_f g_b | o_f o_b]."""
    parts = []
    for g in range(4):
        parts.append(wf[..., g * H:(g + 1) * H])
        parts.append(wb[..., g * H:(g + 1) * H])
    return jnp.concatenate(parts, axis=-1)


def prepare_params(params, hidden_dim, num_layers=2):
    H = hidden_dim
    packed = {"layers": []}
    for layer in range(num_layers):
        p = params["lstm"][layer]
        w_x = _interleave_gates(p["w_ih_f"], p["w_ih_b"], H)     # (d_in, 8H)
        b_x = _interleave_gates(p["b_f"], p["b_b"], H)           # (1, 8H)
        z = jnp.zeros_like(p["w_hh_f"])
        w_hh = jnp.concatenate(
            [_interleave_gates(p["w_hh_f"], z, H),   # h_f rows -> fwd columns
             _interleave_gates(z, p["w_hh_b"], H)],  # h_b rows -> bwd columns
            axis=0)                                               # (2H, 8H)
        packed["layers"].append({"w_x": w_x, "b_x": b_x, "w_hh": w_hh})

    R = params["w_reg"].shape[1]
    RP = ((R + 127) // 128) * 128    # lane-dense output width
    packed["w_reg"] = (jnp.zeros((2 * H, RP), jnp.float32)
                       .at[:, :R].set(params["w_reg"]))
    packed["b_reg"] = (jnp.zeros((1, RP), jnp.float32)
                       .at[:, :R].set(params["b_reg"].reshape(1, R)))
    return packed


# ----------------------------------------------------------------------------
# Jitted forward wrapper.
# ----------------------------------------------------------------------------
@functools.partial(jax.jit, static_argnums=(2, 3, 4))
def lstm_reg_forward(x, packed, hidden_dim, reg_dim, num_layers=2):
    S, B, D_in = x.shape
    H = hidden_dim
    RP = packed["w_reg"].shape[1]
    x2d = x.reshape(S * B, D_in)

    inputs = [x2d]
    for layer in range(num_layers):
        lp = packed["layers"][layer]
        inputs += [lp["w_x"], lp["b_x"], lp["w_hh"]]
    inputs += [packed["w_reg"], packed["b_reg"]]

    in_specs = [pl.BlockSpec(a.shape, lambda i: (0, 0)) for a in inputs]

    kernel = functools.partial(
        _lstm_reg_fused_kernel, num_layers=num_layers, hidden_dim=H,
        seq_len=S, batch=B)

    out2d = pl.pallas_call(
        kernel,
        out_shape=jax.ShapeDtypeStruct((S * B, RP), jnp.float32),
        grid=(1,),
        in_specs=in_specs,
        out_specs=pl.BlockSpec((S * B, RP), lambda i: (0, 0)),
        scratch_shapes=[pltpu.VMEM((S, B, 8 * H), jnp.float32)],
        compiler_params=pltpu.CompilerParams(
            dimension_semantics=("arbitrary",)),
    )(*inputs)
    return out2d[:, :reg_dim].reshape(S, B, reg_dim)


# ----------------------------------------------------------------------------
# Pure-JAX reference (lax.scan) for correctness checking.
# ----------------------------------------------------------------------------
def _lstm_dir_ref(x, w_ih, w_hh, b, H):
    B = x.shape[1]

    def step(carry, x_t):
        h, c = carry
        gates = x_t @ w_ih + h @ w_hh + b
        i = jax.nn.sigmoid(gates[:, :H])
        f = jax.nn.sigmoid(gates[:, H:2 * H])
        g = jnp.tanh(gates[:, 2 * H:3 * H])
        o = jax.nn.sigmoid(gates[:, 3 * H:])
        c = f * c + i * g
        h = o * jnp.tanh(c)
        return (h, c), h

    init = (jnp.zeros((B, H), jnp.float32), jnp.zeros((B, H), jnp.float32))
    _, hs = jax.lax.scan(step, init, x)
    return hs


def lstm_reg_ref(x, params, hidden_dim, num_layers=2):
    layer_in = x
    for layer in range(num_layers):
        p = params["lstm"][layer]
        h_fwd = _lstm_dir_ref(layer_in, p["w_ih_f"], p["w_hh_f"], p["b_f"],
                              hidden_dim)
        h_bwd = _lstm_dir_ref(layer_in[::-1], p["w_ih_b"], p["w_hh_b"],
                              p["b_b"], hidden_dim)[::-1]
        layer_in = jnp.concatenate([h_fwd, h_bwd], axis=-1)
    out = layer_in @ params["w_reg"] + params["b_reg"]
    return out


# ----------------------------------------------------------------------------
# Deterministic parameter construction (PyTorch-style uniform init).
# ----------------------------------------------------------------------------
def make_params(key, feature_dim, hidden_dim, reg_dim, num_layers=2):
    H = hidden_dim
    k_lstm = 1.0 / np.sqrt(H)
    params = {"lstm": []}
    for layer in range(num_layers):
        d_in = feature_dim if layer == 0 else 2 * H
        layer_p = {}
        for suffix in ("f", "b"):
            key, k1, k2, k3, k4 = jax.random.split(key, 5)
            # Stored pre-transposed: (d_in, 4H) / (H, 4H); gate order i,f,g,o.
            w_ih = jax.random.uniform(k1, (d_in, 4 * H), jnp.float32,
                                      -k_lstm, k_lstm)
            w_hh = jax.random.uniform(k2, (H, 4 * H), jnp.float32,
                                      -k_lstm, k_lstm)
            b_ih = jax.random.uniform(k3, (4 * H,), jnp.float32, -k_lstm, k_lstm)
            b_hh = jax.random.uniform(k4, (4 * H,), jnp.float32, -k_lstm, k_lstm)
            layer_p[f"w_ih_{suffix}"] = w_ih
            layer_p[f"w_hh_{suffix}"] = w_hh
            layer_p[f"b_{suffix}"] = (b_ih + b_hh).reshape(1, 4 * H)
        params["lstm"].append(layer_p)

    k_lin = 1.0 / np.sqrt(2 * H)
    key, k1, k2 = jax.random.split(key, 3)
    params["w_reg"] = jax.random.uniform(k1, (2 * H, reg_dim), jnp.float32,
                                         -k_lin, k_lin)
    params["b_reg"] = jax.random.uniform(k2, (reg_dim,), jnp.float32,
                                         -k_lin, k_lin).reshape(1, reg_dim)
    return params


if __name__ == "__main__":
    SEQ, BATCH = 8, 2
    FEATURE_DIM, HIDDEN_DIM, REG_DIM = 11, 32, 4
    NUM_LAYERS = 2

    key = jax.random.PRNGKey(0)
    key_x, key_p = jax.random.split(key)
    x = jax.random.normal(key_x, (SEQ, BATCH, FEATURE_DIM), jnp.float32)
    params = make_params(key_p, FEATURE_DIM, HIDDEN_DIM, REG_DIM, NUM_LAYERS)

    # One-time weight packing outside the jitted forward (perf review #8).
    packed = prepare_params(params, HIDDEN_DIM, NUM_LAYERS)

    out = jax.block_until_ready(
        lstm_reg_forward(x, packed, HIDDEN_DIM, REG_DIM, NUM_LAYERS))

    ref = jax.block_until_ready(lstm_reg_ref(x, params, HIDDEN_DIM, NUM_LAYERS))

    assert out.shape == (SEQ, BATCH, REG_DIM), out.shape
    np.testing.assert_allclose(np.asarray(out), np.asarray(ref),
                               rtol=1e-4, atol=1e-5)
    print("KERNEL_OK")
</pallas_src>

<mosaic_0001>
module attributes {stable_mosaic.version = 11 : i64} {
  func.func @_lstm_reg_fused_kernel(%arg0: i32, %arg1: memref<16x11xf32, #tpu.memory_space<vmem>>, %arg2: memref<11x256xf32, #tpu.memory_space<vmem>>, %arg3: memref<1x256xf32, #tpu.memory_space<vmem>>, %arg4: memref<64x256xf32, #tpu.memory_space<vmem>>, %arg5: memref<64x256xf32, #tpu.memory_space<vmem>>, %arg6: memref<1x256xf32, #tpu.memory_space<vmem>>, %arg7: memref<64x256xf32, #tpu.memory_space<vmem>>, %arg8: memref<64x128xf32, #tpu.memory_space<vmem>>, %arg9: memref<1x128xf32, #tpu.memory_space<vmem>>, %arg10: memref<16x128xf32, #tpu.memory_space<vmem>>, %arg11: memref<8x2x256xf32, #tpu.memory_space<vmem>>) attributes {dimension_semantics = [#tpu.dimension_semantics<arbitrary>], iteration_bounds = array<i64: 1>, scalar_prefetch = 0 : i64, scratch_operands = 1 : i64, tpu.core_type = #tpu.core_type<tc>, window_params = [{pipeline_mode = #tpu.pipeline_mode<synchronous>, transform_indices = @transform_0, window_bounds = array<i64: 16, 11>}, {pipeline_mode = #tpu.pipeline_mode<synchronous>, transform_indices = @transform_1, window_bounds = array<i64: 11, 256>}, {pipeline_mode = #tpu.pipeline_mode<synchronous>, transform_indices = @transform_2, window_bounds = array<i64: 1, 256>}, {pipeline_mode = #tpu.pipeline_mode<synchronous>, transform_indices = @transform_3, window_bounds = array<i64: 64, 256>}, {pipeline_mode = #tpu.pipeline_mode<synchronous>, transform_indices = @transform_4, window_bounds = array<i64: 64, 256>}, {pipeline_mode = #tpu.pipeline_mode<synchronous>, transform_indices = @transform_5, window_bounds = array<i64: 1, 256>}, {pipeline_mode = #tpu.pipeline_mode<synchronous>, transform_indices = @transform_6, window_bounds = array<i64: 64, 256>}, {pipeline_mode = #tpu.pipeline_mode<synchronous>, transform_indices = @transform_7, window_bounds = array<i64: 64, 128>}, {pipeline_mode = #tpu.pipeline_mode<synchronous>, transform_indices = @transform_8, window_bounds = array<i64: 1, 128>}, {pipeline_mode = #tpu.pipeline_mode<synchronous>, transform_indices = @transform_9, window_bounds = array<i64: 16, 128>}]} {
    %0 = tpu.iota {dimensions = array<i32: 1>} : vector<2x256xi32>
    %c64_i32 = arith.constant 64 : i32
    %c0_i32 = arith.constant 0 : i32
    %1 = arith.cmpi eq, %c64_i32, %c0_i32 : i32
    %c1_i32 = arith.constant 1 : i32
    %2 = arith.select %1, %c1_i32, %c64_i32 : i32
    %3 = vector.broadcast %2 : i32 to vector<2x256xi32>
    %4 = arith.remsi %0, %3 : vector<2x256xi32>
    %c0_i32_0 = arith.constant 0 : i32
    %5 = vector.broadcast %c0_i32_0 : i32 to vector<2x256xi32>
    %6 = arith.cmpi ne, %4, %5 : vector<2x256xi32>
    %c0_i32_1 = arith.constant 0 : i32
    %7 = vector.broadcast %c0_i32_1 : i32 to vector<2x256xi32>
    %8 = arith.cmpi slt, %4, %7 : vector<2x256xi32>
    %c0_i32_2 = arith.constant 0 : i32
    %9 = arith.cmpi slt, %2, %c0_i32_2 : i32
    %10 = vector.broadcast %9 : i1 to vector<2x256xi1>
    %11 = vector.broadcast %10 : vector<2x256xi1> to vector<2x256xi1>
    %12 = arith.xori %8, %11 : vector<2x256xi1>
    %13 = arith.andi %12, %6 : vector<2x256xi1>
    %14 = vector.broadcast %2 : i32 to vector<2x256xi32>
    %15 = arith.addi %4, %14 : vector<2x256xi32>
    %16 = arith.select %13, %15, %4 : vector<2x256xi1>, vector<2x256xi32>
    %c32_i32 = arith.constant 32 : i32
    %17 = vector.broadcast %c32_i32 : i32 to vector<2x256xi32>
    %18 = arith.cmpi slt, %16, %17 : vector<2x256xi32>
    %19 = tpu.iota {dimensions = array<i32: 1>} : vector<2x64xi32>
    %c32_i32_3 = arith.constant 32 : i32
    %20 = vector.broadcast %c32_i32_3 : i32 to vector<2x64xi32>
    %21 = arith.cmpi slt, %19, %20 : vector<2x64xi32>
    %c0 = arith.constant 0 : index
    %c0_4 = arith.constant 0 : index
    %22 = vector.load %arg1[%c0, %c0_4] : memref<16x11xf32, #tpu.memory_space<vmem>>, vector<16x11xf32>
    %c0_5 = arith.constant 0 : index
    %c0_6 = arith.constant 0 : index
    %23 = vector.load %arg2[%c0_5, %c0_6] : memref<11x256xf32, #tpu.memory_space<vmem>>, vector<11x256xf32>
    %cst = arith.constant dense<0.000000e+00> : vector<16x256xf32>
    %24 = tpu.matmul %22, %23, %cst {dimension_numbers = #tpu.dot_dimension_numbers<[1], [0], [0], [1], [0, 0, 1, 1], [], []>} : vector<16x11xf32>, vector<11x256xf32>, vector<16x256xf32> -> vector<16x256xf32>
    %c0_7 = arith.constant 0 : index
    %c0_8 = arith.constant 0 : index
    %25 = vector.load %arg3[%c0_7, %c0_8] : memref<1x256xf32, #tpu.memory_space<vmem>>, vector<1x256xf32>
    %26 = vector.broadcast %25 : vector<1x256xf32> to vector<16x256xf32>
    %27 = arith.addf %24, %26 : vector<16x256xf32>
    %28 = vector.extract_strided_slice %27 {offsets = [0, 0], sizes = [2, 256], strides = [1, 1]} : vector<16x256xf32> to vector<2x256xf32>
    %c0_9 = arith.constant 0 : index
    %c0_10 = arith.constant 0 : index
    %c0_11 = arith.constant 0 : index
    %29 = vector.load %arg11[%c0_9, %c0_10, %c0_11] : memref<8x2x256xf32, #tpu.memory_space<vmem>>, vector<1x2x256xf32>
    %30 = vector.shape_cast %29 : vector<1x2x256xf32> to vector<2x256xf32>
    %31 = vector.shape_cast %28 : vector<2x256xf32> to vector<1x2x256xf32>
    tpu.vector_store %arg11[%c0_9, %c0_10, %c0_11], %31 {strides = array<i32>} : memref<8x2x256xf32, #tpu.memory_space<vmem>>, vector<1x2x256xf32>,
    %32 = vector.extract_strided_slice %27 {offsets = [2, 0], sizes = [2, 256], strides = [1, 1]} : vector<16x256xf32> to vector<2x256xf32>
    %c1 = arith.constant 1 : index
    %c0_12 = arith.constant 0 : index
    %c0_13 = arith.constant 0 : index
    %33 = vector.load %arg11[%c1, %c0_12, %c0_13] : memref<8x2x256xf32, #tpu.memory_space<vmem>>, vector<1x2x256xf32>
    %34 = vector.shape_cast %33 : vector<1x2x256xf32> to vector<2x256xf32>
    %35 = vector.shape_cast %32 : vector<2x256xf32> to vector<1x2x256xf32>
    tpu.vector_store %arg11[%c1, %c0_12, %c0_13], %35 {strides = array<i32>} : memref<8x2x256xf32, #tpu.memory_space<vmem>>, vector<1x2x256xf32>,
    %36 = vector.extract_strided_slice %27 {offsets = [4, 0], sizes = [2, 256], strides = [1, 1]} : vector<16x256xf32> to vector<2x256xf32>
    %c2 = arith.constant 2 : index
    %c0_14 = arith.constant 0 : index
    %c0_15 = arith.constant 0 : index
    %37 = vector.load %arg11[%c2, %c0_14, %c0_15] : memref<8x2x256xf32, #tpu.memory_space<vmem>>, vector<1x2x256xf32>
    %38 = vector.shape_cast %37 : vector<1x2x256xf32> to vector<2x256xf32>
    %39 = vector.shape_cast %36 : vector<2x256xf32> to vector<1x2x256xf32>
    tpu.vector_store %arg11[%c2, %c0_14, %c0_15], %39 {strides = array<i32>} : memref<8x2x256xf32, #tpu.memory_space<vmem>>, vector<1x2x256xf32>,
    %40 = vector.extract_strided_slice %27 {offsets = [6, 0], sizes = [2, 256], strides = [1, 1]} : vector<16x256xf32> to vector<2x256xf32>
    %c3 = arith.constant 3 : index
    %c0_16 = arith.constant 0 : index
    %c0_17 = arith.constant 0 : index
    %41 = vector.load %arg11[%c3, %c0_16, %c0_17] : memref<8x2x256xf32, #tpu.memory_space<vmem>>, vector<1x2x256xf32>
    %42 = vector.shape_cast %41 : vector<1x2x256xf32> to vector<2x256xf32>
    %43 = vector.shape_cast %40 : vector<2x256xf32> to vector<1x2x256xf32>
    tpu.vector_store %arg11[%c3, %c0_16, %c0_17], %43 {strides = array<i32>} : memref<8x2x256xf32, #tpu.memory_space<vmem>>, vector<1x2x256xf32>,
    %44 = vector.extract_strided_slice %27 {offsets = [8, 0], sizes = [2, 256], strides = [1, 1]} : vector<16x256xf32> to vector<2x256xf32>
    %c4 = arith.constant 4 : index
    %c0_18 = arith.constant 0 : index
    %c0_19 = arith.constant 0 : index
    %45 = vector.load %arg11[%c4, %c0_18, %c0_19] : memref<8x2x256xf32, #tpu.memory_space<vmem>>, vector<1x2x256xf32>
    %46 = vector.shape_cast %45 : vector<1x2x256xf32> to vector<2x256xf32>
    %47 = vector.shape_cast %44 : vector<2x256xf32> to vector<1x2x256xf32>
    tpu.vector_store %arg11[%c4, %c0_18, %c0_19], %47 {strides = array<i32>} : memref<8x2x256xf32, #tpu.memory_space<vmem>>, vector<1x2x256xf32>,
    %48 = vector.extract_strided_slice %27 {offsets = [10, 0], sizes = [2, 256], strides = [1, 1]} : vector<16x256xf32> to vector<2x256xf32>
    %c5 = arith.constant 5 : index
    %c0_20 = arith.constant 0 : index
    %c0_21 = arith.constant 0 : index
    %49 = vector.load %arg11[%c5, %c0_20, %c0_21] : memref<8x2x256xf32, #tpu.memory_space<vmem>>, vector<1x2x256xf32>
    %50 = vector.shape_cast %49 : vector<1x2x256xf32> to vector<2x256xf32>
    %51 = vector.shape_cast %48 : vector<2x256xf32> to vector<1x2x256xf32>
    tpu.vector_store %arg11[%c5, %c0_20, %c0_21], %51 {strides = array<i32>} : memref<8x2x256xf32, #tpu.memory_space<vmem>>, vector<1x2x256xf32>,
    %52 = vector.extract_strided_slice %27 {offsets = [12, 0], sizes = [2, 256], strides = [1, 1]} : vector<16x256xf32> to vector<2x256xf32>
    %c6 = arith.constant 6 : index
    %c0_22 = arith.constant 0 : index
    %c0_23 = arith.constant 0 : index
    %53 = vector.load %arg11[%c6, %c0_22, %c0_23] : memref<8x2x256xf32, #tpu.memory_space<vmem>>, vector<1x2x256xf32>
    %54 = vector.shape_cast %53 : vector<1x2x256xf32> to vector<2x256xf32>
    %55 = vector.shape_cast %52 : vector<2x256xf32> to vector<1x2x256xf32>
    tpu.vector_store %arg11[%c6, %c0_22, %c0_23], %55 {strides = array<i32>} : memref<8x2x256xf32, #tpu.memory_space<vmem>>, vector<1x2x256xf32>,
    %56 = vector.extract_strided_slice %27 {offsets = [14, 0], sizes = [2, 256], strides = [1, 1]} : vector<16x256xf32> to vector<2x256xf32>
    %c7 = arith.constant 7 : index
    %c0_24 = arith.constant 0 : index
    %c0_25 = arith.constant 0 : index
    %57 = vector.load %arg11[%c7, %c0_24, %c0_25] : memref<8x2x256xf32, #tpu.memory_space<vmem>>, vector<1x2x256xf32>
    %58 = vector.shape_cast %57 : vector<1x2x256xf32> to vector<2x256xf32>
    %59 = vector.shape_cast %56 : vector<2x256xf32> to vector<1x2x256xf32>
    tpu.vector_store %arg11[%c7, %c0_24, %c0_25], %59 {strides = array<i32>} : memref<8x2x256xf32, #tpu.memory_space<vmem>>, vector<1x2x256xf32>,
    %c0_26 = arith.constant 0 : index
    %c0_27 = arith.constant 0 : index
    %60 = vector.load %arg4[%c0_26, %c0_27] : memref<64x256xf32, #tpu.memory_space<vmem>>, vector<64x256xf32>
    %cst_28 = arith.constant 0.000000e+00 : f32
    %61 = vector.broadcast %cst_28 : f32 to vector<2x64xf32>
    %c0_29 = arith.constant 0 : index
    %c0_30 = arith.constant 0 : index
    %c0_31 = arith.constant 0 : index
    %62 = vector.load %arg11[%c0_29, %c0_30, %c0_31] : memref<8x2x256xf32, #tpu.memory_space<vmem>>, vector<1x2x256xf32>
    %63 = vector.shape_cast %62 : vector<1x2x256xf32> to vector<2x256xf32>
    %c7_32 = arith.constant 7 : index
    %c0_33 = arith.constant 0 : index
    %c0_34 = arith.constant 0 : index
    %64 = vector.load %arg11[%c7_32, %c0_33, %c0_34] : memref<8x2x256xf32, #tpu.memory_space<vmem>>, vector<1x2x256xf32>
    %65 = vector.shape_cast %64 : vector<1x2x256xf32> to vector<2x256xf32>
    %66 = arith.select %18, %63, %65 : vector<2x256xi1>, vector<2x256xf32>
    %67 = vector.extract_strided_slice %66 {offsets = [0, 0], sizes = [2, 64], strides = [1, 1]} : vector<2x256xf32> to vector<2x64xf32>
    %68 = arith.negf %67 : vector<2x64xf32>
    %69 = math.exp %68 : vector<2x64xf32>
    %cst_35 = arith.constant 1.000000e+00 : f32
    %70 = vector.broadcast %cst_35 : f32 to vector<2x64xf32>
    %71 = arith.addf %70, %69 : vector<2x64xf32>
    %72 = arith.divf %70, %71 : vector<2x64xf32>
    %73 = vector.extract_strided_slice %66 {offsets = [0, 64], sizes = [2, 64], strides = [1, 1]} : vector<2x256xf32> to vector<2x64xf32>
    %74 = arith.negf %73 : vector<2x64xf32>
    %75 = math.exp %74 : vector<2x64xf32>
    %cst_36 = arith.constant 1.000000e+00 : f32
    %76 = vector.broadcast %cst_36 : f32 to vector<2x64xf32>
    %77 = arith.addf %76, %75 : vector<2x64xf32>
    %78 = arith.divf %76, %77 : vector<2x64xf32>
    %79 = vector.extract_strided_slice %66 {offsets = [0, 128], sizes = [2, 64], strides = [1, 1]} : vector<2x256xf32> to vector<2x64xf32>
    %80 = math.tanh %79 : vector<2x64xf32>
    %81 = vector.extract_strided_slice %66 {offsets = [0, 192], sizes = [2, 64], strides = [1, 1]} : vector<2x256xf32> to vector<2x64xf32>
    %82 = arith.negf %81 : vector<2x64xf32>
    %83 = math.exp %82 : vector<2x64xf32>
    %cst_37 = arith.constant 1.000000e+00 : f32
    %84 = vector.broadcast %cst_37 : f32 to vector<2x64xf32>
    %85 = arith.addf %84, %83 : vector<2x64xf32>
    %86 = arith.divf %84, %85 : vector<2x64xf32>
    %87 = arith.mulf %78, %61 : vector<2x64xf32>
    %88 = arith.mulf %72, %80 : vector<2x64xf32>
    %89 = arith.addf %87, %88 : vector<2x64xf32>
    %90 = math.tanh %89 : vector<2x64xf32>
    %91 = arith.mulf %86, %90 : vector<2x64xf32>
    %c1_38 = arith.constant 1 : index
    %c0_39 = arith.constant 0 : index
    %c0_40 = arith.constant 0 : index
    %92 = vector.load %arg11[%c1_38, %c0_39, %c0_40] : memref<8x2x256xf32, #tpu.memory_space<vmem>>, vector<1x2x256xf32>
    %93 = vector.shape_cast %92 : vector<1x2x256xf32> to vector<2x256xf32>
    %c6_41 = arith.constant 6 : index
    %c0_42 = arith.constant 0 : index
    %c0_43 = arith.constant 0 : index
    %94 = vector.load %arg11[%c6_41, %c0_42, %c0_43] : memref<8x2x256xf32, #tpu.memory_space<vmem>>, vector<1x2x256xf32>
    %95 = vector.shape_cast %94 : vector<1x2x256xf32> to vector<2x256xf32>
    %96 = arith.select %18, %93, %95 : vector<2x256xi1>, vector<2x256xf32>
    %cst_44 = arith.constant dense<0.000000e+00> : vector<2x256xf32>
    %97 = tpu.matmul %91, %60, %cst_44 {dimension_numbers = #tpu.dot_dimension_numbers<[1], [0], [0], [1], [0, 0, 1, 1], [], []>} : vector<2x64xf32>, vector<64x256xf32>, vector<2x256xf32> -> vector<2x256xf32>
    %98 = arith.addf %96, %97 : vector<2x256xf32>
    %99 = vector.extract_strided_slice %98 {offsets = [0, 0], sizes = [2, 64], strides = [1, 1]} : vector<2x256xf32> to vector<2x64xf32>
    %100 = arith.negf %99 : vector<2x64xf32>
    %101 = math.exp %100 : vector<2x64xf32>
    %cst_45 = arith.constant 1.000000e+00 : f32
    %102 = vector.broadcast %cst_45 : f32 to vector<2x64xf32>
    %103 = arith.addf %102, %101 : vector<2x64xf32>
    %104 = arith.divf %102, %103 : vector<2x64xf32>
    %105 = vector.extract_strided_slice %98 {offsets = [0, 64], sizes = [2, 64], strides = [1, 1]} : vector<2x256xf32> to vector<2x64xf32>
    %106 = arith.negf %105 : vector<2x64xf32>
    %107 = math.exp %106 : vector<2x64xf32>
    %cst_46 = arith.constant 1.000000e+00 : f32
    %108 = vector.broadcast %cst_46 : f32 to vector<2x64xf32>
    %109 = arith.addf %108, %107 : vector<2x64xf32>
    %110 = arith.divf %108, %109 : vector<2x64xf32>
    %111 = vector.extract_strided_slice %98 {offsets = [0, 128], sizes = [2, 64], strides = [1, 1]} : vector<2x256xf32> to vector<2x64xf32>
    %112 = math.tanh %111 : vector<2x64xf32>
    %113 = vector.extract_strided_slice %98 {offsets = [0, 192], sizes = [2, 64], strides = [1, 1]} : vector<2x256xf32> to vector<2x64xf32>
    %114 = arith.negf %113 : vector<2x64xf32>
    %115 = math.exp %114 : vector<2x64xf32>
    %cst_47 = arith.constant 1.000000e+00 : f32
    %116 = vector.broadcast %cst_47 : f32 to vector<2x64xf32>
    %117 = arith.addf %116, %115 : vector<2x64xf32>
    %118 = arith.divf %116, %117 : vector<2x64xf32>
    %119 = arith.mulf %110, %89 : vector<2x64xf32>
    %120 = arith.mulf %104, %112 : vector<2x64xf32>
    %121 = arith.addf %119, %120 : vector<2x64xf32>
    %122 = math.tanh %121 : vector<2x64xf32>
    %123 = arith.mulf %118, %122 : vector<2x64xf32>
    %c2_48 = arith.constant 2 : index
    %c0_49 = arith.constant 0 : index
    %c0_50 = arith.constant 0 : index
    %124 = vector.load %arg11[%c2_48, %c0_49, %c0_50] : memref<8x2x256xf32, #tpu.memory_space<vmem>>, vector<1x2x256xf32>
    %125 = vector.shape_cast %124 : vector<1x2x256xf32> to vector<2x256xf32>
    %c5_51 = arith.constant 5 : index
    %c0_52 = arith.constant 0 : index
    %c0_53 = arith.constant 0 : index
    %126 = vector.load %arg11[%c5_51, %c0_52, %c0_53] : memref<8x2x256xf32, #tpu.memory_space<vmem>>, vector<1x2x256xf32>
    %127 = vector.shape_cast %126 : vector<1x2x256xf32> to vector<2x256xf32>
    %128 = arith.select %18, %125, %127 : vector<2x256xi1>, vector<2x256xf32>
    %cst_54 = arith.constant dense<0.000000e+00> : vector<2x256xf32>
    %129 = tpu.matmul %123, %60, %cst_54 {dimension_numbers = #tpu.dot_dimension_numbers<[1], [0], [0], [1], [0, 0, 1, 1], [], []>} : vector<2x64xf32>, vector<64x256xf32>, vector<2x256xf32> -> vector<2x256xf32>
    %130 = arith.addf %128, %129 : vector<2x256xf32>
    %131 = vector.extract_strided_slice %130 {offsets = [0, 0], sizes = [2, 64], strides = [1, 1]} : vector<2x256xf32> to vector<2x64xf32>
    %132 = arith.negf %131 : vector<2x64xf32>
    %133 = math.exp %132 : vector<2x64xf32>
    %cst_55 = arith.constant 1.000000e+00 : f32
    %134 = vector.broadcast %cst_55 : f32 to vector<2x64xf32>
    %135 = arith.addf %134, %133 : vector<2x64xf32>
    %136 = arith.divf %134, %135 : vector<2x64xf32>
    %137 = vector.extract_strided_slice %130 {offsets = [0, 64], sizes = [2, 64], strides = [1, 1]} : vector<2x256xf32> to vector<2x64xf32>
    %138 = arith.negf %137 : vector<2x64xf32>
    %139 = math.exp %138 : vector<2x64xf32>
    %cst_56 = arith.constant 1.000000e+00 : f32
    %140 = vector.broadcast %cst_56 : f32 to vector<2x64xf32>
    %141 = arith.addf %140, %139 : vector<2x64xf32>
    %142 = arith.divf %140, %141 : vector<2x64xf32>
    %143 = vector.extract_strided_slice %130 {offsets = [0, 128], sizes = [2, 64], strides = [1, 1]} : vector<2x256xf32> to vector<2x64xf32>
    %144 = math.tanh %143 : vector<2x64xf32>
    %145 = vector.extract_strided_slice %130 {offsets = [0, 192], sizes = [2, 64], strides = [1, 1]} : vector<2x256xf32> to vector<2x64xf32>
    %146 = arith.negf %145 : vector<2x64xf32>
    %147 = math.exp %146 : vector<2x64xf32>
    %cst_57 = arith.constant 1.000000e+00 : f32
    %148 = vector.broadcast %cst_57 : f32 to vector<2x64xf32>
    %149 = arith.addf %148, %147 : vector<2x64xf32>
    %150 = arith.divf %148, %149 : vector<2x64xf32>
    %151 = arith.mulf %142, %121 : vector<2x64xf32>
    %152 = arith.mulf %136, %144 : vector<2x64xf32>
    %153 = arith.addf %151, %152 : vector<2x64xf32>
    %154 = math.tanh %153 : vector<2x64xf32>
    %155 = arith.mulf %150, %154 : vector<2x64xf32>
    %c3_58 = arith.constant 3 : index
    %c0_59 = arith.constant 0 : index
    %c0_60 = arith.constant 0 : index
    %156 = vector.load %arg11[%c3_58, %c0_59, %c0_60] : memref<8x2x256xf32, #tpu.memory_space<vmem>>, vector<1x2x256xf32>
    %157 = vector.shape_cast %156 : vector<1x2x256xf32> to vector<2x256xf32>
    %c4_61 = arith.constant 4 : index
    %c0_62 = arith.constant 0 : index
    %c0_63 = arith.constant 0 : index
    %158 = vector.load %arg11[%c4_61, %c0_62, %c0_63] : memref<8x2x256xf32, #tpu.memory_space<vmem>>, vector<1x2x256xf32>
    %159 = vector.shape_cast %158 : vector<1x2x256xf32> to vector<2x256xf32>
    %160 = arith.select %18, %157, %159 : vector<2x256xi1>, vector<2x256xf32>
    %cst_64 = arith.constant dense<0.000000e+00> : vector<2x256xf32>
    %161 = tpu.matmul %155, %60, %cst_64 {dimension_numbers = #tpu.dot_dimension_numbers<[1], [0], [0], [1], [0, 0, 1, 1], [], []>} : vector<2x64xf32>, vector<64x256xf32>, vector<2x256xf32> -> vector<2x256xf32>
    %162 = arith.addf %160, %161 : vector<2x256xf32>
    %163 = vector.extract_strided_slice %162 {offsets = [0, 0], sizes = [2, 64], strides = [1, 1]} : vector<2x256xf32> to vector<2x64xf32>
    %164 = arith.negf %163 : vector<2x64xf32>
    %165 = math.exp %164 : vector<2x64xf32>
    %cst_65 = arith.constant 1.000000e+00 : f32
    %166 = vector.broadcast %cst_65 : f32 to vector<2x64xf32>
    %167 = arith.addf %166, %165 : vector<2x64xf32>
    %168 = arith.divf %166, %167 : vector<2x64xf32>
    %169 = vector.extract_strided_slice %162 {offsets = [0, 64], sizes = [2, 64], strides = [1, 1]} : vector<2x256xf32> to vector<2x64xf32>
    %170 = arith.negf %169 : vector<2x64xf32>
    %171 = math.exp %170 : vector<2x64xf32>
    %cst_66 = arith.constant 1.000000e+00 : f32
    %172 = vector.broadcast %cst_66 : f32 to vector<2x64xf32>
    %173 = arith.addf %172, %171 : vector<2x64xf32>
    %174 = arith.divf %172, %173 : vector<2x64xf32>
    %175 = vector.extract_strided_slice %162 {offsets = [0, 128], sizes = [2, 64], strides = [1, 1]} : vector<2x256xf32> to vector<2x64xf32>
    %176 = math.tanh %175 : vector<2x64xf32>
    %177 = vector.extract_strided_slice %162 {offsets = [0, 192], sizes = [2, 64], strides = [1, 1]} : vector<2x256xf32> to vector<2x64xf32>
    %178 = arith.negf %177 : vector<2x64xf32>
    %179 = math.exp %178 : vector<2x64xf32>
    %cst_67 = arith.constant 1.000000e+00 : f32
    %180 = vector.broadcast %cst_67 : f32 to vector<2x64xf32>
    %181 = arith.addf %180, %179 : vector<2x64xf32>
    %182 = arith.divf %180, %181 : vector<2x64xf32>
    %183 = arith.mulf %174, %153 : vector<2x64xf32>
    %184 = arith.mulf %168, %176 : vector<2x64xf32>
    %185 = arith.addf %183, %184 : vector<2x64xf32>
    %186 = math.tanh %185 : vector<2x64xf32>
    %187 = arith.mulf %182, %186 : vector<2x64xf32>
    %c4_68 = arith.constant 4 : index
    %c0_69 = arith.constant 0 : index
    %c0_70 = arith.constant 0 : index
    %188 = vector.load %arg11[%c4_68, %c0_69, %c0_70] : memref<8x2x256xf32, #tpu.memory_space<vmem>>, vector<1x2x256xf32>
    %189 = vector.shape_cast %188 : vector<1x2x256xf32> to vector<2x256xf32>
    %c3_71 = arith.constant 3 : index
    %c0_72 = arith.constant 0 : index
    %c0_73 = arith.constant 0 : index
    %190 = vector.load %arg11[%c3_71, %c0_72, %c0_73] : memref<8x2x256xf32, #tpu.memory_space<vmem>>, vector<1x2x256xf32>
    %191 = vector.shape_cast %190 : vector<1x2x256xf32> to vector<2x256xf32>
    %192 = arith.select %18, %189, %191 : vector<2x256xi1>, vector<2x256xf32>
    %cst_74 = arith.constant dense<0.000000e+00> : vector<2x256xf32>
    %193 = tpu.matmul %187, %60, %cst_74 {dimension_numbers = #tpu.dot_dimension_numbers<[1], [0], [0], [1], [0, 0, 1, 1], [], []>} : vector<2x64xf32>, vector<64x256xf32>, vector<2x256xf32> -> vector<2x256xf32>
    %194 = arith.addf %192, %193 : vector<2x256xf32>
    %195 = vector.extract_strided_slice %194 {offsets = [0, 0], sizes = [2, 64], strides = [1, 1]} : vector<2x256xf32> to vector<2x64xf32>
    %196 = arith.negf %195 : vector<2x64xf32>
    %197 = math.exp %196 : vector<2x64xf32>
    %cst_75 = arith.constant 1.000000e+00 : f32
    %198 = vector.broadcast %cst_75 : f32 to vector<2x64xf32>
    %199 = arith.addf %198, %197 : vector<2x64xf32>
    %200 = arith.divf %198, %199 : vector<2x64xf32>
    %201 = vector.extract_strided_slice %194 {offsets = [0, 64], sizes = [2, 64], strides = [1, 1]} : vector<2x256xf32> to vector<2x64xf32>
    %202 = arith.negf %201 : vector<2x64xf32>
    %203 = math.exp %202 : vector<2x64xf32>
    %cst_76 = arith.constant 1.000000e+00 : f32
    %204 = vector.broadcast %cst_76 : f32 to vector<2x64xf32>
    %205 = arith.addf %204, %203 : vector<2x64xf32>
    %206 = arith.divf %204, %205 : vector<2x64xf32>
    %207 = vector.extract_strided_slice %194 {offsets = [0, 128], sizes = [2, 64], strides = [1, 1]} : vector<2x256xf32> to vector<2x64xf32>
    %208 = math.tanh %207 : vector<2x64xf32>
    %209 = vector.extract_strided_slice %194 {offsets = [0, 192], sizes = [2, 64], strides = [1, 1]} : vector<2x256xf32> to vector<2x64xf32>
    %210 = arith.negf %209 : vector<2x64xf32>
    %211 = math.exp %210 : vector<2x64xf32>
    %cst_77 = arith.constant 1.000000e+00 : f32
    %212 = vector.broadcast %cst_77 : f32 to vector<2x64xf32>
    %213 = arith.addf %212, %211 : vector<2x64xf32>
    %214 = arith.divf %212, %213 : vector<2x64xf32>
    %215 = arith.mulf %206, %185 : vector<2x64xf32>
    %216 = arith.mulf %200, %208 : vector<2x64xf32>
    %217 = arith.addf %215, %216 : vector<2x64xf32>
    %218 = math.tanh %217 : vector<2x64xf32>
    %219 = arith.mulf %214, %218 : vector<2x64xf32>
    %c5_78 = arith.constant 5 : index
    %c0_79 = arith.constant 0 : index
    %c0_80 = arith.constant 0 : index
    %220 = vector.load %arg11[%c5_78, %c0_79, %c0_80] : memref<8x2x256xf32, #tpu.memory_space<vmem>>, vector<1x2x256xf32>
    %221 = vector.shape_cast %220 : vector<1x2x256xf32> to vector<2x256xf32>
    %c2_81 = arith.constant 2 : index
    %c0_82 = arith.constant 0 : index
    %c0_83 = arith.constant 0 : index
    %222 = vector.load %arg11[%c2_81, %c0_82, %c0_83] : memref<8x2x256xf32, #tpu.memory_space<vmem>>, vector<1x2x256xf32>
    %223 = vector.shape_cast %222 : vector<1x2x256xf32> to vector<2x256xf32>
    %224 = arith.select %18, %221, %223 : vector<2x256xi1>, vector<2x256xf32>
    %cst_84 = arith.constant dense<0.000000e+00> : vector<2x256xf32>
    %225 = tpu.matmul %219, %60, %cst_84 {dimension_numbers = #tpu.dot_dimension_numbers<[1], [0], [0], [1], [0, 0, 1, 1], [], []>} : vector<2x64xf32>, vector<64x256xf32>, vector<2x256xf32> -> vector<2x256xf32>
    %226 = arith.addf %224, %225 : vector<2x256xf32>
    %227 = vector.extract_strided_slice %226 {offsets = [0, 0], sizes = [2, 64], strides = [1, 1]} : vector<2x256xf32> to vector<2x64xf32>
    %228 = arith.negf %227 : vector<2x64xf32>
    %229 = math.exp %228 : vector<2x64xf32>
    %cst_85 = arith.constant 1.000000e+00 : f32
    %230 = vector.broadcast %cst_85 : f32 to vector<2x64xf32>
    %231 = arith.addf %230, %229 : vector<2x64xf32>
    %232 = arith.divf %230, %231 : vector<2x64xf32>
    %233 = vector.extract_strided_slice %226 {offsets = [0, 64], sizes = [2, 64], strides = [1, 1]} : vector<2x256xf32> to vector<2x64xf32>
    %234 = arith.negf %233 : vector<2x64xf32>
    %235 = math.exp %234 : vector<2x64xf32>
    %cst_86 = arith.constant 1.000000e+00 : f32
    %236 = vector.broadcast %cst_86 : f32 to vector<2x64xf32>
    %237 = arith.addf %236, %235 : vector<2x64xf32>
    %238 = arith.divf %236, %237 : vector<2x64xf32>
    %239 = vector.extract_strided_slice %226 {offsets = [0, 128], sizes = [2, 64], strides = [1, 1]} : vector<2x256xf32> to vector<2x64xf32>
    %240 = math.tanh %239 : vector<2x64xf32>
    %241 = vector.extract_strided_slice %226 {offsets = [0, 192], sizes = [2, 64], strides = [1, 1]} : vector<2x256xf32> to vector<2x64xf32>
    %242 = arith.negf %241 : vector<2x64xf32>
    %243 = math.exp %242 : vector<2x64xf32>
    %cst_87 = arith.constant 1.000000e+00 : f32
    %244 = vector.broadcast %cst_87 : f32 to vector<2x64xf32>
    %245 = arith.addf %244, %243 : vector<2x64xf32>
    %246 = arith.divf %244, %245 : vector<2x64xf32>
    %247 = arith.mulf %238, %217 : vector<2x64xf32>
    %248 = arith.mulf %232, %240 : vector<2x64xf32>
    %249 = arith.addf %247, %248 : vector<2x64xf32>
    %250 = math.tanh %249 : vector<2x64xf32>
    %251 = arith.mulf %246, %250 : vector<2x64xf32>
    %c6_88 = arith.constant 6 : index
    %c0_89 = arith.constant 0 : index
    %c0_90 = arith.constant 0 : index
    %252 = vector.load %arg11[%c6_88, %c0_89, %c0_90] : memref<8x2x256xf32, #tpu.memory_space<vmem>>, vector<1x2x256xf32>
    %253 = vector.shape_cast %252 : vector<1x2x256xf32> to vector<2x256xf32>
    %c1_91 = arith.constant 1 : index
    %c0_92 = arith.constant 0 : index
    %c0_93 = arith.constant 0 : index
    %254 = vector.load %arg11[%c1_91, %c0_92, %c0_93] : memref<8x2x256xf32, #tpu.memory_space<vmem>>, vector<1x2x256xf32>
    %255 = vector.shape_cast %254 : vector<1x2x256xf32> to vector<2x256xf32>
    %256 = arith.select %18, %253, %255 : vector<2x256xi1>, vector<2x256xf32>
    %cst_94 = arith.constant dense<0.000000e+00> : vector<2x256xf32>
    %257 = tpu.matmul %251, %60, %cst_94 {dimension_numbers = #tpu.dot_dimension_numbers<[1], [0], [0], [1], [0, 0, 1, 1], [], []>} : vector<2x64xf32>, vector<64x256xf32>, vector<2x256xf32> -> vector<2x256xf32>
    %258 = arith.addf %256, %257 : vector<2x256xf32>
    %259 = vector.extract_strided_slice %258 {offsets = [0, 0], sizes = [2, 64], strides = [1, 1]} : vector<2x256xf32> to vector<2x64xf32>
    %260 = arith.negf %259 : vector<2x64xf32>
    %261 = math.exp %260 : vector<2x64xf32>
    %cst_95 = arith.constant 1.000000e+00 : f32
    %262 = vector.broadcast %cst_95 : f32 to vector<2x64xf32>
    %263 = arith.addf %262, %261 : vector<2x64xf32>
    %264 = arith.divf %262, %263 : vector<2x64xf32>
    %265 = vector.extract_strided_slice %258 {offsets = [0, 64], sizes = [2, 64], strides = [1, 1]} : vector<2x256xf32> to vector<2x64xf32>
    %266 = arith.negf %265 : vector<2x64xf32>
    %267 = math.exp %266 : vector<2x64xf32>
    %cst_96 = arith.constant 1.000000e+00 : f32
    %268 = vector.broadcast %cst_96 : f32 to vector<2x64xf32>
    %269 = arith.addf %268, %267 : vector<2x64xf32>
    %270 = arith.divf %268, %269 : vector<2x64xf32>
    %271 = vector.extract_strided_slice %258 {offsets = [0, 128], sizes = [2, 64], strides = [1, 1]} : vector<2x256xf32> to vector<2x64xf32>
    %272 = math.tanh %271 : vector<2x64xf32>
    %273 = vector.extract_strided_slice %258 {offsets = [0, 192], sizes = [2, 64], strides = [1, 1]} : vector<2x256xf32> to vector<2x64xf32>
    %274 = arith.negf %273 : vector<2x64xf32>
    %275 = math.exp %274 : vector<2x64xf32>
    %cst_97 = arith.constant 1.000000e+00 : f32
    %276 = vector.broadcast %cst_97 : f32 to vector<2x64xf32>
    %277 = arith.addf %276, %275 : vector<2x64xf32>
    %278 = arith.divf %276, %277 : vector<2x64xf32>
    %279 = arith.mulf %270, %249 : vector<2x64xf32>
    %280 = arith.mulf %264, %272 : vector<2x64xf32>
    %281 = arith.addf %279, %280 : vector<2x64xf32>
    %282 = math.tanh %281 : vector<2x64xf32>
    %283 = arith.mulf %278, %282 : vector<2x64xf32>
    %c7_98 = arith.constant 7 : index
    %c0_99 = arith.constant 0 : index
    %c0_100 = arith.constant 0 : index
    %284 = vector.load %arg11[%c7_98, %c0_99, %c0_100] : memref<8x2x256xf32, #tpu.memory_space<vmem>>, vector<1x2x256xf32>
    %285 = vector.shape_cast %284 : vector<1x2x256xf32> to vector<2x256xf32>
    %c0_101 = arith.constant 0 : index
    %c0_102 = arith.constant 0 : index
    %c0_103 = arith.constant 0 : index
    %286 = vector.load %arg11[%c0_101, %c0_102, %c0_103] : memref<8x2x256xf32, #tpu.memory_space<vmem>>, vector<1x2x256xf32>
    %287 = vector.shape_cast %286 : vector<1x2x256xf32> to vector<2x256xf32>
    %288 = arith.select %18, %285, %287 : vector<2x256xi1>, vector<2x256xf32>
    %cst_104 = arith.constant dense<0.000000e+00> : vector<2x256xf32>
    %289 = tpu.matmul %283, %60, %cst_104 {dimension_numbers = #tpu.dot_dimension_numbers<[1], [0], [0], [1], [0, 0, 1, 1], [], []>} : vector<2x64xf32>, vector<64x256xf32>, vector<2x256xf32> -> vector<2x256xf32>
    %290 = arith.addf %288, %289 : vector<2x256xf32>
    %291 = vector.extract_strided_slice %290 {offsets = [0, 0], sizes = [2, 64], strides = [1, 1]} : vector<2x256xf32> to vector<2x64xf32>
    %292 = arith.negf %291 : vector<2x64xf32>
    %293 = math.exp %292 : vector<2x64xf32>
    %cst_105 = arith.constant 1.000000e+00 : f32
    %294 = vector.broadcast %cst_105 : f32 to vector<2x64xf32>
    %295 = arith.addf %294, %293 : vector<2x64xf32>
    %296 = arith.divf %294, %295 : vector<2x64xf32>
    %297 = vector.extract_strided_slice %290 {offsets = [0, 64], sizes = [2, 64], strides = [1, 1]} : vector<2x256xf32> to vector<2x64xf32>
    %298 = arith.negf %297 : vector<2x64xf32>
    %299 = math.exp %298 : vector<2x64xf32>
    %cst_106 = arith.constant 1.000000e+00 : f32
    %300 = vector.broadcast %cst_106 : f32 to vector<2x64xf32>
    %301 = arith.addf %300, %299 : vector<2x64xf32>
    %302 = arith.divf %300, %301 : vector<2x64xf32>
    %303 = vector.extract_strided_slice %290 {offsets = [0, 128], sizes = [2, 64], strides = [1, 1]} : vector<2x256xf32> to vector<2x64xf32>
    %304 = math.tanh %303 : vector<2x64xf32>
    %305 = vector.extract_strided_slice %290 {offsets = [0, 192], sizes = [2, 64], strides = [1, 1]} : vector<2x256xf32> to vector<2x64xf32>
    %306 = arith.negf %305 : vector<2x64xf32>
    %307 = math.exp %306 : vector<2x64xf32>
    %cst_107 = arith.constant 1.000000e+00 : f32
    %308 = vector.broadcast %cst_107 : f32 to vector<2x64xf32>
    %309 = arith.addf %308, %307 : vector<2x64xf32>
    %310 = arith.divf %308, %309 : vector<2x64xf32>
    %311 = arith.mulf %302, %281 : vector<2x64xf32>
    %312 = arith.mulf %296, %304 : vector<2x64xf32>
    %313 = arith.addf %311, %312 : vector<2x64xf32>
    %314 = math.tanh %313 : vector<2x64xf32>
    %315 = arith.mulf %310, %314 : vector<2x64xf32>
    %316 = arith.select %21, %91, %315 : vector<2x64xi1>, vector<2x64xf32>
    %317 = arith.select %21, %123, %283 : vector<2x64xi1>, vector<2x64xf32>
    %318 = arith.select %21, %155, %251 : vector<2x64xi1>, vector<2x64xf32>
    %319 = arith.select %21, %187, %219 : vector<2x64xi1>, vector<2x64xf32>
    %320 = arith.select %21, %219, %187 : vector<2x64xi1>, vector<2x64xf32>
    %321 = arith.select %21, %251, %155 : vector<2x64xi1>, vector<2x64xf32>
    %322 = arith.select %21, %283, %123 : vector<2x64xi1>, vector<2x64xf32>
    %323 = arith.select %21, %315, %91 : vector<2x64xi1>, vector<2x64xf32>
    %324 = tpu.concatenate %316, %317, %318, %319, %320, %321, %322, %323 in 0 : vector<2x64xf32>, vector<2x64xf32>, vector<2x64xf32>, vector<2x64xf32>, vector<2x64xf32>, vector<2x64xf32>, vector<2x64xf32>, vector<2x64xf32> -> vector<16x64xf32>
    %c0_108 = arith.constant 0 : index
    %c0_109 = arith.constant 0 : index
    %325 = vector.load %arg5[%c0_108, %c0_109] : memref<64x256xf32, #tpu.memory_space<vmem>>, vector<64x256xf32>
    %cst_110 = arith.constant dense<0.000000e+00> : vector<16x256xf32>
    %326 = tpu.matmul %324, %325, %cst_110 {dimension_numbers = #tpu.dot_dimension_numbers<[1], [0], [0], [1], [0, 0, 1, 1], [], []>} : vector<16x64xf32>, vector<64x256xf32>, vector<16x256xf32> -> vector<16x256xf32>
    %c0_111 = arith.constant 0 : index
    %c0_112 = arith.constant 0 : index
    %327 = vector.load %arg6[%c0_111, %c0_112] : memref<1x256xf32, #tpu.memory_space<vmem>>, vector<1x256xf32>
    %328 = vector.broadcast %327 : vector<1x256xf32> to vector<16x256xf32>
    %329 = arith.addf %326, %328 : vector<16x256xf32>
    %330 = vector.extract_strided_slice %329 {offsets = [0, 0], sizes = [2, 256], strides = [1, 1]} : vector<16x256xf32> to vector<2x256xf32>
    %c0_113 = arith.constant 0 : index
    %c0_114 = arith.constant 0 : index
    %c0_115 = arith.constant 0 : index
    %331 = vector.load %arg11[%c0_113, %c0_114, %c0_115] : memref<8x2x256xf32, #tpu.memory_space<vmem>>, vector<1x2x256xf32>
    %332 = vector.shape_cast %331 : vector<1x2x256xf32> to vector<2x256xf32>
    %333 = vector.shape_cast %330 : vector<2x256xf32> to vector<1x2x256xf32>
    tpu.vector_store %arg11[%c0_113, %c0_114, %c0_115], %333 {strides = array<i32>} : memref<8x2x256xf32, #tpu.memory_space<vmem>>, vector<1x2x256xf32>,
    %334 = vector.extract_strided_slice %329 {offsets = [2, 0], sizes = [2, 256], strides = [1, 1]} : vector<16x256xf32> to vector<2x256xf32>
    %c1_116 = arith.constant 1 : index
    %c0_117 = arith.constant 0 : index
    %c0_118 = arith.constant 0 : index
    %335 = vector.load %arg11[%c1_116, %c0_117, %c0_118] : memref<8x2x256xf32, #tpu.memory_space<vmem>>, vector<1x2x256xf32>
    %336 = vector.shape_cast %335 : vector<1x2x256xf32> to vector<2x256xf32>
    %337 = vector.shape_cast %334 : vector<2x256xf32> to vector<1x2x256xf32>
    tpu.vector_store %arg11[%c1_116, %c0_117, %c0_118], %337 {strides = array<i32>} : memref<8x2x256xf32, #tpu.memory_space<vmem>>, vector<1x2x256xf32>,
    %338 = vector.extract_strided_slice %329 {offsets = [4, 0], sizes = [2, 256], strides = [1, 1]} : vector<16x256xf32> to vector<2x256xf32>
    %c2_119 = arith.constant 2 : index
    %c0_120 = arith.constant 0 : index
    %c0_121 = arith.constant 0 : index
    %339 = vector.load %arg11[%c2_119, %c0_120, %c0_121] : memref<8x2x256xf32, #tpu.memory_space<vmem>>, vector<1x2x256xf32>
    %340 = vector.shape_cast %339 : vector<1x2x256xf32> to vector<2x256xf32>
    %341 = vector.shape_cast %338 : vector<2x256xf32> to vector<1x2x256xf32>
    tpu.vector_store %arg11[%c2_119, %c0_120, %c0_121], %341 {strides = array<i32>} : memref<8x2x256xf32, #tpu.memory_space<vmem>>, vector<1x2x256xf32>,
    %342 = vector.extract_strided_slice %329 {offsets = [6, 0], sizes = [2, 256], strides = [1, 1]} : vector<16x256xf32> to vector<2x256xf32>
    %c3_122 = arith.constant 3 : index
    %c0_123 = arith.constant 0 : index
    %c0_124 = arith.constant 0 : index
    %343 = vector.load %arg11[%c3_122, %c0_123, %c0_124] : memref<8x2x256xf32, #tpu.memory_space<vmem>>, vector<1x2x256xf32>
    %344 = vector.shape_cast %343 : vector<1x2x256xf32> to vector<2x256xf32>
    %345 = vector.shape_cast %342 : vector<2x256xf32> to vector<1x2x256xf32>
    tpu.vector_store %arg11[%c3_122, %c0_123, %c0_124], %345 {strides = array<i32>} : memref<8x2x256xf32, #tpu.memory_space<vmem>>, vector<1x2x256xf32>,
    %346 = vector.extract_strided_slice %329 {offsets = [8, 0], sizes = [2, 256], strides = [1, 1]} : vector<16x256xf32> to vector<2x256xf32>
    %c4_125 = arith.constant 4 : index
    %c0_126 = arith.constant 0 : index
    %c0_127 = arith.constant 0 : index
    %347 = vector.load %arg11[%c4_125, %c0_126, %c0_127] : memref<8x2x256xf32, #tpu.memory_space<vmem>>, vector<1x2x256xf32>
    %348 = vector.shape_cast %347 : vector<1x2x256xf32> to vector<2x256xf32>
    %349 = vector.shape_cast %346 : vector<2x256xf32> to vector<1x2x256xf32>
    tpu.vector_store %arg11[%c4_125, %c0_126, %c0_127], %349 {strides = array<i32>} : memref<8x2x256xf32, #tpu.memory_space<vmem>>, vector<1x2x256xf32>,
    %350 = vector.extract_strided_slice %329 {offsets = [10, 0], sizes = [2, 256], strides = [1, 1]} : vector<16x256xf32> to vector<2x256xf32>
    %c5_128 = arith.constant 5 : index
    %c0_129 = arith.constant 0 : index
    %c0_130 = arith.constant 0 : index
    %351 = vector.load %arg11[%c5_128, %c0_129, %c0_130] : memref<8x2x256xf32, #tpu.memory_space<vmem>>, vector<1x2x256xf32>
    %352 = vector.shape_cast %351 : vector<1x2x256xf32> to vector<2x256xf32>
    %353 = vector.shape_cast %350 : vector<2x256xf32> to vector<1x2x256xf32>
    tpu.vector_store %arg11[%c5_128, %c0_129, %c0_130], %353 {strides = array<i32>} : memref<8x2x256xf32, #tpu.memory_space<vmem>>, vector<1x2x256xf32>,
    %354 = vector.extract_strided_slice %329 {offsets = [12, 0], sizes = [2, 256], strides = [1, 1]} : vector<16x256xf32> to vector<2x256xf32>
    %c6_131 = arith.constant 6 : index
    %c0_132 = arith.constant 0 : index
    %c0_133 = arith.constant 0 : index
    %355 = vector.load %arg11[%c6_131, %c0_132, %c0_133] : memref<8x2x256xf32, #tpu.memory_space<vmem>>, vector<1x2x256xf32>
    %356 = vector.shape_cast %355 : vector<1x2x256xf32> to vector<2x256xf32>
    %357 = vector.shape_cast %354 : vector<2x256xf32> to vector<1x2x256xf32>
    tpu.vector_store %arg11[%c6_131, %c0_132, %c0_133], %357 {strides = array<i32>} : memref<8x2x256xf32, #tpu.memory_space<vmem>>, vector<1x2x256xf32>,
    %358 = vector.extract_strided_slice %329 {offsets = [14, 0], sizes = [2, 256], strides = [1, 1]} : vector<16x256xf32> to vector<2x256xf32>
    %c7_134 = arith.constant 7 : index
    %c0_135 = arith.constant 0 : index
    %c0_136 = arith.constant 0 : index
    %359 = vector.load %arg11[%c7_134, %c0_135, %c0_136] : memref<8x2x256xf32, #tpu.memory_space<vmem>>, vector<1x2x256xf32>
    %360 = vector.shape_cast %359 : vector<1x2x256xf32> to vector<2x256xf32>
    %361 = vector.shape_cast %358 : vector<2x256xf32> to vector<1x2x256xf32>
    tpu.vector_store %arg11[%c7_134, %c0_135, %c0_136], %361 {strides = array<i32>} : memref<8x2x256xf32, #tpu.memory_space<vmem>>, vector<1x2x256xf32>,
    %c0_137 = arith.constant 0 : index
    %c0_138 = arith.constant 0 : index
    %362 = vector.load %arg7[%c0_137, %c0_138] : memref<64x256xf32, #tpu.memory_space<vmem>>, vector<64x256xf32>
    %cst_139 = arith.constant 0.000000e+00 : f32
    %363 = vector.broadcast %cst_139 : f32 to vector<2x64xf32>
    %c0_140 = arith.constant 0 : index
    %c0_141 = arith.constant 0 : index
    %c0_142 = arith.constant 0 : index
    %364 = vector.load %arg11[%c0_140, %c0_141, %c0_142] : memref<8x2x256xf32, #tpu.memory_space<vmem>>, vector<1x2x256xf32>
    %365 = vector.shape_cast %364 : vector<1x2x256xf32> to vector<2x256xf32>
    %c7_143 = arith.constant 7 : index
    %c0_144 = arith.constant 0 : index
    %c0_145 = arith.constant 0 : index
    %366 = vector.load %arg11[%c7_143, %c0_144, %c0_145] : memref<8x2x256xf32, #tpu.memory_space<vmem>>, vector<1x2x256xf32>
    %367 = vector.shape_cast %366 : vector<1x2x256xf32> to vector<2x256xf32>
    %368 = arith.select %18, %365, %367 : vector<2x256xi1>, vector<2x256xf32>
    %369 = vector.extract_strided_slice %368 {offsets = [0, 0], sizes = [2, 64], strides = [1, 1]} : vector<2x256xf32> to vector<2x64xf32>
    %370 = arith.negf %369 : vector<2x64xf32>
    %371 = math.exp %370 : vector<2x64xf32>
    %cst_146 = arith.constant 1.000000e+00 : f32
    %372 = vector.broadcast %cst_146 : f32 to vector<2x64xf32>
    %373 = arith.addf %372, %371 : vector<2x64xf32>
    %374 = arith.divf %372, %373 : vector<2x64xf32>
    %375 = vector.extract_strided_slice %368 {offsets = [0, 64], sizes = [2, 64], strides = [1, 1]} : vector<2x256xf32> to vector<2x64xf32>
    %376 = arith.negf %375 : vector<2x64xf32>
    %377 = math.exp %376 : vector<2x64xf32>
    %cst_147 = arith.constant 1.000000e+00 : f32
    %378 = vector.broadcast %cst_147 : f32 to vector<2x64xf32>
    %379 = arith.addf %378, %377 : vector<2x64xf32>
    %380 = arith.divf %378, %379 : vector<2x64xf32>
    %381 = vector.extract_strided_slice %368 {offsets = [0, 128], sizes = [2, 64], strides = [1, 1]} : vector<2x256xf32> to vector<2x64xf32>
    %382 = math.tanh %381 : vector<2x64xf32>
    %383 = vector.extract_strided_slice %368 {offsets = [0, 192], sizes = [2, 64], strides = [1, 1]} : vector<2x256xf32> to vector<2x64xf32>
    %384 = arith.negf %383 : vector<2x64xf32>
    %385 = math.exp %384 : vector<2x64xf32>
    %cst_148 = arith.constant 1.000000e+00 : f32
    %386 = vector.broadcast %cst_148 : f32 to vector<2x64xf32>
    %387 = arith.addf %386, %385 : vector<2x64xf32>
    %388 = arith.divf %386, %387 : vector<2x64xf32>
    %389 = arith.mulf %380, %363 : vector<2x64xf32>
    %390 = arith.mulf %374, %382 : vector<2x64xf32>
    %391 = arith.addf %389, %390 : vector<2x64xf32>
    %392 = math.tanh %391 : vector<2x64xf32>
    %393 = arith.mulf %388, %392 : vector<2x64xf32>
    %c1_149 = arith.constant 1 : index
    %c0_150 = arith.constant 0 : index
    %c0_151 = arith.constant 0 : index
    %394 = vector.load %arg11[%c1_149, %c0_150, %c0_151] : memref<8x2x256xf32, #tpu.memory_space<vmem>>, vector<1x2x256xf32>
    %395 = vector.shape_cast %394 : vector<1x2x256xf32> to vector<2x256xf32>
    %c6_152 = arith.constant 6 : index
    %c0_153 = arith.constant 0 : index
    %c0_154 = arith.constant 0 : index
    %396 = vector.load %arg11[%c6_152, %c0_153, %c0_154] : memref<8x2x256xf32, #tpu.memory_space<vmem>>, vector<1x2x256xf32>
    %397 = vector.shape_cast %396 : vector<1x2x256xf32> to vector<2x256xf32>
    %398 = arith.select %18, %395, %397 : vector<2x256xi1>, vector<2x256xf32>
    %cst_155 = arith.constant dense<0.000000e+00> : vector<2x256xf32>
    %399 = tpu.matmul %393, %362, %cst_155 {dimension_numbers = #tpu.dot_dimension_numbers<[1], [0], [0], [1], [0, 0, 1, 1], [], []>} : vector<2x64xf32>, vector<64x256xf32>, vector<2x256xf32> -> vector<2x256xf32>
    %400 = arith.addf %398, %399 : vector<2x256xf32>
    %401 = vector.extract_strided_slice %400 {offsets = [0, 0], sizes = [2, 64], strides = [1, 1]} : vector<2x256xf32> to vector<2x64xf32>
    %402 = arith.negf %401 : vector<2x64xf32>
    %403 = math.exp %402 : vector<2x64xf32>
    %cst_156 = arith.constant 1.000000e+00 : f32
    %404 = vector.broadcast %cst_156 : f32 to vector<2x64xf32>
    %405 = arith.addf %404, %403 : vector<2x64xf32>
    %406 = arith.divf %404, %405 : vector<2x64xf32>
    %407 = vector.extract_strided_slice %400 {offsets = [0, 64], sizes = [2, 64], strides = [1, 1]} : vector<2x256xf32> to vector<2x64xf32>
    %408 = arith.negf %407 : vector<2x64xf32>
    %409 = math.exp %408 : vector<2x64xf32>
    %cst_157 = arith.constant 1.000000e+00 : f32
    %410 = vector.broadcast %cst_157 : f32 to vector<2x64xf32>
    %411 = arith.addf %410, %409 : vector<2x64xf32>
    %412 = arith.divf %410, %411 : vector<2x64xf32>
    %413 = vector.extract_strided_slice %400 {offsets = [0, 128], sizes = [2, 64], strides = [1, 1]} : vector<2x256xf32> to vector<2x64xf32>
    %414 = math.tanh %413 : vector<2x64xf32>
    %415 = vector.extract_strided_slice %400 {offsets = [0, 192], sizes = [2, 64], strides = [1, 1]} : vector<2x256xf32> to vector<2x64xf32>
    %416 = arith.negf %415 : vector<2x64xf32>
    %417 = math.exp %416 : vector<2x64xf32>
    %cst_158 = arith.constant 1.000000e+00 : f32
    %418 = vector.broadcast %cst_158 : f32 to vector<2x64xf32>
    %419 = arith.addf %418, %417 : vector<2x64xf32>
    %420 = arith.divf %418, %419 : vector<2x64xf32>
    %421 = arith.mulf %412, %391 : vector<2x64xf32>
    %422 = arith.mulf %406, %414 : vector<2x64xf32>
    %423 = arith.addf %421, %422 : vector<2x64xf32>
    %424 = math.tanh %423 : vector<2x64xf32>
    %425 = arith.mulf %420, %424 : vector<2x64xf32>
    %c2_159 = arith.constant 2 : index
    %c0_160 = arith.constant 0 : index
    %c0_161 = arith.constant 0 : index
    %426 = vector.load %arg11[%c2_159, %c0_160, %c0_161] : memref<8x2x256xf32, #tpu.memory_space<vmem>>, vector<1x2x256xf32>
    %427 = vector.shape_cast %426 : vector<1x2x256xf32> to vector<2x256xf32>
    %c5_162 = arith.constant 5 : index
    %c0_163 = arith.constant 0 : index
    %c0_164 = arith.constant 0 : index
    %428 = vector.load %arg11[%c5_162, %c0_163, %c0_164] : memref<8x2x256xf32, #tpu.memory_space<vmem>>, vector<1x2x256xf32>
    %429 = vector.shape_cast %428 : vector<1x2x256xf32> to vector<2x256xf32>
    %430 = arith.select %18, %427, %429 : vector<2x256xi1>, vector<2x256xf32>
    %cst_165 = arith.constant dense<0.000000e+00> : vector<2x256xf32>
    %431 = tpu.matmul %425, %362, %cst_165 {dimension_numbers = #tpu.dot_dimension_numbers<[1], [0], [0], [1], [0, 0, 1, 1], [], []>} : vector<2x64xf32>, vector<64x256xf32>, vector<2x256xf32> -> vector<2x256xf32>
    %432 = arith.addf %430, %431 : vector<2x256xf32>
    %433 = vector.extract_strided_slice %432 {offsets = [0, 0], sizes = [2, 64], strides = [1, 1]} : vector<2x256xf32> to vector<2x64xf32>
    %434 = arith.negf %433 : vector<2x64xf32>
    %435 = math.exp %434 : vector<2x64xf32>
    %cst_166 = arith.constant 1.000000e+00 : f32
    %436 = vector.broadcast %cst_166 : f32 to vector<2x64xf32>
    %437 = arith.addf %436, %435 : vector<2x64xf32>
    %438 = arith.divf %436, %437 : vector<2x64xf32>
    %439 = vector.extract_strided_slice %432 {offsets = [0, 64], sizes = [2, 64], strides = [1, 1]} : vector<2x256xf32> to vector<2x64xf32>
    %440 = arith.negf %439 : vector<2x64xf32>
    %441 = math.exp %440 : vector<2x64xf32>
    %cst_167 = arith.constant 1.000000e+00 : f32
    %442 = vector.broadcast %cst_167 : f32 to vector<2x64xf32>
    %443 = arith.addf %442, %441 : vector<2x64xf32>
    %444 = arith.divf %442, %443 : vector<2x64xf32>
    %445 = vector.extract_strided_slice %432 {offsets = [0, 128], sizes = [2, 64], strides = [1, 1]} : vector<2x256xf32> to vector<2x64xf32>
    %446 = math.tanh %445 : vector<2x64xf32>
    %447 = vector.extract_strided_slice %432 {offsets = [0, 192], sizes = [2, 64], strides = [1, 1]} : vector<2x256xf32> to vector<2x64xf32>
    %448 = arith.negf %447 : vector<2x64xf32>
    %449 = math.exp %448 : vector<2x64xf32>
    %cst_168 = arith.constant 1.000000e+00 : f32
    %450 = vector.broadcast %cst_168 : f32 to vector<2x64xf32>
    %451 = arith.addf %450, %449 : vector<2x64xf32>
    %452 = arith.divf %450, %451 : vector<2x64xf32>
    %453 = arith.mulf %444, %423 : vector<2x64xf32>
    %454 = arith.mulf %438, %446 : vector<2x64xf32>
    %455 = arith.addf %453, %454 : vector<2x64xf32>
    %456 = math.tanh %455 : vector<2x64xf32>
    %457 = arith.mulf %452, %456 : vector<2x64xf32>
    %c3_169 = arith.constant 3 : index
    %c0_170 = arith.constant 0 : index
    %c0_171 = arith.constant 0 : index
    %458 = vector.load %arg11[%c3_169, %c0_170, %c0_171] : memref<8x2x256xf32, #tpu.memory_space<vmem>>, vector<1x2x256xf32>
    %459 = vector.shape_cast %458 : vector<1x2x256xf32> to vector<2x256xf32>
    %c4_172 = arith.constant 4 : index
    %c0_173 = arith.constant 0 : index
    %c0_174 = arith.constant 0 : index
    %460 = vector.load %arg11[%c4_172, %c0_173, %c0_174] : memref<8x2x256xf32, #tpu.memory_space<vmem>>, vector<1x2x256xf32>
    %461 = vector.shape_cast %460 : vector<1x2x256xf32> to vector<2x256xf32>
    %462 = arith.select %18, %459, %461 : vector<2x256xi1>, vector<2x256xf32>
    %cst_175 = arith.constant dense<0.000000e+00> : vector<2x256xf32>
    %463 = tpu.matmul %457, %362, %cst_175 {dimension_numbers = #tpu.dot_dimension_numbers<[1], [0], [0], [1], [0, 0, 1, 1], [], []>} : vector<2x64xf32>, vector<64x256xf32>, vector<2x256xf32> -> vector<2x256xf32>
    %464 = arith.addf %462, %463 : vector<2x256xf32>
    %465 = vector.extract_strided_slice %464 {offsets = [0, 0], sizes = [2, 64], strides = [1, 1]} : vector<2x256xf32> to vector<2x64xf32>
    %466 = arith.negf %465 : vector<2x64xf32>
    %467 = math.exp %466 : vector<2x64xf32>
    %cst_176 = arith.constant 1.000000e+00 : f32
    %468 = vector.broadcast %cst_176 : f32 to vector<2x64xf32>
    %469 = arith.addf %468, %467 : vector<2x64xf32>
    %470 = arith.divf %468, %469 : vector<2x64xf32>
    %471 = vector.extract_strided_slice %464 {offsets = [0, 64], sizes = [2, 64], strides = [1, 1]} : vector<2x256xf32> to vector<2x64xf32>
    %472 = arith.negf %471 : vector<2x64xf32>
    %473 = math.exp %472 : vector<2x64xf32>
    %cst_177 = arith.constant 1.000000e+00 : f32
    %474 = vector.broadcast %cst_177 : f32 to vector<2x64xf32>
    %475 = arith.addf %474, %473 : vector<2x64xf32>
    %476 = arith.divf %474, %475 : vector<2x64xf32>
    %477 = vector.extract_strided_slice %464 {offsets = [0, 128], sizes = [2, 64], strides = [1, 1]} : vector<2x256xf32> to vector<2x64xf32>
    %478 = math.tanh %477 : vector<2x64xf32>
    %479 = vector.extract_strided_slice %464 {offsets = [0, 192], sizes = [2, 64], strides = [1, 1]} : vector<2x256xf32> to vector<2x64xf32>
    %480 = arith.negf %479 : vector<2x64xf32>
    %481 = math.exp %480 : vector<2x64xf32>
    %cst_178 = arith.constant 1.000000e+00 : f32
    %482 = vector.broadcast %cst_178 : f32 to vector<2x64xf32>
    %483 = arith.addf %482, %481 : vector<2x64xf32>
    %484 = arith.divf %482, %483 : vector<2x64xf32>
    %485 = arith.mulf %476, %455 : vector<2x64xf32>
    %486 = arith.mulf %470, %478 : vector<2x64xf32>
    %487 = arith.addf %485, %486 : vector<2x64xf32>
    %488 = math.tanh %487 : vector<2x64xf32>
    %489 = arith.mulf %484, %488 : vector<2x64xf32>
    %c4_179 = arith.constant 4 : index
    %c0_180 = arith.constant 0 : index
    %c0_181 = arith.constant 0 : index
    %490 = vector.load %arg11[%c4_179, %c0_180, %c0_181] : memref<8x2x256xf32, #tpu.memory_space<vmem>>, vector<1x2x256xf32>
    %491 = vector.shape_cast %490 : vector<1x2x256xf32> to vector<2x256xf32>
    %c3_182 = arith.constant 3 : index
    %c0_183 = arith.constant 0 : index
    %c0_184 = arith.constant 0 : index
    %492 = vector.load %arg11[%c3_182, %c0_183, %c0_184] : memref<8x2x256xf32, #tpu.memory_space<vmem>>, vector<1x2x256xf32>
    %493 = vector.shape_cast %492 : vector<1x2x256xf32> to vector<2x256xf32>
    %494 = arith.select %18, %491, %493 : vector<2x256xi1>, vector<2x256xf32>
    %cst_185 = arith.constant dense<0.000000e+00> : vector<2x256xf32>
    %495 = tpu.matmul %489, %362, %cst_185 {dimension_numbers = #tpu.dot_dimension_numbers<[1], [0], [0], [1], [0, 0, 1, 1], [], []>} : vector<2x64xf32>, vector<64x256xf32>, vector<2x256xf32> -> vector<2x256xf32>
    %496 = arith.addf %494, %495 : vector<2x256xf32>
    %497 = vector.extract_strided_slice %496 {offsets = [0, 0], sizes = [2, 64], strides = [1, 1]} : vector<2x256xf32> to vector<2x64xf32>
    %498 = arith.negf %497 : vector<2x64xf32>
    %499 = math.exp %498 : vector<2x64xf32>
    %cst_186 = arith.constant 1.000000e+00 : f32
    %500 = vector.broadcast %cst_186 : f32 to vector<2x64xf32>
    %501 = arith.addf %500, %499 : vector<2x64xf32>
    %502 = arith.divf %500, %501 : vector<2x64xf32>
    %503 = vector.extract_strided_slice %496 {offsets = [0, 64], sizes = [2, 64], strides = [1, 1]} : vector<2x256xf32> to vector<2x64xf32>
    %504 = arith.negf %503 : vector<2x64xf32>
    %505 = math.exp %504 : vector<2x64xf32>
    %cst_187 = arith.constant 1.000000e+00 : f32
    %506 = vector.broadcast %cst_187 : f32 to vector<2x64xf32>
    %507 = arith.addf %506, %505 : vector<2x64xf32>
    %508 = arith.divf %506, %507 : vector<2x64xf32>
    %509 = vector.extract_strided_slice %496 {offsets = [0, 128], sizes = [2, 64], strides = [1, 1]} : vector<2x256xf32> to vector<2x64xf32>
    %510 = math.tanh %509 : vector<2x64xf32>
    %511 = vector.extract_strided_slice %496 {offsets = [0, 192], sizes = [2, 64], strides = [1, 1]} : vector<2x256xf32> to vector<2x64xf32>
    %512 = arith.negf %511 : vector<2x64xf32>
    %513 = math.exp %512 : vector<2x64xf32>
    %cst_188 = arith.constant 1.000000e+00 : f32
    %514 = vector.broadcast %cst_188 : f32 to vector<2x64xf32>
    %515 = arith.addf %514, %513 : vector<2x64xf32>
    %516 = arith.divf %514, %515 : vector<2x64xf32>
    %517 = arith.mulf %508, %487 : vector<2x64xf32>
    %518 = arith.mulf %502, %510 : vector<2x64xf32>
    %519 = arith.addf %517, %518 : vector<2x64xf32>
    %520 = math.tanh %519 : vector<2x64xf32>
    %521 = arith.mulf %516, %520 : vector<2x64xf32>
    %c5_189 = arith.constant 5 : index
    %c0_190 = arith.constant 0 : index
    %c0_191 = arith.constant 0 : index
    %522 = vector.load %arg11[%c5_189, %c0_190, %c0_191] : memref<8x2x256xf32, #tpu.memory_space<vmem>>, vector<1x2x256xf32>
    %523 = vector.shape_cast %522 : vector<1x2x256xf32> to vector<2x256xf32>
    %c2_192 = arith.constant 2 : index
    %c0_193 = arith.constant 0 : index
    %c0_194 = arith.constant 0 : index
    %524 = vector.load %arg11[%c2_192, %c0_193, %c0_194] : memref<8x2x256xf32, #tpu.memory_space<vmem>>, vector<1x2x256xf32>
    %525 = vector.shape_cast %524 : vector<1x2x256xf32> to vector<2x256xf32>
    %526 = arith.select %18, %523, %525 : vector<2x256xi1>, vector<2x256xf32>
    %cst_195 = arith.constant dense<0.000000e+00> : vector<2x256xf32>
    %527 = tpu.matmul %521, %362, %cst_195 {dimension_numbers = #tpu.dot_dimension_numbers<[1], [0], [0], [1], [0, 0, 1, 1], [], []>} : vector<2x64xf32>, vector<64x256xf32>, vector<2x256xf32> -> vector<2x256xf32>
    %528 = arith.addf %526, %527 : vector<2x256xf32>
    %529 = vector.extract_strided_slice %528 {offsets = [0, 0], sizes = [2, 64], strides = [1, 1]} : vector<2x256xf32> to vector<2x64xf32>
    %530 = arith.negf %529 : vector<2x64xf32>
    %531 = math.exp %530 : vector<2x64xf32>
    %cst_196 = arith.constant 1.000000e+00 : f32
    %532 = vector.broadcast %cst_196 : f32 to vector<2x64xf32>
    %533 = arith.addf %532, %531 : vector<2x64xf32>
    %534 = arith.divf %532, %533 : vector<2x64xf32>
    %535 = vector.extract_strided_slice %528 {offsets = [0, 64], sizes = [2, 64], strides = [1, 1]} : vector<2x256xf32> to vector<2x64xf32>
    %536 = arith.negf %535 : vector<2x64xf32>
    %537 = math.exp %536 : vector<2x64xf32>
    %cst_197 = arith.constant 1.000000e+00 : f32
    %538 = vector.broadcast %cst_197 : f32 to vector<2x64xf32>
    %539 = arith.addf %538, %537 : vector<2x64xf32>
    %540 = arith.divf %538, %539 : vector<2x64xf32>
    %541 = vector.extract_strided_slice %528 {offsets = [0, 128], sizes = [2, 64], strides = [1, 1]} : vector<2x256xf32> to vector<2x64xf32>
    %542 = math.tanh %541 : vector<2x64xf32>
    %543 = vector.extract_strided_slice %528 {offsets = [0, 192], sizes = [2, 64], strides = [1, 1]} : vector<2x256xf32> to vector<2x64xf32>
    %544 = arith.negf %543 : vector<2x64xf32>
    %545 = math.exp %544 : vector<2x64xf32>
    %cst_198 = arith.constant 1.000000e+00 : f32
    %546 = vector.broadcast %cst_198 : f32 to vector<2x64xf32>
    %547 = arith.addf %546, %545 : vector<2x64xf32>
    %548 = arith.divf %546, %547 : vector<2x64xf32>
    %549 = arith.mulf %540, %519 : vector<2x64xf32>
    %550 = arith.mulf %534, %542 : vector<2x64xf32>
    %551 = arith.addf %549, %550 : vector<2x64xf32>
    %552 = math.tanh %551 : vector<2x64xf32>
    %553 = arith.mulf %548, %552 : vector<2x64xf32>
    %c6_199 = arith.constant 6 : index
    %c0_200 = arith.constant 0 : index
    %c0_201 = arith.constant 0 : index
    %554 = vector.load %arg11[%c6_199, %c0_200, %c0_201] : memref<8x2x256xf32, #tpu.memory_space<vmem>>, vector<1x2x256xf32>
    %555 = vector.shape_cast %554 : vector<1x2x256xf32> to vector<2x256xf32>
    %c1_202 = arith.constant 1 : index
    %c0_203 = arith.constant 0 : index
    %c0_204 = arith.constant 0 : index
    %556 = vector.load %arg11[%c1_202, %c0_203, %c0_204] : memref<8x2x256xf32, #tpu.memory_space<vmem>>, vector<1x2x256xf32>
    %557 = vector.shape_cast %556 : vector<1x2x256xf32> to vector<2x256xf32>
    %558 = arith.select %18, %555, %557 : vector<2x256xi1>, vector<2x256xf32>
    %cst_205 = arith.constant dense<0.000000e+00> : vector<2x256xf32>
    %559 = tpu.matmul %553, %362, %cst_205 {dimension_numbers = #tpu.dot_dimension_numbers<[1], [0], [0], [1], [0, 0, 1, 1], [], []>} : vector<2x64xf32>, vector<64x256xf32>, vector<2x256xf32> -> vector<2x256xf32>
    %560 = arith.addf %558, %559 : vector<2x256xf32>
    %561 = vector.extract_strided_slice %560 {offsets = [0, 0], sizes = [2, 64], strides = [1, 1]} : vector<2x256xf32> to vector<2x64xf32>
    %562 = arith.negf %561 : vector<2x64xf32>
    %563 = math.exp %562 : vector<2x64xf32>
    %cst_206 = arith.constant 1.000000e+00 : f32
    %564 = vector.broadcast %cst_206 : f32 to vector<2x64xf32>
    %565 = arith.addf %564, %563 : vector<2x64xf32>
    %566 = arith.divf %564, %565 : vector<2x64xf32>
    %567 = vector.extract_strided_slice %560 {offsets = [0, 64], sizes = [2, 64], strides = [1, 1]} : vector<2x256xf32> to vector<2x64xf32>
    %568 = arith.negf %567 : vector<2x64xf32>
    %569 = math.exp %568 : vector<2x64xf32>
    %cst_207 = arith.constant 1.000000e+00 : f32
    %570 = vector.broadcast %cst_207 : f32 to vector<2x64xf32>
    %571 = arith.addf %570, %569 : vector<2x64xf32>
    %572 = arith.divf %570, %571 : vector<2x64xf32>
    %573 = vector.extract_strided_slice %560 {offsets = [0, 128], sizes = [2, 64], strides = [1, 1]} : vector<2x256xf32> to vector<2x64xf32>
    %574 = math.tanh %573 : vector<2x64xf32>
    %575 = vector.extract_strided_slice %560 {offsets = [0, 192], sizes = [2, 64], strides = [1, 1]} : vector<2x256xf32> to vector<2x64xf32>
    %576 = arith.negf %575 : vector<2x64xf32>
    %577 = math.exp %576 : vector<2x64xf32>
    %cst_208 = arith.constant 1.000000e+00 : f32
    %578 = vector.broadcast %cst_208 : f32 to vector<2x64xf32>
    %579 = arith.addf %578, %577 : vector<2x64xf32>
    %580 = arith.divf %578, %579 : vector<2x64xf32>
    %581 = arith.mulf %572, %551 : vector<2x64xf32>
    %582 = arith.mulf %566, %574 : vector<2x64xf32>
    %583 = arith.addf %581, %582 : vector<2x64xf32>
    %584 = math.tanh %583 : vector<2x64xf32>
    %585 = arith.mulf %580, %584 : vector<2x64xf32>
    %c7_209 = arith.constant 7 : index
    %c0_210 = arith.constant 0 : index
    %c0_211 = arith.constant 0 : index
    %586 = vector.load %arg11[%c7_209, %c0_210, %c0_211] : memref<8x2x256xf32, #tpu.memory_space<vmem>>, vector<1x2x256xf32>
    %587 = vector.shape_cast %586 : vector<1x2x256xf32> to vector<2x256xf32>
    %c0_212 = arith.constant 0 : index
    %c0_213 = arith.constant 0 : index
    %c0_214 = arith.constant 0 : index
    %588 = vector.load %arg11[%c0_212, %c0_213, %c0_214] : memref<8x2x256xf32, #tpu.memory_space<vmem>>, vector<1x2x256xf32>
    %589 = vector.shape_cast %588 : vector<1x2x256xf32> to vector<2x256xf32>
    %590 = arith.select %18, %587, %589 : vector<2x256xi1>, vector<2x256xf32>
    %cst_215 = arith.constant dense<0.000000e+00> : vector<2x256xf32>
    %591 = tpu.matmul %585, %362, %cst_215 {dimension_numbers = #tpu.dot_dimension_numbers<[1], [0], [0], [1], [0, 0, 1, 1], [], []>} : vector<2x64xf32>, vector<64x256xf32>, vector<2x256xf32> -> vector<2x256xf32>
    %592 = arith.addf %590, %591 : vector<2x256xf32>
    %593 = vector.extract_strided_slice %592 {offsets = [0, 0], sizes = [2, 64], strides = [1, 1]} : vector<2x256xf32> to vector<2x64xf32>
    %594 = arith.negf %593 : vector<2x64xf32>
    %595 = math.exp %594 : vector<2x64xf32>
    %cst_216 = arith.constant 1.000000e+00 : f32
    %596 = vector.broadcast %cst_216 : f32 to vector<2x64xf32>
    %597 = arith.addf %596, %595 : vector<2x64xf32>
    %598 = arith.divf %596, %597 : vector<2x64xf32>
    %599 = vector.extract_strided_slice %592 {offsets = [0, 64], sizes = [2, 64], strides = [1, 1]} : vector<2x256xf32> to vector<2x64xf32>
    %600 = arith.negf %599 : vector<2x64xf32>
    %601 = math.exp %600 : vector<2x64xf32>
    %cst_217 = arith.constant 1.000000e+00 : f32
    %602 = vector.broadcast %cst_217 : f32 to vector<2x64xf32>
    %603 = arith.addf %602, %601 : vector<2x64xf32>
    %604 = arith.divf %602, %603 : vector<2x64xf32>
    %605 = vector.extract_strided_slice %592 {offsets = [0, 128], sizes = [2, 64], strides = [1, 1]} : vector<2x256xf32> to vector<2x64xf32>
    %606 = math.tanh %605 : vector<2x64xf32>
    %607 = vector.extract_strided_slice %592 {offsets = [0, 192], sizes = [2, 64], strides = [1, 1]} : vector<2x256xf32> to vector<2x64xf32>
    %608 = arith.negf %607 : vector<2x64xf32>
    %609 = math.exp %608 : vector<2x64xf32>
    %cst_218 = arith.constant 1.000000e+00 : f32
    %610 = vector.broadcast %cst_218 : f32 to vector<2x64xf32>
    %611 = arith.addf %610, %609 : vector<2x64xf32>
    %612 = arith.divf %610, %611 : vector<2x64xf32>
    %613 = arith.mulf %604, %583 : vector<2x64xf32>
    %614 = arith.mulf %598, %606 : vector<2x64xf32>
    %615 = arith.addf %613, %614 : vector<2x64xf32>
    %616 = math.tanh %615 : vector<2x64xf32>
    %617 = arith.mulf %612, %616 : vector<2x64xf32>
    %618 = arith.select %21, %393, %617 : vector<2x64xi1>, vector<2x64xf32>
    %619 = arith.select %21, %425, %585 : vector<2x64xi1>, vector<2x64xf32>
    %620 = arith.select %21, %457, %553 : vector<2x64xi1>, vector<2x64xf32>
    %621 = arith.select %21, %489, %521 : vector<2x64xi1>, vector<2x64xf32>
    %622 = arith.select %21, %521, %489 : vector<2x64xi1>, vector<2x64xf32>
    %623 = arith.select %21, %553, %457 : vector<2x64xi1>, vector<2x64xf32>
    %624 = arith.select %21, %585, %425 : vector<2x64xi1>, vector<2x64xf32>
    %625 = arith.select %21, %617, %393 : vector<2x64xi1>, vector<2x64xf32>
    %626 = tpu.concatenate %618, %619, %620, %621, %622, %623, %624, %625 in 0 : vector<2x64xf32>, vector<2x64xf32>, vector<2x64xf32>, vector<2x64xf32>, vector<2x64xf32>, vector<2x64xf32>, vector<2x64xf32>, vector<2x64xf32> -> vector<16x64xf32>
    %c0_219 = arith.constant 0 : index
    %c0_220 = arith.constant 0 : index
    %627 = vector.load %arg8[%c0_219, %c0_220] : memref<64x128xf32, #tpu.memory_space<vmem>>, vector<64x128xf32>
    %cst_221 = arith.constant dense<0.000000e+00> : vector<16x128xf32>
    %628 = tpu.matmul %626, %627, %cst_221 {dimension_numbers = #tpu.dot_dimension_numbers<[1], [0], [0], [1], [0, 0, 1, 1], [], []>} : vector<16x64xf32>, vector<64x128xf32>, vector<16x128xf32> -> vector<16x128xf32>
    %c0_222 = arith.constant 0 : index
    %c0_223 = arith.constant 0 : index
    %629 = vector.load %arg9[%c0_222, %c0_223] : memref<1x128xf32, #tpu.memory_space<vmem>>, vector<1x128xf32>
    %630 = vector.broadcast %629 : vector<1x128xf32> to vector<16x128xf32>
    %631 = arith.addf %628, %630 : vector<16x128xf32>
    %c0_224 = arith.constant 0 : index
    %c0_225 = arith.constant 0 : index
    %632 = vector.load %arg10[%c0_224, %c0_225] : memref<16x128xf32, #tpu.memory_space<vmem>>, vector<16x128xf32>
    tpu.vector_store %arg10[%c0_224, %c0_225], %631 {strides = array<i32>} : memref<16x128xf32, #tpu.memory_space<vmem>>, vector<16x128xf32>,
    return
  }
  func.func @transform_0(%arg0: i32) -> (i32, i32) {
    %c0_i32 = arith.constant 0 : i32
    %c0_i32_0 = arith.constant 0 : i32
    %c0_i32_1 = arith.constant 0 : i32
    return %c0_i32, %c0_i32_0 : i32, i32
  }
  func.func @transform_1(%arg0: i32) -> (i32, i32) {
    %c0_i32 = arith.constant 0 : i32
    %c0_i32_0 = arith.constant 0 : i32
    %c0_i32_1 = arith.constant 0 : i32
    return %c0_i32, %c0_i32_0 : i32, i32
  }
  func.func @transform_2(%arg0: i32) -> (i32, i32) {
    %c0_i32 = arith.constant 0 : i32
    %c0_i32_0 = arith.constant 0 : i32
    %c0_i32_1 = arith.constant 0 : i32
    return %c0_i32, %c0_i32_0 : i32, i32
  }
  func.func @transform_3(%arg0: i32) -> (i32, i32) {
    %c0_i32 = arith.constant 0 : i32
    %c0_i32_0 = arith.constant 0 : i32
    %c0_i32_1 = arith.constant 0 : i32
    return %c0_i32, %c0_i32_0 : i32, i32
  }
  func.func @transform_4(%arg0: i32) -> (i32, i32) {
    %c0_i32 = arith.constant 0 : i32
    %c0_i32_0 = arith.constant 0 : i32
    %c0_i32_1 = arith.constant 0 : i32
    return %c0_i32, %c0_i32_0 : i32, i32
  }
  func.func @transform_5(%arg0: i32) -> (i32, i32) {
    %c0_i32 = arith.constant 0 : i32
    %c0_i32_0 = arith.constant 0 : i32
    %c0_i32_1 = arith.constant 0 : i32
    return %c0_i32, %c0_i32_0 : i32, i32
  }
  func.func @transform_6(%arg0: i32) -> (i32, i32) {
    %c0_i32 = arith.constant 0 : i32
    %c0_i32_0 = arith.constant 0 : i32
    %c0_i32_1 = arith.constant 0 : i32
    return %c0_i32, %c0_i32_0 : i32, i32
  }
  func.func @transform_7(%arg0: i32) -> (i32, i32) {
    %c0_i32 = arith.constant 0 : i32
    %c0_i32_0 = arith.constant 0 : i32
    %c0_i32_1 = arith.constant 0 : i32
    return %c0_i32, %c0_i32_0 : i32, i32
  }
  func.func @transform_8(%arg0: i32) -> (i32, i32) {
    %c0_i32 = arith.constant 0 : i32
    %c0_i32_0 = arith.constant 0 : i32
    %c0_i32_1 = arith.constant 0 : i32
    return %c0_i32, %c0_i32_0 : i32, i32
  }
  func.func @transform_9(%arg0: i32) -> (i32, i32) {
    %c0_i32 = arith.constant 0 : i32
    %c0_i32_0 = arith.constant 0 : i32
    %c0_i32_1 = arith.constant 0 : i32
    return %c0_i32, %c0_i32_0 : i32, i32
  }
}

</mosaic_0001>

<llo_original>
// kernel: lstm_reg_forward.1
$region0: #{lstm_reg_forward.1}
  #allocation0 [shape = 'u32[]', space=smem, size = 0x4, offset = 0x4, fixed_abs, tag = 'smem constant byte address 0x4 - core index']
  #allocation1 [shape = 'u32[144,128]{1,0:T(1,128)}', space=vmem, size = 0x12000, scoped, tag = 'internal scratch']
  #allocation2 [shape = 'f32[8,2,256]{2,1,0:T(2,128)}', space=vmem, size = 0x4000, scoped, tag = 'scratch operand']
  %s0 = inlined_call_operand.hbm [shape: f32[16,11], index: 0, kind: input, shape index: {}]
  %s1 = inlined_call_operand.hbm [shape: f32[11,256], index: 1, kind: input, shape index: {}]
  %s2 = inlined_call_operand.vmem [shape: f32[1,256], index: 2, kind: input, shape index: {}]
  %s3 = inlined_call_operand.hbm [shape: f32[64,256], index: 3, kind: input, shape index: {}]
  %s4 = inlined_call_operand.hbm [shape: f32[64,256], index: 4, kind: input, shape index: {}]
  %s5 = inlined_call_operand.vmem [shape: f32[1,256], index: 5, kind: input, shape index: {}]
  %s6 = inlined_call_operand.hbm [shape: f32[64,256], index: 6, kind: input, shape index: {}]
  %s7 = inlined_call_operand.hbm [shape: f32[64,128], index: 7, kind: input, shape index: {}]
  %s8 = inlined_call_operand.vmem [shape: f32[1,128], index: 8, kind: input, shape index: {}]
  %s9 = inlined_call_operand.vmem [shape: f32[16,128], index: 9, kind: output, shape index: {}]
  %s10 = sld [smem:[#allocation0]]
  $region70: #{lstm_reg_forward.1} parent=0
    _
  %s12 = ssub.s32 1, %s10
  %s13 = scalar_select 0, %s12, %s10
  $region1: #{lstm_reg_forward.1} parent=0
    #allocation3 [shape = 'u8[8192]{0}', space=vmem, size = 0x2000, scoped, tag = 'input window, operand 0, single buffered']
    #allocation4 [shape = 's32[1]{0}', space=sflag, size = 0x4, scoped, tag = 'scoped memory for lstm_reg_forward.1']
    #allocation5 [shape = 'u8[16384]{0}', space=vmem, size = 0x4000, scoped, tag = 'input window, operand 1, single buffered']
    #allocation6 [shape = 's32[1]{0}', space=sflag, size = 0x4, scoped, tag = 'scoped memory for lstm_reg_forward.1']
    #allocation7 [shape = 'u8[65536]{0}', space=vmem, size = 0x10000, scoped, tag = 'input window, operand 3, single buffered']
    #allocation8 [shape = 'u8[65536]{0}', space=vmem, size = 0x10000, scoped, tag = 'input window, operand 4, single buffered']
    #allocation9 [shape = 's32[1]{0}', space=sflag, size = 0x4, scoped, tag = 'scoped memory for lstm_reg_forward.1']
    #allocation10 [shape = 'u8[65536]{0}', space=vmem, size = 0x10000, scoped, tag = 'input window, operand 6, single buffered']
    #allocation11 [shape = 'u8[32768]{0}', space=vmem, size = 0x8000, scoped, tag = 'input window, operand 7, single buffered']
    #allocation12 [shape = 's32[1]{0}', space=sflag, size = 0x4, scoped, tag = 'scoped memory for lstm_reg_forward.1']
    %14 = vsyncpa [#allocation4], 0
    %15 = vsyncpa [#allocation6], 0
    %16 = vsyncpa [#allocation9], 0
    %17 = vsyncpa [#allocation12], 0
    // Predicated region
    $region2: #{lstm_reg_forward.1} parent=1 // pred_check
      _
    $region3: #{lstm_reg_forward.1} parent=1 // pred_check_branch
      %19 = sbr.rel (0) target = $region5
    $region4: #{lstm_reg_forward.1} parent=1 // pred_region
      %s21 = ssub.s32 256, 256
      %22 = vsyncadd [#allocation4], %s21
      %s23 = sshll.u32 [#allocation3], 4
      %s24 = int_to_ptr.vmem [resolvable:$true] %s23
      %29 = dma.hbm_to_vmem [thread:$0]  %s0, 256, %s24, [#allocation4], 128, 128, 8
    $region5: #{lstm_reg_forward.1} parent=1 // pred_fallthru
      _
    // Predicated region
    $region6: #{lstm_reg_forward.1} parent=1 // pred_check
      _
    $region7: #{lstm_reg_forward.1} parent=1 // pred_check_branch
      %31 = sbr.rel (0) target = $region9
    $region8: #{lstm_reg_forward.1} parent=1 // pred_region
      %s33 = ssub.s32 512, 512
      %34 = vsyncadd [#allocation6], %s33
      %s35 = sshll.u32 [#allocation5], 4
      %s36 = int_to_ptr.vmem [resolvable:$true] %s35
      %41 = dma.hbm_to_vmem [thread:$0]  %s1, 512, %s36, [#allocation6], 256, 256, 16
    $region9: #{lstm_reg_forward.1} parent=1 // pred_fallthru
      _
    // Predicated region
    $region10: #{lstm_reg_forward.1} parent=1 // pred_check
      _
    $region11: #{lstm_reg_forward.1} parent=1 // pred_check_branch
      %43 = sbr.rel (0) target = $region13
    $region12: #{lstm_reg_forward.1} parent=1 // pred_region
      _
    $region13: #{lstm_reg_forward.1} parent=1 // pred_fallthru
      _
    // Predicated region
    $region14: #{lstm_reg_forward.1} parent=1 // pred_check
      _
    $region15: #{lstm_reg_forward.1} parent=1 // pred_check_branch
      %45 = sbr.rel (0) target = $region17
    $region16: #{lstm_reg_forward.1} parent=1 // pred_region
      %s47 = ssub.s32 2048, 2048
      %48 = vsyncadd [#allocation6], %s47
      %s49 = sshll.u32 [#allocation7], 4
      %s50 = int_to_ptr.vmem [resolvable:$true] %s49
      %55 = dma.hbm_to_vmem [thread:$0]  %s3, 2048, %s50, [#allocation6], 256, 256, 16
    $region17: #{lstm_reg_forward.1} parent=1 // pred_fallthru
      _
    // Predicated region
    $region18: #{lstm_reg_forward.1} parent=1 // pred_check
      _
    $region19: #{lstm_reg_forward.1} parent=1 // pred_check_branch
      %57 = sbr.rel (0) target = $region21
    $region20: #{lstm_reg_forward.1} parent=1 // pred_region
      %s59 = ssub.s32 2048, 2048
      %60 = vsyncadd [#allocation9], %s59
      %s61 = sshll.u32 [#allocation8], 4
      %s62 = int_to_ptr.vmem [resolvable:$true] %s61
      %67 = dma.hbm_to_vmem [thread:$0]  %s4, 2048, %s62, [#allocation9], 256, 256, 16
    $region21: #{lstm_reg_forward.1} parent=1 // pred_fallthru
      _
    // Predicated region
    $region22: #{lstm_reg_forward.1} parent=1 // pred_check
      _
    $region23: #{lstm_reg_forward.1} parent=1 // pred_check_branch
      %69 = sbr.rel (0) target = $region25
    $region24: #{lstm_reg_forward.1} parent=1 // pred_region
      _
    $region25: #{lstm_reg_forward.1} parent=1 // pred_fallthru
      _
    // Predicated region
    $region26: #{lstm_reg_forward.1} parent=1 // pred_check
      _
    $region27: #{lstm_reg_forward.1} parent=1 // pred_check_branch
      %71 = sbr.rel (0) target = $region29
    $region28: #{lstm_reg_forward.1} parent=1 // pred_region
      %s73 = ssub.s32 2048, 2048
      %74 = vsyncadd [#allocation9], %s73
      %s75 = sshll.u32 [#allocation10], 4
      %s76 = int_to_ptr.vmem [resolvable:$true] %s75
      %81 = dma.hbm_to_vmem [thread:$0]  %s6, 2048, %s76, [#allocation9], 256, 256, 16
    $region29: #{lstm_reg_forward.1} parent=1 // pred_fallthru
      _
    // Predicated region
    $region30: #{lstm_reg_forward.1} parent=1 // pred_check
      _
    $region31: #{lstm_reg_forward.1} parent=1 // pred_check_branch
      %83 = sbr.rel (0) target = $region33
    $region32: #{lstm_reg_forward.1} parent=1 // pred_region
      %s85 = ssub.s32 1024, 1024
      %86 = vsyncadd [#allocation12], %s85
      %s87 = sshll.u32 [#allocation11], 4
      %s88 = int_to_ptr.vmem [resolvable:$true] %s87
      %93 = dma.hbm_to_vmem [thread:$0]  %s7, 1024, %s88, [#allocation12], 128, 128, 8
    $region33: #{lstm_reg_forward.1} parent=1 // pred_fallthru
      _
    // Predicated region
    $region34: #{lstm_reg_forward.1} parent=1 // pred_check
      _
    $region35: #{lstm_reg_forward.1} parent=1 // pred_check_branch
      %95 = sbr.rel (0) target = $region37
    $region36: #{lstm_reg_forward.1} parent=1 // pred_region
      _
    $region37: #{lstm_reg_forward.1} parent=1 // pred_fallthru
      _
    // Predicated region
    $region38: #{lstm_reg_forward.1} parent=1 // pred_check
      _
    $region39: #{lstm_reg_forward.1} parent=1 // pred_check_branch
      %97 = sbr.rel (0) target = $region41
    $region40: #{lstm_reg_forward.1} parent=1 // pred_region
      %98 = dma.done [#allocation4], 256
    $region41: #{lstm_reg_forward.1} parent=1 // pred_fallthru
      _
    // Predicated region
    $region42: #{lstm_reg_forward.1} parent=1 // pred_check
      _
    $region43: #{lstm_reg_forward.1} parent=1 // pred_check_branch
      %100 = sbr.rel (0) target = $region45
    $region44: #{lstm_reg_forward.1} parent=1 // pred_region
      %101 = dma.done [#allocation6], 512
    $region45: #{lstm_reg_forward.1} parent=1 // pred_fallthru
      _
    // Predicated region
    $region46: #{lstm_reg_forward.1} parent=1 // pred_check
      _
    $region47: #{lstm_reg_forward.1} parent=1 // pred_check_branch
      %103 = sbr.rel (0) target = $region49
    $region48: #{lstm_reg_forward.1} parent=1 // pred_region
      %104 = dma.done [#allocation6], 2048
    $region49: #{lstm_reg_forward.1} parent=1 // pred_fallthru
      _
    // Predicated region
    $region50: #{lstm_reg_forward.1} parent=1 // pred_check
      _
    $region51: #{lstm_reg_forward.1} parent=1 // pred_check_branch
      %106 = sbr.rel (0) target = $region53
    $region52: #{lstm_reg_forward.1} parent=1 // pred_region
      %107 = dma.done [#allocation9], 2048
    $region53: #{lstm_reg_forward.1} parent=1 // pred_fallthru
      _
    // Predicated region
    $region54: #{lstm_reg_forward.1} parent=1 // pred_check
      _
    $region55: #{lstm_reg_forward.1} parent=1 // pred_check_branch
      %109 = sbr.rel (0) target = $region57
    $region56: #{lstm_reg_forward.1} parent=1 // pred_region
      %110 = dma.done [#allocation9], 2048
    $region57: #{lstm_reg_forward.1} parent=1 // pred_fallthru
      _
    // Predicated region
    $region58: #{lstm_reg_forward.1} parent=1 // pred_check
      _
    $region59: #{lstm_reg_forward.1} parent=1 // pred_check_branch
      %112 = sbr.rel (0) target = $region61
    $region60: #{lstm_reg_forward.1} parent=1 // pred_region
      %113 = dma.done [#allocation12], 1024
    $region61: #{lstm_reg_forward.1} parent=1 // pred_fallthru
      _
    %v114 = vlaneseq
    %v115 = vand.u32 %v114, 127
    %v116 = vadd.s32 %v115, 128
    %vm117 = vcmp.lt.s32.totalorder %v115, 0
    %v118 = vsub.s32 0, %v115
    %v119 = vsel %vm117, %v118, %v115
    %v120 = vshrl.u32 %v119, 6
    %v121 = vand.u32 %v119, 63
    %v122 = vsub.s32 0, %v121
    %v123 = vsel %vm117, %v122, %v121
    %vm124 = vcmp.lt.s32.totalorder %v116, 0
    %v125 = vsub.s32 0, %v116
    %v126 = vsel %vm124, %v125, %v116
    %v127 = vshrl.u32 %v126, 6
    %v128 = vand.u32 %v126, 63
    %v129 = vsub.s32 0, %v128
    %v130 = vsel %vm124, %v129, %v128
    %vm131 = vcmp.ne.s32.totalorder %v123, 0
    %vm132 = vcmp.ne.s32.totalorder %v130, 0
    %vm133 = vcmp.lt.s32.totalorder %v123, 0
    %vm134 = vcmp.lt.s32.totalorder %v130, 0
    %vm135 = vmand %vm133, %vm131
    %vm136 = vmand %vm134, %vm132
    %v137 = vadd.s32 %v123, 64
    %v138 = vadd.s32 %v130, 64
    %v139 = vsel %vm135, %v137, %v123
    %v140 = vsel %vm136, %v138, %v130
    %vm141 = vcmp.lt.s32.totalorder %v139, 32
    %vm142 = vcmp.lt.s32.totalorder %v140, 32
    %vm143 = vcmp.lt.s32.totalorder %v115, 32
    %v144 = vld [vmem:[#allocation3] sm:$0xff]
    %v145 = vld [vmem:[#allocation3 + $0x8] sm:$0xff]
    %v146 = vld [vmem:[#allocation5] sm:$0xff]
    %v147 = vld [vmem:[#allocation5 + $0x8] sm:$0xff]
    %v148 = vld [vmem:[#allocation5 + $0x10] sm:$0x7]
    %v149 = vld [vmem:[#allocation5 + $0x18] sm:$0x7]
    %v150 = vld [vmem:[%s2] sm:$0x3]
    %v152 = vlaneseq
    %v153 = vshrl.u32 %v152, 7
    %v154 = vsub.s32 0, %v153
    %v155 = vrot.slane %v150, %v154
    %v156 = vlaneseq
    %v157 = vshrl.u32 %v156, 7
    %v158 = vsub.s32 1, %v157
    %v159 = vrot.slane %v150, %v158
    %vm162 = vcmask 89088
    %v164 = vsel %vm162, %v144, 0
    %v167 = vsel %vm162, %v145, 0
    %vm169 = vcmask 1042432
    %v171 = vsel %vm169, %v148, 0
    %v174 = vsel %vm169, %v149, 0
    %176 = vmatprep.subr.mxu0 0.0
    %177 = vmatpush1.msra.mxu0 0.0
    %178 = vmatprep.subr.mxu0 0.0
    %179 = vmatpush1.msra.mxu0 0.0
    %180 = vmatprep.subr.mxu0 0.0
    %181 = vmatpush1.msra.mxu0 0.0
    %182 = vmatprep.subr.mxu0 0.0
    %183 = vmatpush1.msra.mxu0 0.0
    %184 = vmatprep.subr.mxu0 0.0
    %185 = vmatpush1.msra.mxu0 0.0
    %186 = vmatprep.subr.mxu0 0.0
    %187 = vmatpush1.msra.mxu0 0.0
    %188 = vmatprep.subr.mxu0 0.0
    %189 = vmatpush1.msra.mxu0 0.0
    %190 = vmatprep.subr.mxu0 0.0
    %191 = vmatpush1.msra.mxu0 0.0
    %192 = vmatprep.subr.mxu0 0.0
    %193 = vmatpush1.msra.mxu0 0.0
    %194 = vmatprep.subr.mxu0 0.0
    %195 = vmatpush1.msra.mxu0 0.0
    %196 = vmatprep.subr.mxu0 0.0
    %197 = vmatpush1.msra.mxu0 0.0
    %198 = vmatprep.subr.mxu0 0.0
    %199 = vmatpush1.msra.mxu0 0.0
    %200 = vmatprep.subr.mxu0 0.0
    %201 = vmatpush1.msra.mxu0 0.0
    %202 = vmatprep.subr.mxu0 0.0
    %203 = vmatpush1.msra.mxu0 0.0
    %204 = vmatprep.subr.mxu0 %v174
    %205 = vmatpush1.msra.mxu0 %v171
    %206 = vmatprep.subr.mxu0 %v147
    %207 = vmatpush1.msra.mxu0 %v146
    %208 = vmatprep.subr.mxu0 0.0
    %209 = vmatpush2.msra.mxu0 0.0
    %210 = vmatprep.subr.mxu0 0.0
    %211 = vmatpush2.msra.mxu0 0.0
    %212 = vmatprep.subr.mxu0 0.0
    %213 = vmatpush2.msra.mxu0 0.0
    %214 = vmatprep.subr.mxu0 0.0
    %215 = vmatpush2.msra.mxu0 0.0
    %216 = vmatprep.subr.mxu0 0.0
    %217 = vmatpush2.msra.mxu0 0.0
    %218 = vmatprep.subr.mxu0 0.0
    %219 = vmatpush2.msra.mxu0 0.0
    %220 = vmatprep.subr.mxu0 0.0
    %221 = vmatpush2.msra.mxu0 0.0
    %222 = vmatprep.subr.mxu0 0.0
    %223 = vmatpush2.msra.mxu0 0.0
    %224 = vmatprep.subr.mxu0 0.0
    %225 = vmatpush2.msra.mxu0 0.0
    %226 = vmatprep.subr.mxu0 0.0
    %227 = vmatpush2.msra.mxu0 0.0
    %228 = vmatprep.subr.mxu0 0.0
    %229 = vmatpush2.msra.mxu0 0.0
    %230 = vmatprep.subr.mxu0 0.0
    %231 = vmatpush2.msra.mxu0 0.0
    %232 = vmatprep.subr.mxu0 0.0
    %233 = vmatpush2.msra.mxu0 0.0
    %234 = vmatprep.subr.mxu0 0.0
    %235 = vmatpush2.msra.mxu0 0.0
    %236 = vmatprep.subr.mxu0 0.0
    %237 = vmatpush2.msra.mxu0 0.0
    %238 = vmatprep.subr.mxu0 0.0
    %239 = vmatpush2.msra.mxu0 0.0
    %240 = vmatprep.mubr.f32.mxu0 0.0
    %241 = vmatmul.mubr.f32.gmra.mxu0 %v164
    %v242 = vpop.f32.mrf.mxu0
    %v243 = vadd.f32 %v155, %v242
    %v244 = vpop.f32.mrf.mxu0
    %v245 = vadd.f32 %v159, %v244
    %246 = vmatprep.mubr.f32.mxu0 0.0
    %247 = vmatmul.mubr.f32.gmra.mxu0 %v167
    %v248 = vpop.f32.mrf.mxu0
    %v249 = vadd.f32 %v155, %v248
    %v250 = vpop.f32.mrf.mxu0
    %v251 = vadd.f32 %v159, %v250
    %252 = vdwg.mxu0
    %v255 = vcombine.low %v243, %v245
    %v257 = vunpack.c.l.s4 1983009808
    %v258 = vunpack.c.0.s8 %v257
    %v259 = vlaneseq
    %v260 = vshrl.u32 %v259, 7
    %v261 = vsub.s32 %v258, %v260
    %v262 = vrot.slane %v255, %v261
    %264 = vst [vmem:[#allocation2] sm:$0xf] %v262
    %v265 = vcombine.high %v262, %v262
    %s267 = scalar_lea.vmem [#allocation2], 4
    %268 = vst [vmem:[%s267] sm:$0xf] %v265
    %v269 = vcombine.high %v243, %v245
    %v271 = vunpack.c.l.s4 1983009808
    %v272 = vunpack.c.0.s8 %v271
    %v273 = vlaneseq
    %v274 = vshrl.u32 %v273, 7
    %v275 = vsub.s32 %v272, %v274
    %v276 = vrot.slane %v269, %v275
    %s278 = scalar_lea.vmem [#allocation2], 8
    %279 = vst [vmem:[%s278] sm:$0xf] %v276
    %v280 = vcombine.high %v276, %v276
    %s282 = scalar_lea.vmem [#allocation2], 12
    %283 = vst [vmem:[%s282] sm:$0xf] %v280
    %v286 = vcombine.low %v249, %v251
    %v288 = vunpack.c.l.s4 1983009808
    %v289 = vunpack.c.0.s8 %v288
    %v290 = vlaneseq
    %v291 = vshrl.u32 %v290, 7
    %v292 = vsub.s32 %v289, %v291
    %v293 = vrot.slane %v286, %v292
    %s295 = scalar_lea.vmem [#allocation2], 16
    %296 = vst [vmem:[%s295] sm:$0xf] %v293
    %v297 = vcombine.high %v293, %v293
    %s299 = scalar_lea.vmem [#allocation2], 20
    %300 = vst [vmem:[%s299] sm:$0xf] %v297
    %v301 = vcombine.high %v249, %v251
    %v303 = vunpack.c.l.s4 1983009808
    %v304 = vunpack.c.0.s8 %v303
    %v305 = vlaneseq
    %v306 = vshrl.u32 %v305, 7
    %v307 = vsub.s32 %v304, %v306
    %v308 = vrot.slane %v301, %v307
    %s310 = scalar_lea.vmem [#allocation2], 24
    %311 = vst [vmem:[%s310] sm:$0xf] %v308
    %v312 = vcombine.high %v308, %v308
    %s314 = scalar_lea.vmem [#allocation2], 28
    %315 = vst [vmem:[%s314] sm:$0xf] %v312
    %v316 = vld [vmem:[#allocation7] sm:$0xff]
    %v317 = vld [vmem:[#allocation7 + $0x8] sm:$0xff]
    %v318 = vld [vmem:[#allocation7 + $0x10] sm:$0xff]
    %v319 = vld [vmem:[#allocation7 + $0x18] sm:$0xff]
    %v320 = vld [vmem:[#allocation7 + $0x20] sm:$0xff]
    %v321 = vld [vmem:[#allocation7 + $0x28] sm:$0xff]
    %v322 = vld [vmem:[#allocation7 + $0x30] sm:$0xff]
    %v323 = vld [vmem:[#allocation7 + $0x38] sm:$0xff]
    %v324 = vld [vmem:[#allocation7 + $0x40] sm:$0xff]
    %v325 = vld [vmem:[#allocation7 + $0x48] sm:$0xff]
    %v326 = vld [vmem:[#allocation7 + $0x50] sm:$0xff]
    %v327 = vld [vmem:[#allocation7 + $0x58] sm:$0xff]
    %v328 = vld [vmem:[#allocation7 + $0x60] sm:$0xff]
    %v329 = vld [vmem:[#allocation7 + $0x68] sm:$0xff]
    %v330 = vld [vmem:[#allocation7 + $0x70] sm:$0xff]
    %v331 = vld [vmem:[#allocation7 + $0x78] sm:$0xff]
    %v332 = vld [vmem:[#allocation2] sm:$0xf]
    %v333 = vld [vmem:[%s314] sm:$0xf]
    %v336 = vunpack.c.l.s4 1983009808
    %v337 = vunpack.c.0.s8 %v336
    %v338 = vlaneseq
    %v339 = vshrl.u32 %v338, 7
    %v340 = vsub.s32 %v337, %v339
    %v341 = vrot.slane %v332, %v340
    %v342 = vcombine.high %v341, %v341
    %v347 = vunpack.c.l.s4 1983009808
    %v348 = vunpack.c.0.s8 %v347
    %v349 = vlaneseq
    %v350 = vshrl.u32 %v349, 7
    %v351 = vsub.s32 %v348, %v350
    %v352 = vrot.slane %v333, %v351
    %v353 = vcombine.high %v352, %v352
    %v356 = vsel %vm141, %v341, %v352
    %v357 = vsel %vm142, %v342, %v353
    %v358 = vxor.u32 %v356, 2147483648
    %v359 = vmul.f32 %v358, 1.442695
    %v360 = vpow.pop %v359
    %v361 = vadd.f32 %v360, 1.0
    %v362 = vrcp.pop %v361
    %v363 = vmul.f32 1.0, %v362
    %v364 = vtanh.pop %v357
    %v365 = vxor.u32 %v357, 2147483648
    %v366 = vmul.f32 %v365, 1.442695
    %v367 = vpow.pop %v366
    %v368 = vadd.f32 %v367, 1.0
    %v369 = vrcp.pop %v368
    %v370 = vmul.f32 1.0, %v369
    %v371 = vmul.f32 %v363, 0.0
    %v372 = vmul.f32 %v363, %v364
    %374 = vrot.lane.b32.xlu0 %v372, 64
    %v375 = vpop.permute.xlu0 %374
    %v377 = vadd.f32 %v371, %v375
    %v378 = vtanh.pop %v377
    %v379 = vmul.f32 %v370, %v378
    %v380 = vld [vmem:[%s267] sm:$0xf]
    %v381 = vld [vmem:[%s310] sm:$0xf]
    %v384 = vunpack.c.l.s4 1983009808
    %v385 = vunpack.c.0.s8 %v384
    %v386 = vlaneseq
    %v387 = vshrl.u32 %v386, 7
    %v388 = vsub.s32 %v385, %v387
    %v389 = vrot.slane %v380, %v388
    %v390 = vcombine.high %v389, %v389
    %v395 = vunpack.c.l.s4 1983009808
    %v396 = vunpack.c.0.s8 %v395
    %v397 = vlaneseq
    %v398 = vshrl.u32 %v397, 7
    %v399 = vsub.s32 %v396, %v398
    %v400 = vrot.slane %v381, %v399
    %v401 = vcombine.high %v400, %v400
    %v404 = vsel %vm141, %v389, %v400
    %v405 = vsel %vm142, %v390, %v401
    %407 = vrot.lane.b32.xlu0 %v379, 64
    %v408 = vpop.permute.xlu0 %407
    %vm409 = vcmask 523264
    %v410 = vsel %vm409, %v408, 0
    %412 = vmatprep.subr.mxu0 0.0
    %413 = vmatpush1.msra.mxu0 0.0
    %414 = vmatprep.subr.mxu0 0.0
    %415 = vmatpush1.msra.mxu0 0.0
    %416 = vmatprep.subr.mxu0 0.0
    %417 = vmatpush1.msra.mxu0 0.0
    %418 = vmatprep.subr.mxu0 0.0
    %419 = vmatpush1.msra.mxu0 0.0
    %420 = vmatprep.subr.mxu0 0.0
    %421 = vmatpush1.msra.mxu0 0.0
    %422 = vmatprep.subr.mxu0 0.0
    %423 = vmatpush1.msra.mxu0 0.0
    %424 = vmatprep.subr.mxu0 0.0
    %425 = vmatpush1.msra.mxu0 0.0
    %426 = vmatprep.subr.mxu0 0.0
    %427 = vmatpush1.msra.mxu0 0.0
    %428 = vmatprep.subr.mxu0 %v331
    %429 = vmatpush1.msra.mxu0 %v330
    %430 = vmatprep.subr.mxu0 %v329
    %431 = vmatpush1.msra.mxu0 %v328
    %432 = vmatprep.subr.mxu0 %v327
    %433 = vmatpush1.msra.mxu0 %v326
    %434 = vmatprep.subr.mxu0 %v325
    %435 = vmatpush1.msra.mxu0 %v324
    %436 = vmatprep.subr.mxu0 %v323
    %437 = vmatpush1.msra.mxu0 %v322
    %438 = vmatprep.subr.mxu0 %v321
    %439 = vmatpush1.msra.mxu0 %v320
    %440 = vmatprep.subr.mxu0 %v319
    %441 = vmatpush1.msra.mxu0 %v318
    %442 = vmatprep.subr.mxu0 %v317
    %443 = vmatpush1.msra.mxu0 %v316
    %444 = vmatprep.subr.mxu0 0.0
    %445 = vmatpush2.msra.mxu0 0.0
    %446 = vmatprep.subr.mxu0 0.0
    %447 = vmatpush2.msra.mxu0 0.0
    %448 = vmatprep.subr.mxu0 0.0
    %449 = vmatpush2.msra.mxu0 0.0
    %450 = vmatprep.subr.mxu0 0.0
    %451 = vmatpush2.msra.mxu0 0.0
    %452 = vmatprep.subr.mxu0 0.0
    %453 = vmatpush2.msra.mxu0 0.0
    %454 = vmatprep.subr.mxu0 0.0
    %455 = vmatpush2.msra.mxu0 0.0
    %456 = vmatprep.subr.mxu0 0.0
    %457 = vmatpush2.msra.mxu0 0.0
    %458 = vmatprep.subr.mxu0 0.0
    %459 = vmatpush2.msra.mxu0 0.0
    %460 = vmatprep.subr.mxu0 0.0
    %461 = vmatpush2.msra.mxu0 0.0
    %462 = vmatprep.subr.mxu0 0.0
    %463 = vmatpush2.msra.mxu0 0.0
    %464 = vmatprep.subr.mxu0 0.0
    %465 = vmatpush2.msra.mxu0 0.0
    %466 = vmatprep.subr.mxu0 0.0
    %467 = vmatpush2.msra.mxu0 0.0
    %468 = vmatprep.subr.mxu0 0.0
    %469 = vmatpush2.msra.mxu0 0.0
    %470 = vmatprep.subr.mxu0 0.0
    %471 = vmatpush2.msra.mxu0 0.0
    %472 = vmatprep.subr.mxu0 0.0
    %473 = vmatpush2.msra.mxu0 0.0
    %474 = vmatprep.subr.mxu0 0.0
    %475 = vmatpush2.msra.mxu0 0.0
    %476 = vmatprep.mubr.f32.mxu0 0.0
    %477 = vmatmul.mubr.f32.gmra.mxu0 %v410
    %v478 = vpop.f32.mrf.mxu0
    %v479 = vadd.f32 0.0, %v478
    %v480 = vpop.f32.mrf.mxu0
    %v481 = vadd.f32 0.0, %v480
    %482 = vdwg.mxu0
    %v483 = vadd.f32 %v404, %v479
    %v484 = vadd.f32 %v405, %v481
    %v485 = vxor.u32 %v483, 2147483648
    %v486 = vmul.f32 %v485, 1.442695
    %v487 = vpow.pop %v486
    %v488 = vadd.f32 %v487, 1.0
    %v489 = vrcp.pop %v488
    %v490 = vmul.f32 1.0, %v489
    %v491 = vtanh.pop %v484
    %v492 = vxor.u32 %v484, 2147483648
    %v493 = vmul.f32 %v492, 1.442695
    %v494 = vpow.pop %v493
    %v495 = vadd.f32 %v494, 1.0
    %v496 = vrcp.pop %v495
    %v497 = vmul.f32 1.0, %v496
    %v498 = vmul.f32 %v490, %v377
    %v499 = vmul.f32 %v490, %v491
    %501 = vrot.lane.b32.xlu0 %v499, 64
    %v502 = vpop.permute.xlu0 %501
    %v504 = vadd.f32 %v498, %v502
    %v505 = vtanh.pop %v504
    %v506 = vmul.f32 %v497, %v505
    %v507 = vld [vmem:[%s278] sm:$0xf]
    %v508 = vld [vmem:[%s299] sm:$0xf]
    %v511 = vunpack.c.l.s4 1983009808
    %v512 = vunpack.c.0.s8 %v511
    %v513 = vlaneseq
    %v514 = vshrl.u32 %v513, 7
    %v515 = vsub.s32 %v512, %v514
    %v516 = vrot.slane %v507, %v515
    %v517 = vcombine.high %v516, %v516
    %v522 = vunpack.c.l.s4 1983009808
    %v523 = vunpack.c.0.s8 %v522
    %v524 = vlaneseq
    %v525 = vshrl.u32 %v524, 7
    %v526 = vsub.s32 %v523, %v525
    %v527 = vrot.slane %v508, %v526
    %v528 = vcombine.high %v527, %v527
    %v531 = vsel %vm141, %v516, %v527
    %v532 = vsel %vm142, %v517, %v528
    %534 = vrot.lane.b32.xlu0 %v506, 64
    %v535 = vpop.permute.xlu0 %534
    %v536 = vsel %vm409, %v535, 0
    %538 = vmatprep.subr.mxu0 0.0
    %539 = vmatpush1.msra.mxu0 0.0
    %540 = vmatprep.subr.mxu0 0.0
    %541 = vmatpush1.msra.mxu0 0.0
    %542 = vmatprep.subr.mxu0 0.0
    %543 = vmatpush1.msra.mxu0 0.0
    %544 = vmatprep.subr.mxu0 0.0
    %545 = vmatpush1.msra.mxu0 0.0
    %546 = vmatprep.subr.mxu0 0.0
    %547 = vmatpush1.msra.mxu0 0.0
    %548 = vmatprep.subr.mxu0 0.0
    %549 = vmatpush1.msra.mxu0 0.0
    %550 = vmatprep.subr.mxu0 0.0
    %551 = vmatpush1.msra.mxu0 0.0
    %552 = vmatprep.subr.mxu0 0.0
    %553 = vmatpush1.msra.mxu0 0.0
    %554 = vmatprep.subr.mxu0 %v331
    %555 = vmatpush1.msra.mxu0 %v330
    %556 = vmatprep.subr.mxu0 %v329
    %557 = vmatpush1.msra.mxu0 %v328
    %558 = vmatprep.subr.mxu0 %v327
    %559 = vmatpush1.msra.mxu0 %v326
    %560 = vmatprep.subr.mxu0 %v325
    %561 = vmatpush1.msra.mxu0 %v324
    %562 = vmatprep.subr.mxu0 %v323
    %563 = vmatpush1.msra.mxu0 %v322
    %564 = vmatprep.subr.mxu0 %v321
    %565 = vmatpush1.msra.mxu0 %v320
    %566 = vmatprep.subr.mxu0 %v319
    %567 = vmatpush1.msra.mxu0 %v318
    %568 = vmatprep.subr.mxu0 %v317
    %569 = vmatpush1.msra.mxu0 %v316
    %570 = vmatprep.subr.mxu0 0.0
    %571 = vmatpush2.msra.mxu0 0.0
    %572 = vmatprep.subr.mxu0 0.0
    %573 = vmatpush2.msra.mxu0 0.0
    %574 = vmatprep.subr.mxu0 0.0
    %575 = vmatpush2.msra.mxu0 0.0
    %576 = vmatprep.subr.mxu0 0.0
    %577 = vmatpush2.msra.mxu0 0.0
    %578 = vmatprep.subr.mxu0 0.0
    %579 = vmatpush2.msra.mxu0 0.0
    %580 = vmatprep.subr.mxu0 0.0
    %581 = vmatpush2.msra.mxu0 0.0
    %582 = vmatprep.subr.mxu0 0.0
    %583 = vmatpush2.msra.mxu0 0.0
    %584 = vmatprep.subr.mxu0 0.0
    %585 = vmatpush2.msra.mxu0 0.0
    %586 = vmatprep.subr.mxu0 0.0
    %587 = vmatpush2.msra.mxu0 0.0
    %588 = vmatprep.subr.mxu0 0.0
    %589 = vmatpush2.msra.mxu0 0.0
    %590 = vmatprep.subr.mxu0 0.0
    %591 = vmatpush2.msra.mxu0 0.0
    %592 = vmatprep.subr.mxu0 0.0
    %593 = vmatpush2.msra.mxu0 0.0
    %594 = vmatprep.subr.mxu0 0.0
    %595 = vmatpush2.msra.mxu0 0.0
    %596 = vmatprep.subr.mxu0 0.0
    %597 = vmatpush2.msra.mxu0 0.0
    %598 = vmatprep.subr.mxu0 0.0
    %599 = vmatpush2.msra.mxu0 0.0
    %600 = vmatprep.subr.mxu0 0.0
    %601 = vmatpush2.msra.mxu0 0.0
    %602 = vmatprep.mubr.f32.mxu0 0.0
    %603 = vmatmul.mubr.f32.gmra.mxu0 %v536
    %v604 = vpop.f32.mrf.mxu0
    %v605 = vadd.f32 0.0, %v604
    %v606 = vpop.f32.mrf.mxu0
    %v607 = vadd.f32 0.0, %v606
    %608 = vdwg.mxu0
    %v609 = vadd.f32 %v531, %v605
    %v610 = vadd.f32 %v532, %v607
    %v611 = vxor.u32 %v609, 2147483648
    %v612 = vmul.f32 %v611, 1.442695
    %v613 = vpow.pop %v612
    %v614 = vadd.f32 %v613, 1.0
    %v615 = vrcp.pop %v614
    %v616 = vmul.f32 1.0, %v615
    %v617 = vtanh.pop %v610
    %v618 = vxor.u32 %v610, 2147483648
    %v619 = vmul.f32 %v618, 1.442695
    %v620 = vpow.pop %v619
    %v621 = vadd.f32 %v620, 1.0
    %v622 = vrcp.pop %v621
    %v623 = vmul.f32 1.0, %v622
    %v624 = vmul.f32 %v616, %v504
    %v625 = vmul.f32 %v616, %v617
    %627 = vrot.lane.b32.xlu0 %v625, 64
    %v628 = vpop.permute.xlu0 %627
    %v630 = vadd.f32 %v624, %v628
    %v631 = vtanh.pop %v630
    %v632 = vmul.f32 %v623, %v631
    %v633 = vld [vmem:[%s282] sm:$0xf]
    %v634 = vld [vmem:[%s295] sm:$0xf]
    %v637 = vunpack.c.l.s4 1983009808
    %v638 = vunpack.c.0.s8 %v637
    %v639 = vlaneseq
    %v640 = vshrl.u32 %v639, 7
    %v641 = vsub.s32 %v638, %v640
    %v642 = vrot.slane %v633, %v641
    %v643 = vcombine.high %v642, %v642
    %v648 = vunpack.c.l.s4 1983009808
    %v649 = vunpack.c.0.s8 %v648
    %v650 = vlaneseq
    %v651 = vshrl.u32 %v650, 7
    %v652 = vsub.s32 %v649, %v651
    %v653 = vrot.slane %v634, %v652
    %v654 = vcombine.high %v653, %v653
    %v657 = vsel %vm141, %v642, %v653
    %v658 = vsel %vm142, %v643, %v654
    %660 = vrot.lane.b32.xlu0 %v632, 64
    %v661 = vpop.permute.xlu0 %660
    %v662 = vsel %vm409, %v661, 0
    %664 = vmatprep.subr.mxu0 0.0
    %665 = vmatpush1.msra.mxu0 0.0
    %666 = vmatprep.subr.mxu0 0.0
    %667 = vmatpush1.msra.mxu0 0.0
    %668 = vmatprep.subr.mxu0 0.0
    %669 = vmatpush1.msra.mxu0 0.0
    %670 = vmatprep.subr.mxu0 0.0
    %671 = vmatpush1.msra.mxu0 0.0
    %672 = vmatprep.subr.mxu0 0.0
    %673 = vmatpush1.msra.mxu0 0.0
    %674 = vmatprep.subr.mxu0 0.0
    %675 = vmatpush1.msra.mxu0 0.0
    %676 = vmatprep.subr.mxu0 0.0
    %677 = vmatpush1.msra.mxu0 0.0
    %678 = vmatprep.subr.mxu0 0.0
    %679 = vmatpush1.msra.mxu0 0.0
    %680 = vmatprep.subr.mxu0 %v331
    %681 = vmatpush1.msra.mxu0 %v330
    %682 = vmatprep.subr.mxu0 %v329
    %683 = vmatpush1.msra.mxu0 %v328
    %684 = vmatprep.subr.mxu0 %v327
    %685 = vmatpush1.msra.mxu0 %v326
    %686 = vmatprep.subr.mxu0 %v325
    %687 = vmatpush1.msra.mxu0 %v324
    %688 = vmatprep.subr.mxu0 %v323
    %689 = vmatpush1.msra.mxu0 %v322
    %690 = vmatprep.subr.mxu0 %v321
    %691 = vmatpush1.msra.mxu0 %v320
    %692 = vmatprep.subr.mxu0 %v319
    %693 = vmatpush1.msra.mxu0 %v318
    %694 = vmatprep.subr.mxu0 %v317
    %695 = vmatpush1.msra.mxu0 %v316
    %696 = vmatprep.subr.mxu0 0.0
    %697 = vmatpush2.msra.mxu0 0.0
    %698 = vmatprep.subr.mxu0 0.0
    %699 = vmatpush2.msra.mxu0 0.0
    %700 = vmatprep.subr.mxu0 0.0
    %701 = vmatpush2.msra.mxu0 0.0
    %702 = vmatprep.subr.mxu0 0.0
    %703 = vmatpush2.msra.mxu0 0.0
    %704 = vmatprep.subr.mxu0 0.0
    %705 = vmatpush2.msra.mxu0 0.0
    %706 = vmatprep.subr.mxu0 0.0
    %707 = vmatpush2.msra.mxu0 0.0
    %708 = vmatprep.subr.mxu0 0.0
    %709 = vmatpush2.msra.mxu0 0.0
    %710 = vmatprep.subr.mxu0 0.0
    %711 = vmatpush2.msra.mxu0 0.0
    %712 = vmatprep.subr.mxu0 0.0
    %713 = vmatpush2.msra.mxu0 0.0
    %714 = vmatprep.subr.mxu0 0.0
    %715 = vmatpush2.msra.mxu0 0.0
    %716 = vmatprep.subr.mxu0 0.0
    %717 = vmatpush2.msra.mxu0 0.0
    %718 = vmatprep.subr.mxu0 0.0
    %719 = vmatpush2.msra.mxu0 0.0
    %720 = vmatprep.subr.mxu0 0.0
    %721 = vmatpush2.msra.mxu0 0.0
    %722 = vmatprep.subr.mxu0 0.0
    %723 = vmatpush2.msra.mxu0 0.0
    %724 = vmatprep.subr.mxu0 0.0
    %725 = vmatpush2.msra.mxu0 0.0
    %726 = vmatprep.subr.mxu0 0.0
    %727 = vmatpush2.msra.mxu0 0.0
    %728 = vmatprep.mubr.f32.mxu0 0.0
    %729 = vmatmul.mubr.f32.gmra.mxu0 %v662
    %v730 = vpop.f32.mrf.mxu0
    %v731 = vadd.f32 0.0, %v730
    %v732 = vpop.f32.mrf.mxu0
    %v733 = vadd.f32 0.0, %v732
    %734 = vdwg.mxu0
    %v735 = vadd.f32 %v657, %v731
    %v736 = vadd.f32 %v658, %v733
    %v737 = vxor.u32 %v735, 2147483648
    %v738 = vmul.f32 %v737, 1.442695
    %v739 = vpow.pop %v738
    %v740 = vadd.f32 %v739, 1.0
    %v741 = vrcp.pop %v740
    %v742 = vmul.f32 1.0, %v741
    %v743 = vtanh.pop %v736
    %v744 = vxor.u32 %v736, 2147483648
    %v745 = vmul.f32 %v744, 1.442695
    %v746 = vpow.pop %v745
    %v747 = vadd.f32 %v746, 1.0
    %v748 = vrcp.pop %v747
    %v749 = vmul.f32 1.0, %v748
    %v750 = vmul.f32 %v742, %v630
    %v751 = vmul.f32 %v742, %v743
    %753 = vrot.lane.b32.xlu0 %v751, 64
    %v754 = vpop.permute.xlu0 %753
    %v756 = vadd.f32 %v750, %v754
    %v757 = vtanh.pop %v756
    %v758 = vmul.f32 %v749, %v757
    %v759 = vsel %vm141, %v653, %v642
    %v760 = vsel %vm142, %v654, %v643
    %762 = vrot.lane.b32.xlu0 %v758, 64
    %v763 = vpop.permute.xlu0 %762
    %v764 = vsel %vm409, %v763, 0
    %766 = vmatprep.subr.mxu0 0.0
    %767 = vmatpush1.msra.mxu0 0.0
    %768 = vmatprep.subr.mxu0 0.0
    %769 = vmatpush1.msra.mxu0 0.0
    %770 = vmatprep.subr.mxu0 0.0
    %771 = vmatpush1.msra.mxu0 0.0
    %772 = vmatprep.subr.mxu0 0.0
    %773 = vmatpush1.msra.mxu0 0.0
    %774 = vmatprep.subr.mxu0 0.0
    %775 = vmatpush1.msra.mxu0 0.0
    %776 = vmatprep.subr.mxu0 0.0
    %777 = vmatpush1.msra.mxu0 0.0
    %778 = vmatprep.subr.mxu0 0.0
    %779 = vmatpush1.msra.mxu0 0.0
    %780 = vmatprep.subr.mxu0 0.0
    %781 = vmatpush1.msra.mxu0 0.0
    %782 = vmatprep.subr.mxu0 %v331
    %783 = vmatpush1.msra.mxu0 %v330
    %784 = vmatprep.subr.mxu0 %v329
    %785 = vmatpush1.msra.mxu0 %v328
    %786 = vmatprep.subr.mxu0 %v327
    %787 = vmatpush1.msra.mxu0 %v326
    %788 = vmatprep.subr.mxu0 %v325
    %789 = vmatpush1.msra.mxu0 %v324
    %790 = vmatprep.subr.mxu0 %v323
    %791 = vmatpush1.msra.mxu0 %v322
    %792 = vmatprep.subr.mxu0 %v321
    %793 = vmatpush1.msra.mxu0 %v320
    %794 = vmatprep.subr.mxu0 %v319
    %795 = vmatpush1.msra.mxu0 %v318
    %796 = vmatprep.subr.mxu0 %v317
    %797 = vmatpush1.msra.mxu0 %v316
    %798 = vmatprep.subr.mxu0 0.0
    %799 = vmatpush2.msra.mxu0 0.0
    %800 = vmatprep.subr.mxu0 0.0
    %801 = vmatpush2.msra.mxu0 0.0
    %802 = vmatprep.subr.mxu0 0.0
    %803 = vmatpush2.msra.mxu0 0.0
    %804 = vmatprep.subr.mxu0 0.0
    %805 = vmatpush2.msra.mxu0 0.0
    %806 = vmatprep.subr.mxu0 0.0
    %807 = vmatpush2.msra.mxu0 0.0
    %808 = vmatprep.subr.mxu0 0.0
    %809 = vmatpush2.msra.mxu0 0.0
    %810 = vmatprep.subr.mxu0 0.0
    %811 = vmatpush2.msra.mxu0 0.0
    %812 = vmatprep.subr.mxu0 0.0
    %813 = vmatpush2.msra.mxu0 0.0
    %814 = vmatprep.subr.mxu0 0.0
    %815 = vmatpush2.msra.mxu0 0.0
    %816 = vmatprep.subr.mxu0 0.0
    %817 = vmatpush2.msra.mxu0 0.0
    %818 = vmatprep.subr.mxu0 0.0
    %819 = vmatpush2.msra.mxu0 0.0
    %820 = vmatprep.subr.mxu0 0.0
    %821 = vmatpush2.msra.mxu0 0.0
    %822 = vmatprep.subr.mxu0 0.0
    %823 = vmatpush2.msra.mxu0 0.0
    %824 = vmatprep.subr.mxu0 0.0
    %825 = vmatpush2.msra.mxu0 0.0
    %826 = vmatprep.subr.mxu0 0.0
    %827 = vmatpush2.msra.mxu0 0.0
    %828 = vmatprep.subr.mxu0 0.0
    %829 = vmatpush2.msra.mxu0 0.0
    %830 = vmatprep.mubr.f32.mxu0 0.0
    %831 = vmatmul.mubr.f32.gmra.mxu0 %v764
    %v832 = vpop.f32.mrf.mxu0
    %v833 = vadd.f32 0.0, %v832
    %v834 = vpop.f32.mrf.mxu0
    %v835 = vadd.f32 0.0, %v834
    %836 = vdwg.mxu0
    %v837 = vadd.f32 %v759, %v833
    %v838 = vadd.f32 %v760, %v835
    %v839 = vxor.u32 %v837, 2147483648
    %v840 = vmul.f32 %v839, 1.442695
    %v841 = vpow.pop %v840
    %v842 = vadd.f32 %v841, 1.0
    %v843 = vrcp.pop %v842
    %v844 = vmul.f32 1.0, %v843
    %v845 = vtanh.pop %v838
    %v846 = vxor.u32 %v838, 2147483648
    %v847 = vmul.f32 %v846, 1.442695
    %v848 = vpow.pop %v847
    %v849 = vadd.f32 %v848, 1.0
    %v850 = vrcp.pop %v849
    %v851 = vmul.f32 1.0, %v850
    %v852 = vmul.f32 %v844, %v756
    %v853 = vmul.f32 %v844, %v845
    %855 = vrot.lane.b32.xlu0 %v853, 64
    %v856 = vpop.permute.xlu0 %855
    %v858 = vadd.f32 %v852, %v856
    %v859 = vtanh.pop %v858
    %v860 = vmul.f32 %v851, %v859
    %v861 = vsel %vm141, %v527, %v516
    %v862 = vsel %vm142, %v528, %v517
    %864 = vrot.lane.b32.xlu0 %v860, 64
    %v865 = vpop.permute.xlu0 %864
    %v866 = vsel %vm409, %v865, 0
    %868 = vmatprep.subr.mxu0 0.0
    %869 = vmatpush1.msra.mxu0 0.0
    %870 = vmatprep.subr.mxu0 0.0
    %871 = vmatpush1.msra.mxu0 0.0
    %872 = vmatprep.subr.mxu0 0.0
    %873 = vmatpush1.msra.mxu0 0.0
    %874 = vmatprep.subr.mxu0 0.0
    %875 = vmatpush1.msra.mxu0 0.0
    %876 = vmatprep.subr.mxu0 0.0
    %877 = vmatpush1.msra.mxu0 0.0
    %878 = vmatprep.subr.mxu0 0.0
    %879 = vmatpush1.msra.mxu0 0.0
    %880 = vmatprep.subr.mxu0 0.0
    %881 = vmatpush1.msra.mxu0 0.0
    %882 = vmatprep.subr.mxu0 0.0
    %883 = vmatpush1.msra.mxu0 0.0
    %884 = vmatprep.subr.mxu0 %v331
    %885 = vmatpush1.msra.mxu0 %v330
    %886 = vmatprep.subr.mxu0 %v329
    %887 = vmatpush1.msra.mxu0 %v328
    %888 = vmatprep.subr.mxu0 %v327
    %889 = vmatpush1.msra.mxu0 %v326
    %890 = vmatprep.subr.mxu0 %v325
    %891 = vmatpush1.msra.mxu0 %v324
    %892 = vmatprep.subr.mxu0 %v323
    %893 = vmatpush1.msra.mxu0 %v322
    %894 = vmatprep.subr.mxu0 %v321
    %895 = vmatpush1.msra.mxu0 %v320
    %896 = vmatprep.subr.mxu0 %v319
    %897 = vmatpush1.msra.mxu0 %v318
    %898 = vmatprep.subr.mxu0 %v317
    %899 = vmatpush1.msra.mxu0 %v316
    %900 = vmatprep.subr.mxu0 0.0
    %901 = vmatpush2.msra.mxu0 0.0
    %902 = vmatprep.subr.mxu0 0.0
    %903 = vmatpush2.msra.mxu0 0.0
    %904 = vmatprep.subr.mxu0 0.0
    %905 = vmatpush2.msra.mxu0 0.0
    %906 = vmatprep.subr.mxu0 0.0
    %907 = vmatpush2.msra.mxu0 0.0
    %908 = vmatprep.subr.mxu0 0.0
    %909 = vmatpush2.msra.mxu0 0.0
    %910 = vmatprep.subr.mxu0 0.0
    %911 = vmatpush2.msra.mxu0 0.0
    %912 = vmatprep.subr.mxu0 0.0
    %913 = vmatpush2.msra.mxu0 0.0
    %914 = vmatprep.subr.mxu0 0.0
    %915 = vmatpush2.msra.mxu0 0.0
    %916 = vmatprep.subr.mxu0 0.0
    %917 = vmatpush2.msra.mxu0 0.0
    %918 = vmatprep.subr.mxu0 0.0
    %919 = vmatpush2.msra.mxu0 0.0
    %920 = vmatprep.subr.mxu0 0.0
    %921 = vmatpush2.msra.mxu0 0.0
    %922 = vmatprep.subr.mxu0 0.0
    %923 = vmatpush2.msra.mxu0 0.0
    %924 = vmatprep.subr.mxu0 0.0
    %925 = vmatpush2.msra.mxu0 0.0
    %926 = vmatprep.subr.mxu0 0.0
    %927 = vmatpush2.msra.mxu0 0.0
    %928 = vmatprep.subr.mxu0 0.0
    %929 = vmatpush2.msra.mxu0 0.0
    %930 = vmatprep.subr.mxu0 0.0
    %931 = vmatpush2.msra.mxu0 0.0
    %932 = vmatprep.mubr.f32.mxu0 0.0
    %933 = vmatmul.mubr.f32.gmra.mxu0 %v866
    %v934 = vpop.f32.mrf.mxu0
    %v935 = vadd.f32 0.0, %v934
    %v936 = vpop.f32.mrf.mxu0
    %v937 = vadd.f32 0.0, %v936
    %938 = vdwg.mxu0
    %v939 = vadd.f32 %v861, %v935
    %v940 = vadd.f32 %v862, %v937
    %v941 = vxor.u32 %v939, 2147483648
    %v942 = vmul.f32 %v941, 1.442695
    %v943 = vpow.pop %v942
    %v944 = vadd.f32 %v943, 1.0
    %v945 = vrcp.pop %v944
    %v946 = vmul.f32 1.0, %v945
    %v947 = vtanh.pop %v940
    %v948 = vxor.u32 %v940, 2147483648
    %v949 = vmul.f32 %v948, 1.442695
    %v950 = vpow.pop %v949
    %v951 = vadd.f32 %v950, 1.0
    %v952 = vrcp.pop %v951
    %v953 = vmul.f32 1.0, %v952
    %v954 = vmul.f32 %v946, %v858
    %v955 = vmul.f32 %v946, %v947
    %957 = vrot.lane.b32.xlu0 %v955, 64
    %v958 = vpop.permute.xlu0 %957
    %v960 = vadd.f32 %v954, %v958
    %v961 = vtanh.pop %v960
    %v962 = vmul.f32 %v953, %v961
    %v963 = vsel %vm141, %v400, %v389
    %v964 = vsel %vm142, %v401, %v390
    %966 = vrot.lane.b32.xlu0 %v962, 64
    %v967 = vpop.permute.xlu0 %966
    %v968 = vsel %vm409, %v967, 0
    %970 = vmatprep.subr.mxu0 0.0
    %971 = vmatpush1.msra.mxu0 0.0
    %972 = vmatprep.subr.mxu0 0.0
    %973 = vmatpush1.msra.mxu0 0.0
    %974 = vmatprep.subr.mxu0 0.0
    %975 = vmatpush1.msra.mxu0 0.0
    %976 = vmatprep.subr.mxu0 0.0
    %977 = vmatpush1.msra.mxu0 0.0
    %978 = vmatprep.subr.mxu0 0.0
    %979 = vmatpush1.msra.mxu0 0.0
    %980 = vmatprep.subr.mxu0 0.0
    %981 = vmatpush1.msra.mxu0 0.0
    %982 = vmatprep.subr.mxu0 0.0
    %983 = vmatpush1.msra.mxu0 0.0
    %984 = vmatprep.subr.mxu0 0.0
    %985 = vmatpush1.msra.mxu0 0.0
    %986 = vmatprep.subr.mxu0 %v331
    %987 = vmatpush1.msra.mxu0 %v330
    %988 = vmatprep.subr.mxu0 %v329
    %989 = vmatpush1.msra.mxu0 %v328
    %990 = vmatprep.subr.mxu0 %v327
    %991 = vmatpush1.msra.mxu0 %v326
    %992 = vmatprep.subr.mxu0 %v325
    %993 = vmatpush1.msra.mxu0 %v324
    %994 = vmatprep.subr.mxu0 %v323
    %995 = vmatpush1.msra.mxu0 %v322
    %996 = vmatprep.subr.mxu0 %v321
    %997 = vmatpush1.msra.mxu0 %v320
    %998 = vmatprep.subr.mxu0 %v319
    %999 = vmatpush1.msra.mxu0 %v318
    %1000 = vmatprep.subr.mxu0 %v317
    %1001 = vmatpush1.msra.mxu0 %v316
    %1002 = vmatprep.subr.mxu0 0.0
    %1003 = vmatpush2.msra.mxu0 0.0
    %1004 = vmatprep.subr.mxu0 0.0
    %1005 = vmatpush2.msra.mxu0 0.0
    %1006 = vmatprep.subr.mxu0 0.0
    %1007 = vmatpush2.msra.mxu0 0.0
    %1008 = vmatprep.subr.mxu0 0.0
    %1009 = vmatpush2.msra.mxu0 0.0
    %1010 = vmatprep.subr.mxu0 0.0
    %1011 = vmatpush2.msra.mxu0 0.0
    %1012 = vmatprep.subr.mxu0 0.0
    %1013 = vmatpush2.msra.mxu0 0.0
    %1014 = vmatprep.subr.mxu0 0.0
    %1015 = vmatpush2.msra.mxu0 0.0
    %1016 = vmatprep.subr.mxu0 0.0
    %1017 = vmatpush2.msra.mxu0 0.0
    %1018 = vmatprep.subr.mxu0 0.0
    %1019 = vmatpush2.msra.mxu0 0.0
    %1020 = vmatprep.subr.mxu0 0.0
    %1021 = vmatpush2.msra.mxu0 0.0
    %1022 = vmatprep.subr.mxu0 0.0
    %1023 = vmatpush2.msra.mxu0 0.0
    %1024 = vmatprep.subr.mxu0 0.0
    %1025 = vmatpush2.msra.mxu0 0.0
    %1026 = vmatprep.subr.mxu0 0.0
    %1027 = vmatpush2.msra.mxu0 0.0
    %1028 = vmatprep.subr.mxu0 0.0
    %1029 = vmatpush2.msra.mxu0 0.0
    %1030 = vmatprep.subr.mxu0 0.0
    %1031 = vmatpush2.msra.mxu0 0.0
    %1032 = vmatprep.subr.mxu0 0.0
    %1033 = vmatpush2.msra.mxu0 0.0
    %1034 = vmatprep.mubr.f32.mxu0 0.0
    %1035 = vmatmul.mubr.f32.gmra.mxu0 %v968
    %v1036 = vpop.f32.mrf.mxu0
    %v1037 = vadd.f32 0.0, %v1036
    %v1038 = vpop.f32.mrf.mxu0
    %v1039 = vadd.f32 0.0, %v1038
    %1040 = vdwg.mxu0
    %v1041 = vadd.f32 %v963, %v1037
    %v1042 = vadd.f32 %v964, %v1039
    %v1043 = vxor.u32 %v1041, 2147483648
    %v1044 = vmul.f32 %v1043, 1.442695
    %v1045 = vpow.pop %v1044
    %v1046 = vadd.f32 %v1045, 1.0
    %v1047 = vrcp.pop %v1046
    %v1048 = vmul.f32 1.0, %v1047
    %v1049 = vtanh.pop %v1042
    %v1050 = vxor.u32 %v1042, 2147483648
    %v1051 = vmul.f32 %v1050, 1.442695
    %v1052 = vpow.pop %v1051
    %v1053 = vadd.f32 %v1052, 1.0
    %v1054 = vrcp.pop %v1053
    %v1055 = vmul.f32 1.0, %v1054
    %v1056 = vmul.f32 %v1048, %v960
    %v1057 = vmul.f32 %v1048, %v1049
    %1059 = vrot.lane.b32.xlu0 %v1057, 64
    %v1060 = vpop.permute.xlu0 %1059
    %v1062 = vadd.f32 %v1056, %v1060
    %v1063 = vtanh.pop %v1062
    %v1064 = vmul.f32 %v1055, %v1063
    %v1065 = vsel %vm141, %v352, %v341
    %v1066 = vsel %vm142, %v353, %v342
    %1068 = vrot.lane.b32.xlu0 %v1064, 64
    %v1069 = vpop.permute.xlu0 %1068
    %v1070 = vsel %vm409, %v1069, 0
    %1072 = vmatprep.subr.mxu0 0.0
    %1073 = vmatpush1.msra.mxu0 0.0
    %1074 = vmatprep.subr.mxu0 0.0
    %1075 = vmatpush1.msra.mxu0 0.0
    %1076 = vmatprep.subr.mxu0 0.0
    %1077 = vmatpush1.msra.mxu0 0.0
    %1078 = vmatprep.subr.mxu0 0.0
    %1079 = vmatpush1.msra.mxu0 0.0
    %1080 = vmatprep.subr.mxu0 0.0
    %1081 = vmatpush1.msra.mxu0 0.0
    %1082 = vmatprep.subr.mxu0 0.0
    %1083 = vmatpush1.msra.mxu0 0.0
    %1084 = vmatprep.subr.mxu0 0.0
    %1085 = vmatpush1.msra.mxu0 0.0
    %1086 = vmatprep.subr.mxu0 0.0
    %1087 = vmatpush1.msra.mxu0 0.0
    %1088 = vmatprep.subr.mxu0 %v331
    %1089 = vmatpush1.msra.mxu0 %v330
    %1090 = vmatprep.subr.mxu0 %v329
    %1091 = vmatpush1.msra.mxu0 %v328
    %1092 = vmatprep.subr.mxu0 %v327
    %1093 = vmatpush1.msra.mxu0 %v326
    %1094 = vmatprep.subr.mxu0 %v325
    %1095 = vmatpush1.msra.mxu0 %v324
    %1096 = vmatprep.subr.mxu0 %v323
    %1097 = vmatpush1.msra.mxu0 %v322
    %1098 = vmatprep.subr.mxu0 %v321
    %1099 = vmatpush1.msra.mxu0 %v320
    %1100 = vmatprep.subr.mxu0 %v319
    %1101 = vmatpush1.msra.mxu0 %v318
    %1102 = vmatprep.subr.mxu0 %v317
    %1103 = vmatpush1.msra.mxu0 %v316
    %1104 = vmatprep.subr.mxu0 0.0
    %1105 = vmatpush2.msra.mxu0 0.0
    %1106 = vmatprep.subr.mxu0 0.0
    %1107 = vmatpush2.msra.mxu0 0.0
    %1108 = vmatprep.subr.mxu0 0.0
    %1109 = vmatpush2.msra.mxu0 0.0
    %1110 = vmatprep.subr.mxu0 0.0
    %1111 = vmatpush2.msra.mxu0 0.0
    %1112 = vmatprep.subr.mxu0 0.0
    %1113 = vmatpush2.msra.mxu0 0.0
    %1114 = vmatprep.subr.mxu0 0.0
    %1115 = vmatpush2.msra.mxu0 0.0
    %1116 = vmatprep.subr.mxu0 0.0
    %1117 = vmatpush2.msra.mxu0 0.0
    %1118 = vmatprep.subr.mxu0 0.0
    %1119 = vmatpush2.msra.mxu0 0.0
    %1120 = vmatprep.subr.mxu0 0.0
    %1121 = vmatpush2.msra.mxu0 0.0
    %1122 = vmatprep.subr.mxu0 0.0
    %1123 = vmatpush2.msra.mxu0 0.0
    %1124 = vmatprep.subr.mxu0 0.0
    %1125 = vmatpush2.msra.mxu0 0.0
    %1126 = vmatprep.subr.mxu0 0.0
    %1127 = vmatpush2.msra.mxu0 0.0
    %1128 = vmatprep.subr.mxu0 0.0
    %1129 = vmatpush2.msra.mxu0 0.0
    %1130 = vmatprep.subr.mxu0 0.0
    %1131 = vmatpush2.msra.mxu0 0.0
    %1132 = vmatprep.subr.mxu0 0.0
    %1133 = vmatpush2.msra.mxu0 0.0
    %1134 = vmatprep.subr.mxu0 0.0
    %1135 = vmatpush2.msra.mxu0 0.0
    %1136 = vmatprep.mubr.f32.mxu0 0.0
    %1137 = vmatmul.mubr.f32.gmra.mxu0 %v1070
    %v1138 = vpop.f32.mrf.mxu0
    %v1139 = vadd.f32 0.0, %v1138
    %v1140 = vpop.f32.mrf.mxu0
    %v1141 = vadd.f32 0.0, %v1140
    %1142 = vdwg.mxu0
    %v1143 = vadd.f32 %v1065, %v1139
    %v1144 = vadd.f32 %v1066, %v1141
    %v1145 = vxor.u32 %v1143, 2147483648
    %v1146 = vmul.f32 %v1145, 1.442695
    %v1147 = vpow.pop %v1146
    %v1148 = vadd.f32 %v1147, 1.0
    %v1149 = vrcp.pop %v1148
    %v1150 = vmul.f32 1.0, %v1149
    %v1151 = vtanh.pop %v1144
    %v1152 = vxor.u32 %v1144, 2147483648
    %v1153 = vmul.f32 %v1152, 1.442695
    %v1154 = vpow.pop %v1153
    %v1155 = vadd.f32 %v1154, 1.0
    %v1156 = vrcp.pop %v1155
    %v1157 = vmul.f32 1.0, %v1156
    %v1158 = vmul.f32 %v1150, %v1062
    %v1159 = vmul.f32 %v1150, %v1151
    %1161 = vrot.lane.b32.xlu0 %v1159, 64
    %v1162 = vpop.permute.xlu0 %1161
    %v1164 = vadd.f32 %v1158, %v1162
    %v1165 = vtanh.pop %v1164
    %v1166 = vmul.f32 %v1157, %v1165
    %1169 = vrot.lane.b32.xlu0 %v1166, 64
    %v1170 = vpop.permute.xlu0 %1169
    %v1172 = vsel %vm143, %v408, %v1170
    %v1175 = vsel %vm143, %v535, %v1069
    %v1178 = vsel %vm143, %v661, %v967
    %v1181 = vsel %vm143, %v763, %v865
    %v1182 = vsel %vm143, %v865, %v763
    %v1183 = vsel %vm143, %v967, %v661
    %v1184 = vsel %vm143, %v1069, %v535
    %v1185 = vsel %vm143, %v1170, %v408
    %v1187 = vrot.slane %v1175, 6
    %v1190 = vrot.slane %v1178, 4
    %v1193 = vrot.slane %v1181, 2
    %v1196 = vrot.slane %v1183, 6
    %v1199 = vrot.slane %v1184, 4
    %v1202 = vrot.slane %v1185, 2
    %vm1204 = vcmask 1041408
    %v1205 = vsel %vm1204, %v1172, %v1187
    %vm1206 = vcmask 1043456
    %v1207 = vsel %vm1206, %v1205, %v1190
    %vm1208 = vcmask 1045504
    %v1209 = vsel %vm1208, %v1207, %v1193
    %v1210 = vsel %vm1204, %v1182, %v1196
    %v1211 = vsel %vm1206, %v1210, %v1199
    %v1212 = vsel %vm1208, %v1211, %v1202
    %v1213 = vld [vmem:[#allocation8] sm:$0xff]
    %v1214 = vld [vmem:[#allocation8 + $0x8] sm:$0xff]
    %v1215 = vld [vmem:[#allocation8 + $0x10] sm:$0xff]
    %v1216 = vld [vmem:[#allocation8 + $0x18] sm:$0xff]
    %v1217 = vld [vmem:[#allocation8 + $0x20] sm:$0xff]
    %v1218 = vld [vmem:[#allocation8 + $0x28] sm:$0xff]
    %v1219 = vld [vmem:[#allocation8 + $0x30] sm:$0xff]
    %v1220 = vld [vmem:[#allocation8 + $0x38] sm:$0xff]
    %v1221 = vld [vmem:[#allocation8 + $0x40] sm:$0xff]
    %v1222 = vld [vmem:[#allocation8 + $0x48] sm:$0xff]
    %v1223 = vld [vmem:[#allocation8 + $0x50] sm:$0xff]
    %v1224 = vld [vmem:[#allocation8 + $0x58] sm:$0xff]
    %v1225 = vld [vmem:[#allocation8 + $0x60] sm:$0xff]
    %v1226 = vld [vmem:[#allocation8 + $0x68] sm:$0xff]
    %v1227 = vld [vmem:[#allocation8 + $0x70] sm:$0xff]
    %v1228 = vld [vmem:[#allocation8 + $0x78] sm:$0xff]
    %v1229 = vld [vmem:[%s5] sm:$0x3]
    %v1231 = vlaneseq
    %v1232 = vshrl.u32 %v1231, 7
    %v1233 = vsub.s32 0, %v1232
    %v1234 = vrot.slane %v1229, %v1233
    %v1235 = vlaneseq
    %v1236 = vshrl.u32 %v1235, 7
    %v1237 = vsub.s32 1, %v1236
    %v1238 = vrot.slane %v1229, %v1237
    %v1242 = vsel %vm409, %v1209, 0
    %v1245 = vsel %vm409, %v1212, 0
    %1247 = vmatprep.subr.mxu0 0.0
    %1248 = vmatpush1.msra.mxu0 0.0
    %1249 = vmatprep.subr.mxu0 0.0
    %1250 = vmatpush1.msra.mxu0 0.0
    %1251 = vmatprep.subr.mxu0 0.0
    %1252 = vmatpush1.msra.mxu0 0.0
    %1253 = vmatprep.subr.mxu0 0.0
    %1254 = vmatpush1.msra.mxu0 0.0
    %1255 = vmatprep.subr.mxu0 0.0
    %1256 = vmatpush1.msra.mxu0 0.0
    %1257 = vmatprep.subr.mxu0 0.0
    %1258 = vmatpush1.msra.mxu0 0.0
    %1259 = vmatprep.subr.mxu0 0.0
    %1260 = vmatpush1.msra.mxu0 0.0
    %1261 = vmatprep.subr.mxu0 0.0
    %1262 = vmatpush1.msra.mxu0 0.0
    %1263 = vmatprep.subr.mxu0 %v1228
    %1264 = vmatpush1.msra.mxu0 %v1227
    %1265 = vmatprep.subr.mxu0 %v1226
    %1266 = vmatpush1.msra.mxu0 %v1225
    %1267 = vmatprep.subr.mxu0 %v1224
    %1268 = vmatpush1.msra.mxu0 %v1223
    %1269 = vmatprep.subr.mxu0 %v1222
    %1270 = vmatpush1.msra.mxu0 %v1221
    %1271 = vmatprep.subr.mxu0 %v1220
    %1272 = vmatpush1.msra.mxu0 %v1219
    %1273 = vmatprep.subr.mxu0 %v1218
    %1274 = vmatpush1.msra.mxu0 %v1217
    %1275 = vmatprep.subr.mxu0 %v1216
    %1276 = vmatpush1.msra.mxu0 %v1215
    %1277 = vmatprep.subr.mxu0 %v1214
    %1278 = vmatpush1.msra.mxu0 %v1213
    %1279 = vmatprep.subr.mxu0 0.0
    %1280 = vmatpush2.msra.mxu0 0.0
    %1281 = vmatprep.subr.mxu0 0.0
    %1282 = vmatpush2.msra.mxu0 0.0
    %1283 = vmatprep.subr.mxu0 0.0
    %1284 = vmatpush2.msra.mxu0 0.0
    %1285 = vmatprep.subr.mxu0 0.0
    %1286 = vmatpush2.msra.mxu0 0.0
    %1287 = vmatprep.subr.mxu0 0.0
    %1288 = vmatpush2.msra.mxu0 0.0
    %1289 = vmatprep.subr.mxu0 0.0
    %1290 = vmatpush2.msra.mxu0 0.0
    %1291 = vmatprep.subr.mxu0 0.0
    %1292 = vmatpush2.msra.mxu0 0.0
    %1293 = vmatprep.subr.mxu0 0.0
    %1294 = vmatpush2.msra.mxu0 0.0
    %1295 = vmatprep.subr.mxu0 0.0
    %1296 = vmatpush2.msra.mxu0 0.0
    %1297 = vmatprep.subr.mxu0 0.0
    %1298 = vmatpush2.msra.mxu0 0.0
    %1299 = vmatprep.subr.mxu0 0.0
    %1300 = vmatpush2.msra.mxu0 0.0
    %1301 = vmatprep.subr.mxu0 0.0
    %1302 = vmatpush2.msra.mxu0 0.0
    %1303 = vmatprep.subr.mxu0 0.0
    %1304 = vmatpush2.msra.mxu0 0.0
    %1305 = vmatprep.subr.mxu0 0.0
    %1306 = vmatpush2.msra.mxu0 0.0
    %1307 = vmatprep.subr.mxu0 0.0
    %1308 = vmatpush2.msra.mxu0 0.0
    %1309 = vmatprep.subr.mxu0 0.0
    %1310 = vmatpush2.msra.mxu0 0.0
    %1311 = vmatprep.mubr.f32.mxu0 0.0
    %1312 = vmatmul.mubr.f32.gmra.mxu0 %v1242
    %v1313 = vpop.f32.mrf.mxu0
    %v1314 = vadd.f32 %v1234, %v1313
    %v1315 = vpop.f32.mrf.mxu0
    %v1316 = vadd.f32 %v1238, %v1315
    %1317 = vmatprep.mubr.f32.mxu0 0.0
    %1318 = vmatmul.mubr.f32.gmra.mxu0 %v1245
    %v1319 = vpop.f32.mrf.mxu0
    %v1320 = vadd.f32 %v1234, %v1319
    %v1321 = vpop.f32.mrf.mxu0
    %v1322 = vadd.f32 %v1238, %v1321
    %1323 = vdwg.mxu0
    %v1326 = vcombine.low %v1314, %v1316
    %v1328 = vunpack.c.l.s4 1983009808
    %v1329 = vunpack.c.0.s8 %v1328
    %v1330 = vlaneseq
    %v1331 = vshrl.u32 %v1330, 7
    %v1332 = vsub.s32 %v1329, %v1331
    %v1333 = vrot.slane %v1326, %v1332
    %1335 = vst [vmem:[#allocation2] sm:$0xf] %v1333
    %v1336 = vcombine.high %v1333, %v1333
    %1338 = vst [vmem:[%s267] sm:$0xf] %v1336
    %v1339 = vcombine.high %v1314, %v1316
    %v1341 = vunpack.c.l.s4 1983009808
    %v1342 = vunpack.c.0.s8 %v1341
    %v1343 = vlaneseq
    %v1344 = vshrl.u32 %v1343, 7
    %v1345 = vsub.s32 %v1342, %v1344
    %v1346 = vrot.slane %v1339, %v1345
    %1348 = vst [vmem:[%s278] sm:$0xf] %v1346
    %v1349 = vcombine.high %v1346, %v1346
    %1351 = vst [vmem:[%s282] sm:$0xf] %v1349
    %v1354 = vcombine.low %v1320, %v1322
    %v1356 = vunpack.c.l.s4 1983009808
    %v1357 = vunpack.c.0.s8 %v1356
    %v1358 = vlaneseq
    %v1359 = vshrl.u32 %v1358, 7
    %v1360 = vsub.s32 %v1357, %v1359
    %v1361 = vrot.slane %v1354, %v1360
    %1363 = vst [vmem:[%s295] sm:$0xf] %v1361
    %v1364 = vcombine.high %v1361, %v1361
    %1366 = vst [vmem:[%s299] sm:$0xf] %v1364
    %v1367 = vcombine.high %v1320, %v1322
    %v1369 = vunpack.c.l.s4 1983009808
    %v1370 = vunpack.c.0.s8 %v1369
    %v1371 = vlaneseq
    %v1372 = vshrl.u32 %v1371, 7
    %v1373 = vsub.s32 %v1370, %v1372
    %v1374 = vrot.slane %v1367, %v1373
    %1376 = vst [vmem:[%s310] sm:$0xf] %v1374
    %v1377 = vcombine.high %v1374, %v1374
    %1379 = vst [vmem:[%s314] sm:$0xf] %v1377
    %v1380 = vld [vmem:[#allocation10] sm:$0xff]
    %v1381 = vld [vmem:[#allocation10 + $0x8] sm:$0xff]
    %v1382 = vld [vmem:[#allocation10 + $0x10] sm:$0xff]
    %v1383 = vld [vmem:[#allocation10 + $0x18] sm:$0xff]
    %v1384 = vld [vmem:[#allocation10 + $0x20] sm:$0xff]
    %v1385 = vld [vmem:[#allocation10 + $0x28] sm:$0xff]
    %v1386 = vld [vmem:[#allocation10 + $0x30] sm:$0xff]
    %v1387 = vld [vmem:[#allocation10 + $0x38] sm:$0xff]
    %v1388 = vld [vmem:[#allocation10 + $0x40] sm:$0xff]
    %v1389 = vld [vmem:[#allocation10 + $0x48] sm:$0xff]
    %v1390 = vld [vmem:[#allocation10 + $0x50] sm:$0xff]
    %v1391 = vld [vmem:[#allocation10 + $0x58] sm:$0xff]
    %v1392 = vld [vmem:[#allocation10 + $0x60] sm:$0xff]
    %v1393 = vld [vmem:[#allocation10 + $0x68] sm:$0xff]
    %v1394 = vld [vmem:[#allocation10 + $0x70] sm:$0xff]
    %v1395 = vld [vmem:[#allocation10 + $0x78] sm:$0xff]
    %v1396 = vld [vmem:[#allocation2] sm:$0xf]
    %v1397 = vld [vmem:[%s314] sm:$0xf]
    %v1400 = vunpack.c.l.s4 1983009808
    %v1401 = vunpack.c.0.s8 %v1400
    %v1402 = vlaneseq
    %v1403 = vshrl.u32 %v1402, 7
    %v1404 = vsub.s32 %v1401, %v1403
    %v1405 = vrot.slane %v1396, %v1404
    %v1406 = vcombine.high %v1405, %v1405
    %v1411 = vunpack.c.l.s4 1983009808
    %v1412 = vunpack.c.0.s8 %v1411
    %v1413 = vlaneseq
    %v1414 = vshrl.u32 %v1413, 7
    %v1415 = vsub.s32 %v1412, %v1414
    %v1416 = vrot.slane %v1397, %v1415
    %v1417 = vcombine.high %v1416, %v1416
    %v1420 = vsel %vm141, %v1405, %v1416
    %v1421 = vsel %vm142, %v1406, %v1417
    %v1422 = vxor.u32 %v1420, 2147483648
    %v1423 = vmul.f32 %v1422, 1.442695
    %v1424 = vpow.pop %v1423
    %v1425 = vadd.f32 %v1424, 1.0
    %v1426 = vrcp.pop %v1425
    %v1427 = vmul.f32 1.0, %v1426
    %v1428 = vtanh.pop %v1421
    %v1429 = vxor.u32 %v1421, 2147483648
    %v1430 = vmul.f32 %v1429, 1.442695
    %v1431 = vpow.pop %v1430
    %v1432 = vadd.f32 %v1431, 1.0
    %v1433 = vrcp.pop %v1432
    %v1434 = vmul.f32 1.0, %v1433
    %v1435 = vmul.f32 %v1427, 0.0
    %v1436 = vmul.f32 %v1427, %v1428
    %1438 = vrot.lane.b32.xlu0 %v1436, 64
    %v1439 = vpop.permute.xlu0 %1438
    %v1441 = vadd.f32 %v1435, %v1439
    %v1442 = vtanh.pop %v1441
    %v1443 = vmul.f32 %v1434, %v1442
    %v1444 = vld [vmem:[%s267] sm:$0xf]
    %v1445 = vld [vmem:[%s310] sm:$0xf]
    %v1448 = vunpack.c.l.s4 1983009808
    %v1449 = vunpack.c.0.s8 %v1448
    %v1450 = vlaneseq
    %v1451 = vshrl.u32 %v1450, 7
    %v1452 = vsub.s32 %v1449, %v1451
    %v1453 = vrot.slane %v1444, %v1452
    %v1454 = vcombine.high %v1453, %v1453
    %v1459 = vunpack.c.l.s4 1983009808
    %v1460 = vunpack.c.0.s8 %v1459
    %v1461 = vlaneseq
    %v1462 = vshrl.u32 %v1461, 7
    %v1463 = vsub.s32 %v1460, %v1462
    %v1464 = vrot.slane %v1445, %v1463
    %v1465 = vcombine.high %v1464, %v1464
    %v1468 = vsel %vm141, %v1453, %v1464
    %v1469 = vsel %vm142, %v1454, %v1465
    %1471 = vrot.lane.b32.xlu0 %v1443, 64
    %v1472 = vpop.permute.xlu0 %1471
    %v1473 = vsel %vm409, %v1472, 0
    %1475 = vmatprep.subr.mxu0 0.0
    %1476 = vmatpush1.msra.mxu0 0.0
    %1477 = vmatprep.subr.mxu0 0.0
    %1478 = vmatpush1.msra.mxu0 0.0
    %1479 = vmatprep.subr.mxu0 0.0
    %1480 = vmatpush1.msra.mxu0 0.0
    %1481 = vmatprep.subr.mxu0 0.0
    %1482 = vmatpush1.msra.mxu0 0.0
    %1483 = vmatprep.subr.mxu0 0.0
    %1484 = vmatpush1.msra.mxu0 0.0
    %1485 = vmatprep.subr.mxu0 0.0
    %1486 = vmatpush1.msra.mxu0 0.0
    %1487 = vmatprep.subr.mxu0 0.0
    %1488 = vmatpush1.msra.mxu0 0.0
    %1489 = vmatprep.subr.mxu0 0.0
    %1490 = vmatpush1.msra.mxu0 0.0
    %1491 = vmatprep.subr.mxu0 %v1395
    %1492 = vmatpush1.msra.mxu0 %v1394
    %1493 = vmatprep.subr.mxu0 %v1393
    %1494 = vmatpush1.msra.mxu0 %v1392
    %1495 = vmatprep.subr.mxu0 %v1391
    %1496 = vmatpush1.msra.mxu0 %v1390
    %1497 = vmatprep.subr.mxu0 %v1389
    %1498 = vmatpush1.msra.mxu0 %v1388
    %1499 = vmatprep.subr.mxu0 %v1387
    %1500 = vmatpush1.msra.mxu0 %v1386
    %1501 = vmatprep.subr.mxu0 %v1385
    %1502 = vmatpush1.msra.mxu0 %v1384
    %1503 = vmatprep.subr.mxu0 %v1383
    %1504 = vmatpush1.msra.mxu0 %v1382
    %1505 = vmatprep.subr.mxu0 %v1381
    %1506 = vmatpush1.msra.mxu0 %v1380
    %1507 = vmatprep.subr.mxu0 0.0
    %1508 = vmatpush2.msra.mxu0 0.0
    %1509 = vmatprep.subr.mxu0 0.0
    %1510 = vmatpush2.msra.mxu0 0.0
    %1511 = vmatprep.subr.mxu0 0.0
    %1512 = vmatpush2.msra.mxu0 0.0
    %1513 = vmatprep.subr.mxu0 0.0
    %1514 = vmatpush2.msra.mxu0 0.0
    %1515 = vmatprep.subr.mxu0 0.0
    %1516 = vmatpush2.msra.mxu0 0.0
    %1517 = vmatprep.subr.mxu0 0.0
    %1518 = vmatpush2.msra.mxu0 0.0
    %1519 = vmatprep.subr.mxu0 0.0
    %1520 = vmatpush2.msra.mxu0 0.0
    %1521 = vmatprep.subr.mxu0 0.0
    %1522 = vmatpush2.msra.mxu0 0.0
    %1523 = vmatprep.subr.mxu0 0.0
    %1524 = vmatpush2.msra.mxu0 0.0
    %1525 = vmatprep.subr.mxu0 0.0
    %1526 = vmatpush2.msra.mxu0 0.0
    %1527 = vmatprep.subr.mxu0 0.0
    %1528 = vmatpush2.msra.mxu0 0.0
    %1529 = vmatprep.subr.mxu0 0.0
    %1530 = vmatpush2.msra.mxu0 0.0
    %1531 = vmatprep.subr.mxu0 0.0
    %1532 = vmatpush2.msra.mxu0 0.0
    %1533 = vmatprep.subr.mxu0 0.0
    %1534 = vmatpush2.msra.mxu0 0.0
    %1535 = vmatprep.subr.mxu0 0.0
    %1536 = vmatpush2.msra.mxu0 0.0
    %1537 = vmatprep.subr.mxu0 0.0
    %1538 = vmatpush2.msra.mxu0 0.0
    %1539 = vmatprep.mubr.f32.mxu0 0.0
    %1540 = vmatmul.mubr.f32.gmra.mxu0 %v1473
    %v1541 = vpop.f32.mrf.mxu0
    %v1542 = vadd.f32 0.0, %v1541
    %v1543 = vpop.f32.mrf.mxu0
    %v1544 = vadd.f32 0.0, %v1543
    %1545 = vdwg.mxu0
    %v1546 = vadd.f32 %v1468, %v1542
    %v1547 = vadd.f32 %v1469, %v1544
    %v1548 = vxor.u32 %v1546, 2147483648
    %v1549 = vmul.f32 %v1548, 1.442695
    %v1550 = vpow.pop %v1549
    %v1551 = vadd.f32 %v1550, 1.0
    %v1552 = vrcp.pop %v1551
    %v1553 = vmul.f32 1.0, %v1552
    %v1554 = vtanh.pop %v1547
    %v1555 = vxor.u32 %v1547, 2147483648
    %v1556 = vmul.f32 %v1555, 1.442695
    %v1557 = vpow.pop %v1556
    %v1558 = vadd.f32 %v1557, 1.0
    %v1559 = vrcp.pop %v1558
    %v1560 = vmul.f32 1.0, %v1559
    %v1561 = vmul.f32 %v1553, %v1441
    %v1562 = vmul.f32 %v1553, %v1554
    %1564 = vrot.lane.b32.xlu0 %v1562, 64
    %v1565 = vpop.permute.xlu0 %1564
    %v1567 = vadd.f32 %v1561, %v1565
    %v1568 = vtanh.pop %v1567
    %v1569 = vmul.f32 %v1560, %v1568
    %v1570 = vld [vmem:[%s278] sm:$0xf]
    %v1571 = vld [vmem:[%s299] sm:$0xf]
    %v1574 = vunpack.c.l.s4 1983009808
    %v1575 = vunpack.c.0.s8 %v1574
    %v1576 = vlaneseq
    %v1577 = vshrl.u32 %v1576, 7
    %v1578 = vsub.s32 %v1575, %v1577
    %v1579 = vrot.slane %v1570, %v1578
    %v1580 = vcombine.high %v1579, %v1579
    %v1585 = vunpack.c.l.s4 1983009808
    %v1586 = vunpack.c.0.s8 %v1585
    %v1587 = vlaneseq
    %v1588 = vshrl.u32 %v1587, 7
    %v1589 = vsub.s32 %v1586, %v1588
    %v1590 = vrot.slane %v1571, %v1589
    %v1591 = vcombine.high %v1590, %v1590
    %v1594 = vsel %vm141, %v1579, %v1590
    %v1595 = vsel %vm142, %v1580, %v1591
    %1597 = vrot.lane.b32.xlu0 %v1569, 64
    %v1598 = vpop.permute.xlu0 %1597
    %v1599 = vsel %vm409, %v1598, 0
    %1601 = vmatprep.subr.mxu0 0.0
    %1602 = vmatpush1.msra.mxu0 0.0
    %1603 = vmatprep.subr.mxu0 0.0
    %1604 = vmatpush1.msra.mxu0 0.0
    %1605 = vmatprep.subr.mxu0 0.0
    %1606 = vmatpush1.msra.mxu0 0.0
    %1607 = vmatprep.subr.mxu0 0.0
    %1608 = vmatpush1.msra.mxu0 0.0
    %1609 = vmatprep.subr.mxu0 0.0
    %1610 = vmatpush1.msra.mxu0 0.0
    %1611 = vmatprep.subr.mxu0 0.0
    %1612 = vmatpush1.msra.mxu0 0.0
    %1613 = vmatprep.subr.mxu0 0.0
    %1614 = vmatpush1.msra.mxu0 0.0
    %1615 = vmatprep.subr.mxu0 0.0
    %1616 = vmatpush1.msra.mxu0 0.0
    %1617 = vmatprep.subr.mxu0 %v1395
    %1618 = vmatpush1.msra.mxu0 %v1394
    %1619 = vmatprep.subr.mxu0 %v1393
    %1620 = vmatpush1.msra.mxu0 %v1392
    %1621 = vmatprep.subr.mxu0 %v1391
    %1622 = vmatpush1.msra.mxu0 %v1390
    %1623 = vmatprep.subr.mxu0 %v1389
    %1624 = vmatpush1.msra.mxu0 %v1388
    %1625 = vmatprep.subr.mxu0 %v1387
    %1626 = vmatpush1.msra.mxu0 %v1386
    %1627 = vmatprep.subr.mxu0 %v1385
    %1628 = vmatpush1.msra.mxu0 %v1384
    %1629 = vmatprep.subr.mxu0 %v1383
    %1630 = vmatpush1.msra.mxu0 %v1382
    %1631 = vmatprep.subr.mxu0 %v1381
    %1632 = vmatpush1.msra.mxu0 %v1380
    %1633 = vmatprep.subr.mxu0 0.0
    %1634 = vmatpush2.msra.mxu0 0.0
    %1635 = vmatprep.subr.mxu0 0.0
    %1636 = vmatpush2.msra.mxu0 0.0
    %1637 = vmatprep.subr.mxu0 0.0
    %1638 = vmatpush2.msra.mxu0 0.0
    %1639 = vmatprep.subr.mxu0 0.0
    %1640 = vmatpush2.msra.mxu0 0.0
    %1641 = vmatprep.subr.mxu0 0.0
    %1642 = vmatpush2.msra.mxu0 0.0
    %1643 = vmatprep.subr.mxu0 0.0
    %1644 = vmatpush2.msra.mxu0 0.0
    %1645 = vmatprep.subr.mxu0 0.0
    %1646 = vmatpush2.msra.mxu0 0.0
    %1647 = vmatprep.subr.mxu0 0.0
    %1648 = vmatpush2.msra.mxu0 0.0
    %1649 = vmatprep.subr.mxu0 0.0
    %1650 = vmatpush2.msra.mxu0 0.0
    %1651 = vmatprep.subr.mxu0 0.0
    %1652 = vmatpush2.msra.mxu0 0.0
    %1653 = vmatprep.subr.mxu0 0.0
    %1654 = vmatpush2.msra.mxu0 0.0
    %1655 = vmatprep.subr.mxu0 0.0
    %1656 = vmatpush2.msra.mxu0 0.0
    %1657 = vmatprep.subr.mxu0 0.0
    %1658 = vmatpush2.msra.mxu0 0.0
    %1659 = vmatprep.subr.mxu0 0.0
    %1660 = vmatpush2.msra.mxu0 0.0
    %1661 = vmatprep.subr.mxu0 0.0
    %1662 = vmatpush2.msra.mxu0 0.0
    %1663 = vmatprep.subr.mxu0 0.0
    %1664 = vmatpush2.msra.mxu0 0.0
    %1665 = vmatprep.mubr.f32.mxu0 0.0
    %1666 = vmatmul.mubr.f32.gmra.mxu0 %v1599
    %v1667 = vpop.f32.mrf.mxu0
    %v1668 = vadd.f32 0.0, %v1667
    %v1669 = vpop.f32.mrf.mxu0
    %v1670 = vadd.f32 0.0, %v1669
    %1671 = vdwg.mxu0
    %v1672 = vadd.f32 %v1594, %v1668
    %v1673 = vadd.f32 %v1595, %v1670
    %v1674 = vxor.u32 %v1672, 2147483648
    %v1675 = vmul.f32 %v1674, 1.442695
    %v1676 = vpow.pop %v1675
    %v1677 = vadd.f32 %v1676, 1.0
    %v1678 = vrcp.pop %v1677
    %v1679 = vmul.f32 1.0, %v1678
    %v1680 = vtanh.pop %v1673
    %v1681 = vxor.u32 %v1673, 2147483648
    %v1682 = vmul.f32 %v1681, 1.442695
    %v1683 = vpow.pop %v1682
    %v1684 = vadd.f32 %v1683, 1.0
    %v1685 = vrcp.pop %v1684
    %v1686 = vmul.f32 1.0, %v1685
    %v1687 = vmul.f32 %v1679, %v1567
    %v1688 = vmul.f32 %v1679, %v1680
    %1690 = vrot.lane.b32.xlu0 %v1688, 64
    %v1691 = vpop.permute.xlu0 %1690
    %v1693 = vadd.f32 %v1687, %v1691
    %v1694 = vtanh.pop %v1693
    %v1695 = vmul.f32 %v1686, %v1694
    %v1696 = vld [vmem:[%s282] sm:$0xf]
    %v1697 = vld [vmem:[%s295] sm:$0xf]
    %v1700 = vunpack.c.l.s4 1983009808
    %v1701 = vunpack.c.0.s8 %v1700
    %v1702 = vlaneseq
    %v1703 = vshrl.u32 %v1702, 7
    %v1704 = vsub.s32 %v1701, %v1703
    %v1705 = vrot.slane %v1696, %v1704
    %v1706 = vcombine.high %v1705, %v1705
    %v1711 = vunpack.c.l.s4 1983009808
    %v1712 = vunpack.c.0.s8 %v1711
    %v1713 = vlaneseq
    %v1714 = vshrl.u32 %v1713, 7
    %v1715 = vsub.s32 %v1712, %v1714
    %v1716 = vrot.slane %v1697, %v1715
    %v1717 = vcombine.high %v1716, %v1716
    %v1720 = vsel %vm141, %v1705, %v1716
    %v1721 = vsel %vm142, %v1706, %v1717
    %1723 = vrot.lane.b32.xlu0 %v1695, 64
    %v1724 = vpop.permute.xlu0 %1723
    %v1725 = vsel %vm409, %v1724, 0
    %1727 = vmatprep.subr.mxu0 0.0
    %1728 = vmatpush1.msra.mxu0 0.0
    %1729 = vmatprep.subr.mxu0 0.0
    %1730 = vmatpush1.msra.mxu0 0.0
    %1731 = vmatprep.subr.mxu0 0.0
    %1732 = vmatpush1.msra.mxu0 0.0
    %1733 = vmatprep.subr.mxu0 0.0
    %1734 = vmatpush1.msra.mxu0 0.0
    %1735 = vmatprep.subr.mxu0 0.0
    %1736 = vmatpush1.msra.mxu0 0.0
    %1737 = vmatprep.subr.mxu0 0.0
    %1738 = vmatpush1.msra.mxu0 0.0
    %1739 = vmatprep.subr.mxu0 0.0
    %1740 = vmatpush1.msra.mxu0 0.0
    %1741 = vmatprep.subr.mxu0 0.0
    %1742 = vmatpush1.msra.mxu0 0.0
    %1743 = vmatprep.subr.mxu0 %v1395
    %1744 = vmatpush1.msra.mxu0 %v1394
    %1745 = vmatprep.subr.mxu0 %v1393
    %1746 = vmatpush1.msra.mxu0 %v1392
    %1747 = vmatprep.subr.mxu0 %v1391
    %1748 = vmatpush1.msra.mxu0 %v1390
    %1749 = vmatprep.subr.mxu0 %v1389
    %1750 = vmatpush1.msra.mxu0 %v1388
    %1751 = vmatprep.subr.mxu0 %v1387
    %1752 = vmatpush1.msra.mxu0 %v1386
    %1753 = vmatprep.subr.mxu0 %v1385
    %1754 = vmatpush1.msra.mxu0 %v1384
    %1755 = vmatprep.subr.mxu0 %v1383
    %1756 = vmatpush1.msra.mxu0 %v1382
    %1757 = vmatprep.subr.mxu0 %v1381
    %1758 = vmatpush1.msra.mxu0 %v1380
    %1759 = vmatprep.subr.mxu0 0.0
    %1760 = vmatpush2.msra.mxu0 0.0
    %1761 = vmatprep.subr.mxu0 0.0
    %1762 = vmatpush2.msra.mxu0 0.0
    %1763 = vmatprep.subr.mxu0 0.0
    %1764 = vmatpush2.msra.mxu0 0.0
    %1765 = vmatprep.subr.mxu0 0.0
    %1766 = vmatpush2.msra.mxu0 0.0
    %1767 = vmatprep.subr.mxu0 0.0
    %1768 = vmatpush2.msra.mxu0 0.0
    %1769 = vmatprep.subr.mxu0 0.0
    %1770 = vmatpush2.msra.mxu0 0.0
    %1771 = vmatprep.subr.mxu0 0.0
    %1772 = vmatpush2.msra.mxu0 0.0
    %1773 = vmatprep.subr.mxu0 0.0
    %1774 = vmatpush2.msra.mxu0 0.0
    %1775 = vmatprep.subr.mxu0 0.0
    %1776 = vmatpush2.msra.mxu0 0.0
    %1777 = vmatprep.subr.mxu0 0.0
    %1778 = vmatpush2.msra.mxu0 0.0
    %1779 = vmatprep.subr.mxu0 0.0
    %1780 = vmatpush2.msra.mxu0 0.0
    %1781 = vmatprep.subr.mxu0 0.0
    %1782 = vmatpush2.msra.mxu0 0.0
    %1783 = vmatprep.subr.mxu0 0.0
    %1784 = vmatpush2.msra.mxu0 0.0
    %1785 = vmatprep.subr.mxu0 0.0
    %1786 = vmatpush2.msra.mxu0 0.0
    %1787 = vmatprep.subr.mxu0 0.0
    %1788 = vmatpush2.msra.mxu0 0.0
    %1789 = vmatprep.subr.mxu0 0.0
    %1790 = vmatpush2.msra.mxu0 0.0
    %1791 = vmatprep.mubr.f32.mxu0 0.0
    %1792 = vmatmul.mubr.f32.gmra.mxu0 %v1725
    %v1793 = vpop.f32.mrf.mxu0
    %v1794 = vadd.f32 0.0, %v1793
    %v1795 = vpop.f32.mrf.mxu0
    %v1796 = vadd.f32 0.0, %v1795
    %1797 = vdwg.mxu0
    %v1798 = vadd.f32 %v1720, %v1794
    %v1799 = vadd.f32 %v1721, %v1796
    %v1800 = vxor.u32 %v1798, 2147483648
    %v1801 = vmul.f32 %v1800, 1.442695
    %v1802 = vpow.pop %v1801
    %v1803 = vadd.f32 %v1802, 1.0
    %v1804 = vrcp.pop %v1803
    %v1805 = vmul.f32 1.0, %v1804
    %v1806 = vtanh.pop %v1799
    %v1807 = vxor.u32 %v1799, 2147483648
    %v1808 = vmul.f32 %v1807, 1.442695
    %v1809 = vpow.pop %v1808
    %v1810 = vadd.f32 %v1809, 1.0
    %v1811 = vrcp.pop %v1810
    %v1812 = vmul.f32 1.0, %v1811
    %v1813 = vmul.f32 %v1805, %v1693
    %v1814 = vmul.f32 %v1805, %v1806
    %1816 = vrot.lane.b32.xlu0 %v1814, 64
    %v1817 = vpop.permute.xlu0 %1816
    %v1819 = vadd.f32 %v1813, %v1817
    %v1820 = vtanh.pop %v1819
    %v1821 = vmul.f32 %v1812, %v1820
    %v1822 = vsel %vm141, %v1716, %v1705
    %v1823 = vsel %vm142, %v1717, %v1706
    %1825 = vrot.lane.b32.xlu0 %v1821, 64
    %v1826 = vpop.permute.xlu0 %1825
    %v1827 = vsel %vm409, %v1826, 0
    %1829 = vmatprep.subr.mxu0 0.0
    %1830 = vmatpush1.msra.mxu0 0.0
    %1831 = vmatprep.subr.mxu0 0.0
    %1832 = vmatpush1.msra.mxu0 0.0
    %1833 = vmatprep.subr.mxu0 0.0
    %1834 = vmatpush1.msra.mxu0 0.0
    %1835 = vmatprep.subr.mxu0 0.0
    %1836 = vmatpush1.msra.mxu0 0.0
    %1837 = vmatprep.subr.mxu0 0.0
    %1838 = vmatpush1.msra.mxu0 0.0
    %1839 = vmatprep.subr.mxu0 0.0
    %1840 = vmatpush1.msra.mxu0 0.0
    %1841 = vmatprep.subr.mxu0 0.0
    %1842 = vmatpush1.msra.mxu0 0.0
    %1843 = vmatprep.subr.mxu0 0.0
    %1844 = vmatpush1.msra.mxu0 0.0
    %1845 = vmatprep.subr.mxu0 %v1395
    %1846 = vmatpush1.msra.mxu0 %v1394
    %1847 = vmatprep.subr.mxu0 %v1393
    %1848 = vmatpush1.msra.mxu0 %v1392
    %1849 = vmatprep.subr.mxu0 %v1391
    %1850 = vmatpush1.msra.mxu0 %v1390
    %1851 = vmatprep.subr.mxu0 %v1389
    %1852 = vmatpush1.msra.mxu0 %v1388
    %1853 = vmatprep.subr.mxu0 %v1387
    %1854 = vmatpush1.msra.mxu0 %v1386
    %1855 = vmatprep.subr.mxu0 %v1385
    %1856 = vmatpush1.msra.mxu0 %v1384
    %1857 = vmatprep.subr.mxu0 %v1383
    %1858 = vmatpush1.msra.mxu0 %v1382
    %1859 = vmatprep.subr.mxu0 %v1381
    %1860 = vmatpush1.msra.mxu0 %v1380
    %1861 = vmatprep.subr.mxu0 0.0
    %1862 = vmatpush2.msra.mxu0 0.0
    %1863 = vmatprep.subr.mxu0 0.0
    %1864 = vmatpush2.msra.mxu0 0.0
    %1865 = vmatprep.subr.mxu0 0.0
    %1866 = vmatpush2.msra.mxu0 0.0
    %1867 = vmatprep.subr.mxu0 0.0
    %1868 = vmatpush2.msra.mxu0 0.0
    %1869 = vmatprep.subr.mxu0 0.0
    %1870 = vmatpush2.msra.mxu0 0.0
    %1871 = vmatprep.subr.mxu0 0.0
    %1872 = vmatpush2.msra.mxu0 0.0
    %1873 = vmatprep.subr.mxu0 0.0
    %1874 = vmatpush2.msra.mxu0 0.0
    %1875 = vmatprep.subr.mxu0 0.0
    %1876 = vmatpush2.msra.mxu0 0.0
    %1877 = vmatprep.subr.mxu0 0.0
    %1878 = vmatpush2.msra.mxu0 0.0
    %1879 = vmatprep.subr.mxu0 0.0
    %1880 = vmatpush2.msra.mxu0 0.0
    %1881 = vmatprep.subr.mxu0 0.0
    %1882 = vmatpush2.msra.mxu0 0.0
    %1883 = vmatprep.subr.mxu0 0.0
    %1884 = vmatpush2.msra.mxu0 0.0
    %1885 = vmatprep.subr.mxu0 0.0
    %1886 = vmatpush2.msra.mxu0 0.0
    %1887 = vmatprep.subr.mxu0 0.0
    %1888 = vmatpush2.msra.mxu0 0.0
    %1889 = vmatprep.subr.mxu0 0.0
    %1890 = vmatpush2.msra.mxu0 0.0
    %1891 = vmatprep.subr.mxu0 0.0
    %1892 = vmatpush2.msra.mxu0 0.0
    %1893 = vmatprep.mubr.f32.mxu0 0.0
    %1894 = vmatmul.mubr.f32.gmra.mxu0 %v1827
    %v1895 = vpop.f32.mrf.mxu0
    %v1896 = vadd.f32 0.0, %v1895
    %v1897 = vpop.f32.mrf.mxu0
    %v1898 = vadd.f32 0.0, %v1897
    %1899 = vdwg.mxu0
    %v1900 = vadd.f32 %v1822, %v1896
    %v1901 = vadd.f32 %v1823, %v1898
    %v1902 = vxor.u32 %v1900, 2147483648
    %v1903 = vmul.f32 %v1902, 1.442695
    %v1904 = vpow.pop %v1903
    %v1905 = vadd.f32 %v1904, 1.0
    %v1906 = vrcp.pop %v1905
    %v1907 = vmul.f32 1.0, %v1906
    %v1908 = vtanh.pop %v1901
    %v1909 = vxor.u32 %v1901, 2147483648
    %v1910 = vmul.f32 %v1909, 1.442695
    %v1911 = vpow.pop %v1910
    %v1912 = vadd.f32 %v1911, 1.0
    %v1913 = vrcp.pop %v1912
    %v1914 = vmul.f32 1.0, %v1913
    %v1915 = vmul.f32 %v1907, %v1819
    %v1916 = vmul.f32 %v1907, %v1908
    %1918 = vrot.lane.b32.xlu0 %v1916, 64
    %v1919 = vpop.permute.xlu0 %1918
    %v1921 = vadd.f32 %v1915, %v1919
    %v1922 = vtanh.pop %v1921
    %v1923 = vmul.f32 %v1914, %v1922
    %v1924 = vsel %vm141, %v1590, %v1579
    %v1925 = vsel %vm142, %v1591, %v1580
    %1927 = vrot.lane.b32.xlu0 %v1923, 64
    %v1928 = vpop.permute.xlu0 %1927
    %v1929 = vsel %vm409, %v1928, 0
    %1931 = vmatprep.subr.mxu0 0.0
    %1932 = vmatpush1.msra.mxu0 0.0
    %1933 = vmatprep.subr.mxu0 0.0
    %1934 = vmatpush1.msra.mxu0 0.0
    %1935 = vmatprep.subr.mxu0 0.0
    %1936 = vmatpush1.msra.mxu0 0.0
    %1937 = vmatprep.subr.mxu0 0.0
    %1938 = vmatpush1.msra.mxu0 0.0
    %1939 = vmatprep.subr.mxu0 0.0
    %1940 = vmatpush1.msra.mxu0 0.0
    %1941 = vmatprep.subr.mxu0 0.0
    %1942 = vmatpush1.msra.mxu0 0.0
    %1943 = vmatprep.subr.mxu0 0.0
    %1944 = vmatpush1.msra.mxu0 0.0
    %1945 = vmatprep.subr.mxu0 0.0
    %1946 = vmatpush1.msra.mxu0 0.0
    %1947 = vmatprep.subr.mxu0 %v1395
    %1948 = vmatpush1.msra.mxu0 %v1394
    %1949 = vmatprep.subr.mxu0 %v1393
    %1950 = vmatpush1.msra.mxu0 %v1392
    %1951 = vmatprep.subr.mxu0 %v1391
    %1952 = vmatpush1.msra.mxu0 %v1390
    %1953 = vmatprep.subr.mxu0 %v1389
    %1954 = vmatpush1.msra.mxu0 %v1388
    %1955 = vmatprep.subr.mxu0 %v1387
    %1956 = vmatpush1.msra.mxu0 %v1386
    %1957 = vmatprep.subr.mxu0 %v1385
    %1958 = vmatpush1.msra.mxu0 %v1384
    %1959 = vmatprep.subr.mxu0 %v1383
    %1960 = vmatpush1.msra.mxu0 %v1382
    %1961 = vmatprep.subr.mxu0 %v1381
    %1962 = vmatpush1.msra.mxu0 %v1380
    %1963 = vmatprep.subr.mxu0 0.0
    %1964 = vmatpush2.msra.mxu0 0.0
    %1965 = vmatprep.subr.mxu0 0.0
    %1966 = vmatpush2.msra.mxu0 0.0
    %1967 = vmatprep.subr.mxu0 0.0
    %1968 = vmatpush2.msra.mxu0 0.0
    %1969 = vmatprep.subr.mxu0 0.0
    %1970 = vmatpush2.msra.mxu0 0.0
    %1971 = vmatprep.subr.mxu0 0.0
    %1972 = vmatpush2.msra.mxu0 0.0
    %1973 = vmatprep.subr.mxu0 0.0
    %1974 = vmatpush2.msra.mxu0 0.0
    %1975 = vmatprep.subr.mxu0 0.0
    %1976 = vmatpush2.msra.mxu0 0.0
    %1977 = vmatprep.subr.mxu0 0.0
    %1978 = vmatpush2.msra.mxu0 0.0
    %1979 = vmatprep.subr.mxu0 0.0
    %1980 = vmatpush2.msra.mxu0 0.0
    %1981 = vmatprep.subr.mxu0 0.0
    %1982 = vmatpush2.msra.mxu0 0.0
    %1983 = vmatprep.subr.mxu0 0.0
    %1984 = vmatpush2.msra.mxu0 0.0
    %1985 = vmatprep.subr.mxu0 0.0
    %1986 = vmatpush2.msra.mxu0 0.0
    %1987 = vmatprep.subr.mxu0 0.0
    %1988 = vmatpush2.msra.mxu0 0.0
    %1989 = vmatprep.subr.mxu0 0.0
    %1990 = vmatpush2.msra.mxu0 0.0
    %1991 = vmatprep.subr.mxu0 0.0
    %1992 = vmatpush2.msra.mxu0 0.0
    %1993 = vmatprep.subr.mxu0 0.0
    %1994 = vmatpush2.msra.mxu0 0.0
    %1995 = vmatprep.mubr.f32.mxu0 0.0
    %1996 = vmatmul.mubr.f32.gmra.mxu0 %v1929
    %v1997 = vpop.f32.mrf.mxu0
    %v1998 = vadd.f32 0.0, %v1997
    %v1999 = vpop.f32.mrf.mxu0
    %v2000 = vadd.f32 0.0, %v1999
    %2001 = vdwg.mxu0
    %v2002 = vadd.f32 %v1924, %v1998
    %v2003 = vadd.f32 %v1925, %v2000
    %v2004 = vxor.u32 %v2002, 2147483648
    %v2005 = vmul.f32 %v2004, 1.442695
    %v2006 = vpow.pop %v2005
    %v2007 = vadd.f32 %v2006, 1.0
    %v2008 = vrcp.pop %v2007
    %v2009 = vmul.f32 1.0, %v2008
    %v2010 = vtanh.pop %v2003
    %v2011 = vxor.u32 %v2003, 2147483648
    %v2012 = vmul.f32 %v2011, 1.442695
    %v2013 = vpow.pop %v2012
    %v2014 = vadd.f32 %v2013, 1.0
    %v2015 = vrcp.pop %v2014
    %v2016 = vmul.f32 1.0, %v2015
    %v2017 = vmul.f32 %v2009, %v1921
    %v2018 = vmul.f32 %v2009, %v2010
    %2020 = vrot.lane.b32.xlu0 %v2018, 64
    %v2021 = vpop.permute.xlu0 %2020
    %v2023 = vadd.f32 %v2017, %v2021
    %v2024 = vtanh.pop %v2023
    %v2025 = vmul.f32 %v2016, %v2024
    %v2026 = vsel %vm141, %v1464, %v1453
    %v2027 = vsel %vm142, %v1465, %v1454
    %2029 = vrot.lane.b32.xlu0 %v2025, 64
    %v2030 = vpop.permute.xlu0 %2029
    %v2031 = vsel %vm409, %v2030, 0
    %2033 = vmatprep.subr.mxu0 0.0
    %2034 = vmatpush1.msra.mxu0 0.0
    %2035 = vmatprep.subr.mxu0 0.0
    %2036 = vmatpush1.msra.mxu0 0.0
    %2037 = vmatprep.subr.mxu0 0.0
    %2038 = vmatpush1.msra.mxu0 0.0
    %2039 = vmatprep.subr.mxu0 0.0
    %2040 = vmatpush1.msra.mxu0 0.0
    %2041 = vmatprep.subr.mxu0 0.0
    %2042 = vmatpush1.msra.mxu0 0.0
    %2043 = vmatprep.subr.mxu0 0.0
    %2044 = vmatpush1.msra.mxu0 0.0
    %2045 = vmatprep.subr.mxu0 0.0
    %2046 = vmatpush1.msra.mxu0 0.0
    %2047 = vmatprep.subr.mxu0 0.0
    %2048 = vmatpush1.msra.mxu0 0.0
    %2049 = vmatprep.subr.mxu0 %v1395
    %2050 = vmatpush1.msra.mxu0 %v1394
    %2051 = vmatprep.subr.mxu0 %v1393
    %2052 = vmatpush1.msra.mxu0 %v1392
    %2053 = vmatprep.subr.mxu0 %v1391
    %2054 = vmatpush1.msra.mxu0 %v1390
    %2055 = vmatprep.subr.mxu0 %v1389
    %2056 = vmatpush1.msra.mxu0 %v1388
    %2057 = vmatprep.subr.mxu0 %v1387
    %2058 = vmatpush1.msra.mxu0 %v1386
    %2059 = vmatprep.subr.mxu0 %v1385
    %2060 = vmatpush1.msra.mxu0 %v1384
    %2061 = vmatprep.subr.mxu0 %v1383
    %2062 = vmatpush1.msra.mxu0 %v1382
    %2063 = vmatprep.subr.mxu0 %v1381
    %2064 = vmatpush1.msra.mxu0 %v1380
    %2065 = vmatprep.subr.mxu0 0.0
    %2066 = vmatpush2.msra.mxu0 0.0
    %2067 = vmatprep.subr.mxu0 0.0
    %2068 = vmatpush2.msra.mxu0 0.0
    %2069 = vmatprep.subr.mxu0 0.0
    %2070 = vmatpush2.msra.mxu0 0.0
    %2071 = vmatprep.subr.mxu0 0.0
    %2072 = vmatpush2.msra.mxu0 0.0
    %2073 = vmatprep.subr.mxu0 0.0
    %2074 = vmatpush2.msra.mxu0 0.0
    %2075 = vmatprep.subr.mxu0 0.0
    %2076 = vmatpush2.msra.mxu0 0.0
    %2077 = vmatprep.subr.mxu0 0.0
    %2078 = vmatpush2.msra.mxu0 0.0
    %2079 = vmatprep.subr.mxu0 0.0
    %2080 = vmatpush2.msra.mxu0 0.0
    %2081 = vmatprep.subr.mxu0 0.0
    %2082 = vmatpush2.msra.mxu0 0.0
    %2083 = vmatprep.subr.mxu0 0.0
    %2084 = vmatpush2.msra.mxu0 0.0
    %2085 = vmatprep.subr.mxu0 0.0
    %2086 = vmatpush2.msra.mxu0 0.0
    %2087 = vmatprep.subr.mxu0 0.0
    %2088 = vmatpush2.msra.mxu0 0.0
    %2089 = vmatprep.subr.mxu0 0.0
    %2090 = vmatpush2.msra.mxu0 0.0
    %2091 = vmatprep.subr.mxu0 0.0
    %2092 = vmatpush2.msra.mxu0 0.0
    %2093 = vmatprep.subr.mxu0 0.0
    %2094 = vmatpush2.msra.mxu0 0.0
    %2095 = vmatprep.subr.mxu0 0.0
    %2096 = vmatpush2.msra.mxu0 0.0
    %2097 = vmatprep.mubr.f32.mxu0 0.0
    %2098 = vmatmul.mubr.f32.gmra.mxu0 %v2031
    %v2099 = vpop.f32.mrf.mxu0
    %v2100 = vadd.f32 0.0, %v2099
    %v2101 = vpop.f32.mrf.mxu0
    %v2102 = vadd.f32 0.0, %v2101
    %2103 = vdwg.mxu0
    %v2104 = vadd.f32 %v2026, %v2100
    %v2105 = vadd.f32 %v2027, %v2102
    %v2106 = vxor.u32 %v2104, 2147483648
    %v2107 = vmul.f32 %v2106, 1.442695
    %v2108 = vpow.pop %v2107
    %v2109 = vadd.f32 %v2108, 1.0
    %v2110 = vrcp.pop %v2109
    %v2111 = vmul.f32 1.0, %v2110
    %v2112 = vtanh.pop %v2105
    %v2113 = vxor.u32 %v2105, 2147483648
    %v2114 = vmul.f32 %v2113, 1.442695
    %v2115 = vpow.pop %v2114
    %v2116 = vadd.f32 %v2115, 1.0
    %v2117 = vrcp.pop %v2116
    %v2118 = vmul.f32 1.0, %v2117
    %v2119 = vmul.f32 %v2111, %v2023
    %v2120 = vmul.f32 %v2111, %v2112
    %2122 = vrot.lane.b32.xlu0 %v2120, 64
    %v2123 = vpop.permute.xlu0 %2122
    %v2125 = vadd.f32 %v2119, %v2123
    %v2126 = vtanh.pop %v2125
    %v2127 = vmul.f32 %v2118, %v2126
    %v2128 = vsel %vm141, %v1416, %v1405
    %v2129 = vsel %vm142, %v1417, %v1406
    %2131 = vrot.lane.b32.xlu0 %v2127, 64
    %v2132 = vpop.permute.xlu0 %2131
    %v2133 = vsel %vm409, %v2132, 0
    %2135 = vmatprep.subr.mxu0 0.0
    %2136 = vmatpush1.msra.mxu0 0.0
    %2137 = vmatprep.subr.mxu0 0.0
    %2138 = vmatpush1.msra.mxu0 0.0
    %2139 = vmatprep.subr.mxu0 0.0
    %2140 = vmatpush1.msra.mxu0 0.0
    %2141 = vmatprep.subr.mxu0 0.0
    %2142 = vmatpush1.msra.mxu0 0.0
    %2143 = vmatprep.subr.mxu0 0.0
    %2144 = vmatpush1.msra.mxu0 0.0
    %2145 = vmatprep.subr.mxu0 0.0
    %2146 = vmatpush1.msra.mxu0 0.0
    %2147 = vmatprep.subr.mxu0 0.0
    %2148 = vmatpush1.msra.mxu0 0.0
    %2149 = vmatprep.subr.mxu0 0.0
    %2150 = vmatpush1.msra.mxu0 0.0
    %2151 = vmatprep.subr.mxu0 %v1395
    %2152 = vmatpush1.msra.mxu0 %v1394
    %2153 = vmatprep.subr.mxu0 %v1393
    %2154 = vmatpush1.msra.mxu0 %v1392
    %2155 = vmatprep.subr.mxu0 %v1391
    %2156 = vmatpush1.msra.mxu0 %v1390
    %2157 = vmatprep.subr.mxu0 %v1389
    %2158 = vmatpush1.msra.mxu0 %v1388
    %2159 = vmatprep.subr.mxu0 %v1387
    %2160 = vmatpush1.msra.mxu0 %v1386
    %2161 = vmatprep.subr.mxu0 %v1385
    %2162 = vmatpush1.msra.mxu0 %v1384
    %2163 = vmatprep.subr.mxu0 %v1383
    %2164 = vmatpush1.msra.mxu0 %v1382
    %2165 = vmatprep.subr.mxu0 %v1381
    %2166 = vmatpush1.msra.mxu0 %v1380
    %2167 = vmatprep.subr.mxu0 0.0
    %2168 = vmatpush2.msra.mxu0 0.0
    %2169 = vmatprep.subr.mxu0 0.0
    %2170 = vmatpush2.msra.mxu0 0.0
    %2171 = vmatprep.subr.mxu0 0.0
    %2172 = vmatpush2.msra.mxu0 0.0
    %2173 = vmatprep.subr.mxu0 0.0
    %2174 = vmatpush2.msra.mxu0 0.0
    %2175 = vmatprep.subr.mxu0 0.0
    %2176 = vmatpush2.msra.mxu0 0.0
    %2177 = vmatprep.subr.mxu0 0.0
    %2178 = vmatpush2.msra.mxu0 0.0
    %2179 = vmatprep.subr.mxu0 0.0
    %2180 = vmatpush2.msra.mxu0 0.0
    %2181 = vmatprep.subr.mxu0 0.0
    %2182 = vmatpush2.msra.mxu0 0.0
    %2183 = vmatprep.subr.mxu0 0.0
    %2184 = vmatpush2.msra.mxu0 0.0
    %2185 = vmatprep.subr.mxu0 0.0
    %2186 = vmatpush2.msra.mxu0 0.0
    %2187 = vmatprep.subr.mxu0 0.0
    %2188 = vmatpush2.msra.mxu0 0.0
    %2189 = vmatprep.subr.mxu0 0.0
    %2190 = vmatpush2.msra.mxu0 0.0
    %2191 = vmatprep.subr.mxu0 0.0
    %2192 = vmatpush2.msra.mxu0 0.0
    %2193 = vmatprep.subr.mxu0 0.0
    %2194 = vmatpush2.msra.mxu0 0.0
    %2195 = vmatprep.subr.mxu0 0.0
    %2196 = vmatpush2.msra.mxu0 0.0
    %2197 = vmatprep.subr.mxu0 0.0
    %2198 = vmatpush2.msra.mxu0 0.0
    %2199 = vmatprep.mubr.f32.mxu0 0.0
    %2200 = vmatmul.mubr.f32.gmra.mxu0 %v2133
    %v2201 = vpop.f32.mrf.mxu0
    %v2202 = vadd.f32 0.0, %v2201
    %v2203 = vpop.f32.mrf.mxu0
    %v2204 = vadd.f32 0.0, %v2203
    %2205 = vdwg.mxu0
    %v2206 = vadd.f32 %v2128, %v2202
    %v2207 = vadd.f32 %v2129, %v2204
    %v2208 = vxor.u32 %v2206, 2147483648
    %v2209 = vmul.f32 %v2208, 1.442695
    %v2210 = vpow.pop %v2209
    %v2211 = vadd.f32 %v2210, 1.0
    %v2212 = vrcp.pop %v2211
    %v2213 = vmul.f32 1.0, %v2212
    %v2214 = vtanh.pop %v2207
    %v2215 = vxor.u32 %v2207, 2147483648
    %v2216 = vmul.f32 %v2215, 1.442695
    %v2217 = vpow.pop %v2216
    %v2218 = vadd.f32 %v2217, 1.0
    %v2219 = vrcp.pop %v2218
    %v2220 = vmul.f32 1.0, %v2219
    %v2221 = vmul.f32 %v2213, %v2125
    %v2222 = vmul.f32 %v2213, %v2214
    %2224 = vrot.lane.b32.xlu0 %v2222, 64
    %v2225 = vpop.permute.xlu0 %2224
    %v2227 = vadd.f32 %v2221, %v2225
    %v2228 = vtanh.pop %v2227
    %v2229 = vmul.f32 %v2220, %v2228
    %2232 = vrot.lane.b32.xlu0 %v2229, 64
    %v2233 = vpop.permute.xlu0 %2232
    %v2235 = vsel %vm143, %v1472, %v2233
    %v2238 = vsel %vm143, %v1598, %v2132
    %v2241 = vsel %vm143, %v1724, %v2030
    %v2244 = vsel %vm143, %v1826, %v1928
    %v2245 = vsel %vm143, %v1928, %v1826
    %v2246 = vsel %vm143, %v2030, %v1724
    %v2247 = vsel %vm143, %v2132, %v1598
    %v2248 = vsel %vm143, %v2233, %v1472
    %v2250 = vrot.slane %v2238, 6
    %v2253 = vrot.slane %v2241, 4
    %v2256 = vrot.slane %v2244, 2
    %v2259 = vrot.slane %v2246, 6
    %v2262 = vrot.slane %v2247, 4
    %v2265 = vrot.slane %v2248, 2
    %v2267 = vsel %vm1204, %v2235, %v2250
    %v2268 = vsel %vm1206, %v2267, %v2253
    %v2269 = vsel %vm1208, %v2268, %v2256
    %v2270 = vsel %vm1204, %v2245, %v2259
    %v2271 = vsel %vm1206, %v2270, %v2262
    %v2272 = vsel %vm1208, %v2271, %v2265
    %v2273 = vld [vmem:[#allocation11] sm:$0xff]
    %v2274 = vld [vmem:[#allocation11 + $0x8] sm:$0xff]
    %v2275 = vld [vmem:[#allocation11 + $0x10] sm:$0xff]
    %v2276 = vld [vmem:[#allocation11 + $0x18] sm:$0xff]
    %v2277 = vld [vmem:[#allocation11 + $0x20] sm:$0xff]
    %v2278 = vld [vmem:[#allocation11 + $0x28] sm:$0xff]
    %v2279 = vld [vmem:[#allocation11 + $0x30] sm:$0xff]
    %v2280 = vld [vmem:[#allocation11 + $0x38] sm:$0xff]
    %v2281 = vld [vmem:[%s8] sm:$0x1]
    %v2283 = vlaneseq
    %v2284 = vshrl.u32 %v2283, 7
    %v2285 = vsub.s32 0, %v2284
    %v2286 = vrot.slane %v2281, %v2285
    %v2289 = vsel %vm409, %v2269, 0
    %v2292 = vsel %vm409, %v2272, 0
    %2294 = vmatprep.subr.mxu0 0.0
    %2295 = vmatpush1.msra.mxu0 0.0
    %2296 = vmatprep.subr.mxu0 0.0
    %2297 = vmatpush1.msra.mxu0 0.0
    %2298 = vmatprep.subr.mxu0 0.0
    %2299 = vmatpush1.msra.mxu0 0.0
    %2300 = vmatprep.subr.mxu0 0.0
    %2301 = vmatpush1.msra.mxu0 0.0
    %2302 = vmatprep.subr.mxu0 0.0
    %2303 = vmatpush1.msra.mxu0 0.0
    %2304 = vmatprep.subr.mxu0 0.0
    %2305 = vmatpush1.msra.mxu0 0.0
    %2306 = vmatprep.subr.mxu0 0.0
    %2307 = vmatpush1.msra.mxu0 0.0
    %2308 = vmatprep.subr.mxu0 0.0
    %2309 = vmatpush1.msra.mxu0 0.0
    %2310 = vmatprep.subr.mxu0 0.0
    %2311 = vmatpush1.msra.mxu0 %v2280
    %2312 = vmatprep.subr.mxu0 0.0
    %2313 = vmatpush1.msra.mxu0 %v2279
    %2314 = vmatprep.subr.mxu0 0.0
    %2315 = vmatpush1.msra.mxu0 %v2278
    %2316 = vmatprep.subr.mxu0 0.0
    %2317 = vmatpush1.msra.mxu0 %v2277
    %2318 = vmatprep.subr.mxu0 0.0
    %2319 = vmatpush1.msra.mxu0 %v2276
    %2320 = vmatprep.subr.mxu0 0.0
    %2321 = vmatpush1.msra.mxu0 %v2275
    %2322 = vmatprep.subr.mxu0 0.0
    %2323 = vmatpush1.msra.mxu0 %v2274
    %2324 = vmatprep.subr.mxu0 0.0
    %2325 = vmatpush1.msra.mxu0 %v2273
    %2326 = vmatprep.subr.mxu0 0.0
    %2327 = vmatpush2.msra.mxu0 0.0
    %2328 = vmatprep.subr.mxu0 0.0
    %2329 = vmatpush2.msra.mxu0 0.0
    %2330 = vmatprep.subr.mxu0 0.0
    %2331 = vmatpush2.msra.mxu0 0.0
    %2332 = vmatprep.subr.mxu0 0.0
    %2333 = vmatpush2.msra.mxu0 0.0
    %2334 = vmatprep.subr.mxu0 0.0
    %2335 = vmatpush2.msra.mxu0 0.0
    %2336 = vmatprep.subr.mxu0 0.0
    %2337 = vmatpush2.msra.mxu0 0.0
    %2338 = vmatprep.subr.mxu0 0.0
    %2339 = vmatpush2.msra.mxu0 0.0
    %2340 = vmatprep.subr.mxu0 0.0
    %2341 = vmatpush2.msra.mxu0 0.0
    %2342 = vmatprep.subr.mxu0 0.0
    %2343 = vmatpush2.msra.mxu0 0.0
    %2344 = vmatprep.subr.mxu0 0.0
    %2345 = vmatpush2.msra.mxu0 0.0
    %2346 = vmatprep.subr.mxu0 0.0
    %2347 = vmatpush2.msra.mxu0 0.0
    %2348 = vmatprep.subr.mxu0 0.0
    %2349 = vmatpush2.msra.mxu0 0.0
    %2350 = vmatprep.subr.mxu0 0.0
    %2351 = vmatpush2.msra.mxu0 0.0
    %2352 = vmatprep.subr.mxu0 0.0
    %2353 = vmatpush2.msra.mxu0 0.0
    %2354 = vmatprep.subr.mxu0 0.0
    %2355 = vmatpush2.msra.mxu0 0.0
    %2356 = vmatprep.subr.mxu0 0.0
    %2357 = vmatpush2.msra.mxu0 0.0
    %2358 = vmatprep.mubr.f32.mxu0 0.0
    %2359 = vmatmul.mubr.f32.gmra.mxu0 %v2289
    %v2360 = vpop.f32.mrf.mxu0
    %v2361 = vadd.f32 %v2286, %v2360
    %v2362 = vpop.f32.mrf.mxu0
    %2363 = vmatprep.mubr.f32.mxu0 0.0
    %2364 = vmatmul.mubr.f32.gmra.mxu0 %v2292
    %v2365 = vpop.f32.mrf.mxu0
    %v2366 = vadd.f32 %v2286, %v2365
    %v2367 = vpop.f32.mrf.mxu0
    %2368 = vdwg.mxu0
    %2369 = vst [vmem:[%s9] sm:$0xff] %v2361
    %2370 = vst [vmem:[%s9 + $0x8] sm:$0xff] %v2366
    // Predicated region
    $region62: #{lstm_reg_forward.1} parent=1 // pred_check
      _
    $region63: #{lstm_reg_forward.1} parent=1 // pred_check_branch
      %2372 = sbr.rel (0) target = $region65
    $region64: #{lstm_reg_forward.1} parent=1 // pred_region
      _
    $region65: #{lstm_reg_forward.1} parent=1 // pred_fallthru
      _
    // Predicated region
    $region66: #{lstm_reg_forward.1} parent=1 // pred_check
      _
    $region67: #{lstm_reg_forward.1} parent=1 // pred_check_branch
      %2374 = sbr.rel (0) target = $region69
    $region68: #{lstm_reg_forward.1} parent=1 // pred_region
      _
    $region69: #{lstm_reg_forward.1} parent=1 // pred_fallthru
      _
    %2375 = vsyncpa [#allocation4], 1
    %2376 = vsyncpa [#allocation6], 1
    %2377 = vsyncpa [#allocation9], 1
    %2378 = vsyncpa [#allocation12], 1

</llo_original>
